<compile_context>
chip_gen: v7x
topology: tpu7x:2x2x1
jax: 0.10.0
libtpu: 0.0.40
codegen_flags: <defaults>
</compile_context>

<pallas_src>
import math

import jax
import jax.numpy as jnp
from jax.experimental import pallas as pl
from jax.experimental.pallas import tpu as pltpu

L = 64        # sequence length implied by Linear(16 * 64, 512)
LANES = 128   # lane width


def _round_up(a, b):
    return (a + b - 1) // b * b


def lenet_kernel(x_ref, m1_ref, b1_ref, m2_ref, b2_ref, w3_ref, b3_ref,
                 w4_ref, b4_ref, w5_ref, b5_ref, o_ref):
    """Whole forward pass for one batch tile: 5 MXU matmuls + 4 sigmoids."""

    def sigmoid(z):
        # sigmoid(z) == 0.5 * tanh(0.5 * z) + 0.5 : one EUP op per element,
        # mul/add ride the VPU which has slack.  f32 math (v5e-safe).
        return 0.5 * jnp.tanh(0.5 * z) + 0.5

    def mm(a, w_ref):
        w = w_ref[...]
        # f32 accumulation on the MXU regardless of operand dtype.
        return jnp.dot(a.astype(w.dtype), w, preferred_element_type=jnp.float32)

    x = x_ref[...]                                       # (bt, 128), matmul dtype
    # Conv1d(1->6, k=3, p=1) + Sigmoid : one banded matmul (bt,128)@(128,384)
    a1 = sigmoid(mm(x, m1_ref) + b1_ref[...])            # (bt, 384)  f32
    # Conv1d(6->16, k=3, p=1) + Sigmoid : one banded matmul (bt,384)@(384,1024)
    a2 = sigmoid(mm(a1, m2_ref) + b2_ref[...])           # (bt, 1024) f32
    # a2 already equals torch's channel-major Flatten -> fc layers are plain matmuls.
    a3 = sigmoid(mm(a2, w3_ref) + b3_ref[...])           # (bt, 512)
    a4 = sigmoid(mm(a3, w4_ref) + b4_ref[...])           # (bt, 64)
    # Linear(64 -> 2), zero-padded to 128 output lanes for a dense (unmasked) store.
    o_ref[...] = mm(a4, w5_ref) + b5_ref[...]            # (bt, 128)


def lenet_forward(x, params, *, matmul_dtype=jnp.bfloat16, block_batch=512):
    w1, b1, w2, b2, w3, b3, w4, b4, w5, b5 = params
    n, cin, seq = x.shape
    assert cin == 1 and seq == L

    # ---- batch tile (multiple of 256/128 for large N; full-array tile for small N)
    bt = block_batch if n >= block_batch else _round_up(n, 16)
    n_pad = _round_up(n, bt)

    # ---- input slab: (n_pad, 128) lane-dense, already in the matmul dtype --------
    x2 = x.reshape(n, seq)
    x2 = jnp.pad(x2, ((0, n_pad - n), (0, LANES - seq))).astype(matmul_dtype)

    # ---- fold the 3-tap convs into banded weight matrices -------------------------
    # torch Conv1d (cross-correlation, pad=1):
    #   y[co, l'] = b[co] + sum_{ci,k} w[co,ci,k] * x[ci, l' + k - 1]
    # as a matmul on channel-major-flattened activations (B, C*L):
    #   M[ci*L + l, co*L + l'] = w[co, ci, l - l' + 1]   if |l - l'| <= 1 else 0
    li = jnp.arange(seq)[:, None]                     # input position l
    lo = jnp.arange(seq)[None, :]                     # output position l'
    tap = li - lo + 1                                 # tap index k
    valid = (tap >= 0) & (tap <= 2)                   # (L, L) tri-diagonal band
    tapc = jnp.clip(tap, 0, 2)

    w1k = w1[:, 0, :]                                 # (6, 3)
    m1 = jnp.where(valid[:, None, :],
                   jnp.transpose(w1k[:, tapc], (1, 0, 2)),       # (L, 6, L)
                   0.0).reshape(seq, 6 * seq)                    # (64, 384)
    m1 = jnp.pad(m1, ((0, LANES - seq), (0, 0)))                 # (128, 384) zero rows
                                                                 # match the zero lanes of x

    m2 = jnp.where(valid[None, :, None, :],
                   jnp.transpose(w2[:, :, tapc], (1, 2, 0, 3)),  # (6, L, 16, L)
                   0.0).reshape(6 * seq, 16 * seq)               # (384, 1024)

    w3t = w3.T                                                   # (1024, 512)
    w4t = w4.T                                                   # (512, 64)
    w5p = jnp.pad(w5.T, ((0, 0), (0, LANES - w5.shape[0])))      # (64, 128)

    b1f = jnp.repeat(b1, seq).reshape(1, 6 * seq)
    b2f = jnp.repeat(b2, seq).reshape(1, 16 * seq)
    b3f = b3.reshape(1, -1)
    b4f = b4.reshape(1, -1)
    b5p = jnp.pad(b5, (0, LANES - b5.shape[0])).reshape(1, LANES)

    # MXU-fed operands in the matmul dtype (bf16 default); biases / sigmoid math
    # stay f32 everywhere (v5e has no bf16 VPU/EUP), accumulation is f32.
    m1, m2, w3t, w4t, w5p = [a.astype(matmul_dtype) for a in (m1, m2, w3t, w4t, w5p)]

    def resident(a):
        # Full-array block with a constant index_map: copied to VMEM once, stays
        # resident.  Weights total ~2 MB bf16, so default double-buffering only
        # adds ~2 MB -- fits every generation's scoped VMEM; Buffered(1) not needed.
        return pl.BlockSpec(a.shape, lambda i: (0, 0))

    out = pl.pallas_call(
        lenet_kernel,
        out_shape=jax.ShapeDtypeStruct((n_pad, LANES), jnp.float32),
        grid_spec=pltpu.PrefetchScalarGridSpec(
            num_scalar_prefetch=0,
            grid=(n_pad // bt,),
            in_specs=[
                pl.BlockSpec((bt, LANES), lambda i: (i, 0)),   # x (batch-tiled)
                resident(m1), resident(b1f),
                resident(m2), resident(b2f),
                resident(w3t), resident(b3f),
                resident(w4t), resident(b4f),
                resident(w5p), resident(b5p),
            ],
            out_specs=pl.BlockSpec((bt, LANES), lambda i: (i, 0)),
        ),
        compiler_params=pltpu.CompilerParams(
            dimension_semantics=("parallel",)),
    )(x2, m1, b1f, m2, b2f, w3t, b3f, w4t, b4f, w5p, b5p)

    return out[:n, :2]


def ref_forward(x, params):
    """Pure-JAX reference matching torch semantics (f32)."""
    w1, b1, w2, b2, w3, b3, w4, b4, w5, b5 = params
    dn = ('NCH', 'OIH', 'NCH')
    a = jax.nn.sigmoid(
        jax.lax.conv_general_dilated(x, w1, (1,), [(1, 1)], dimension_numbers=dn)
        + b1[None, :, None])
    a = jax.nn.sigmoid(
        jax.lax.conv_general_dilated(a, w2, (1,), [(1, 1)], dimension_numbers=dn)
        + b2[None, :, None])
    a = a.reshape(a.shape[0], -1)
    a = jax.nn.sigmoid(a @ w3.T + b3)
    a = jax.nn.sigmoid(a @ w4.T + b4)
    return a @ w5.T + b5


def init_params(key):
    def uni(k, shape, fan_in):
        bound = 1.0 / math.sqrt(fan_in)
        return jax.random.uniform(k, shape, jnp.float32, -bound, bound)

    ks = jax.random.split(key, 10)
    w1 = uni(ks[0], (6, 1, 3), 1 * 3);      b1 = uni(ks[1], (6,), 1 * 3)
    w2 = uni(ks[2], (16, 6, 3), 6 * 3);     b2 = uni(ks[3], (16,), 6 * 3)
    w3 = uni(ks[4], (512, 16 * L), 16 * L); b3 = uni(ks[5], (512,), 16 * L)
    w4 = uni(ks[6], (64, 512), 512);        b4 = uni(ks[7], (64,), 512)
    w5 = uni(ks[8], (2, 64), 64);           b5 = uni(ks[9], (2,), 64)
    return (w1, b1, w2, b2, w3, b3, w4, b4, w5, b5)


if __name__ == "__main__":
    key = jax.random.PRNGKey(0)
    pkey, xkey = jax.random.split(key)
    params = init_params(pkey)

    x = jax.random.normal(xkey, (20, 1, L), jnp.float32)   # (batch, channels, length)

    ref = jax.block_until_ready(ref_forward(x, params))

    # Exact f32 path with a small batch tile -> multi-step grid, tight check.
    out_f32 = jax.block_until_ready(
        lenet_forward(x, params, matmul_dtype=jnp.float32, block_batch=8))
    assert out_f32.shape == (20, 2), out_f32.shape
    assert jnp.allclose(out_f32, ref, rtol=1e-4, atol=1e-4), (out_f32, ref)

    # Default bf16-MXU perf path: looser tolerance.
    out_bf16 = jax.block_until_ready(lenet_forward(x, params))
    assert out_bf16.shape == (20, 2), out_bf16.shape
    assert jnp.allclose(out_bf16, ref, rtol=3e-2, atol=3e-2), (out_bf16, ref)

    print("KERNEL_OK")
</pallas_src>

<mosaic_0001>
module attributes {stable_mosaic.version = 11 : i64} {
  func.func @lenet_kernel(%arg0: i32, %arg1: memref<8x128xf32, #tpu.memory_space<vmem>>, %arg2: memref<128x384xf32, #tpu.memory_space<vmem>>, %arg3: memref<1x384xf32, #tpu.memory_space<vmem>>, %arg4: memref<384x1024xf32, #tpu.memory_space<vmem>>, %arg5: memref<1x1024xf32, #tpu.memory_space<vmem>>, %arg6: memref<1024x512xf32, #tpu.memory_space<vmem>>, %arg7: memref<1x512xf32, #tpu.memory_space<vmem>>, %arg8: memref<512x64xf32, #tpu.memory_space<vmem>>, %arg9: memref<1x64xf32, #tpu.memory_space<vmem>>, %arg10: memref<64x128xf32, #tpu.memory_space<vmem>>, %arg11: memref<1x128xf32, #tpu.memory_space<vmem>>, %arg12: memref<8x128xf32, #tpu.memory_space<vmem>>) attributes {dimension_semantics = [#tpu.dimension_semantics<parallel>], iteration_bounds = array<i64: 3>, scalar_prefetch = 0 : i64, scratch_operands = 0 : i64, tpu.core_type = #tpu.core_type<tc>, window_params = [{transform_indices = @transform_0, window_bounds = array<i64: 8, 128>}, {pipeline_mode = #tpu.pipeline_mode<synchronous>, transform_indices = @transform_1, window_bounds = array<i64: 128, 384>}, {pipeline_mode = #tpu.pipeline_mode<synchronous>, transform_indices = @transform_2, window_bounds = array<i64: 1, 384>}, {pipeline_mode = #tpu.pipeline_mode<synchronous>, transform_indices = @transform_3, window_bounds = array<i64: 384, 1024>}, {pipeline_mode = #tpu.pipeline_mode<synchronous>, transform_indices = @transform_4, window_bounds = array<i64: 1, 1024>}, {pipeline_mode = #tpu.pipeline_mode<synchronous>, transform_indices = @transform_5, window_bounds = array<i64: 1024, 512>}, {pipeline_mode = #tpu.pipeline_mode<synchronous>, transform_indices = @transform_6, window_bounds = array<i64: 1, 512>}, {pipeline_mode = #tpu.pipeline_mode<synchronous>, transform_indices = @transform_7, window_bounds = array<i64: 512, 64>}, {pipeline_mode = #tpu.pipeline_mode<synchronous>, transform_indices = @transform_8, window_bounds = array<i64: 1, 64>}, {pipeline_mode = #tpu.pipeline_mode<synchronous>, transform_indices = @transform_9, window_bounds = array<i64: 64, 128>}, {pipeline_mode = #tpu.pipeline_mode<synchronous>, transform_indices = @transform_10, window_bounds = array<i64: 1, 128>}, {transform_indices = @transform_11, window_bounds = array<i64: 8, 128>}]} {
    %c0 = arith.constant 0 : index
    %c0_0 = arith.constant 0 : index
    %0 = vector.load %arg1[%c0, %c0_0] : memref<8x128xf32, #tpu.memory_space<vmem>>, vector<8x128xf32>
    %c0_1 = arith.constant 0 : index
    %c0_2 = arith.constant 0 : index
    %1 = vector.load %arg2[%c0_1, %c0_2] : memref<128x384xf32, #tpu.memory_space<vmem>>, vector<128x384xf32>
    %cst = arith.constant dense<0.000000e+00> : vector<8x384xf32>
    %2 = tpu.matmul %0, %1, %cst {dimension_numbers = #tpu.dot_dimension_numbers<[1], [0], [0], [1], [0, 0, 1, 1], [], []>} : vector<8x128xf32>, vector<128x384xf32>, vector<8x384xf32> -> vector<8x384xf32>
    %c0_3 = arith.constant 0 : index
    %c0_4 = arith.constant 0 : index
    %3 = vector.load %arg3[%c0_3, %c0_4] : memref<1x384xf32, #tpu.memory_space<vmem>>, vector<1x384xf32>
    %4 = vector.broadcast %3 : vector<1x384xf32> to vector<8x384xf32>
    %5 = arith.addf %2, %4 : vector<8x384xf32>
    %cst_5 = arith.constant 5.000000e-01 : f32
    %6 = vector.broadcast %cst_5 : f32 to vector<8x384xf32>
    %7 = arith.mulf %6, %5 : vector<8x384xf32>
    %8 = math.tanh %7 : vector<8x384xf32>
    %cst_6 = arith.constant 5.000000e-01 : f32
    %9 = vector.broadcast %cst_6 : f32 to vector<8x384xf32>
    %10 = arith.mulf %9, %8 : vector<8x384xf32>
    %cst_7 = arith.constant 5.000000e-01 : f32
    %11 = vector.broadcast %cst_7 : f32 to vector<8x384xf32>
    %12 = arith.addf %10, %11 : vector<8x384xf32>
    %c0_8 = arith.constant 0 : index
    %c0_9 = arith.constant 0 : index
    %13 = vector.load %arg4[%c0_8, %c0_9] : memref<384x1024xf32, #tpu.memory_space<vmem>>, vector<384x1024xf32>
    %cst_10 = arith.constant dense<0.000000e+00> : vector<8x1024xf32>
    %14 = tpu.matmul %12, %13, %cst_10 {dimension_numbers = #tpu.dot_dimension_numbers<[1], [0], [0], [1], [0, 0, 1, 1], [], []>} : vector<8x384xf32>, vector<384x1024xf32>, vector<8x1024xf32> -> vector<8x1024xf32>
    %c0_11 = arith.constant 0 : index
    %c0_12 = arith.constant 0 : index
    %15 = vector.load %arg5[%c0_11, %c0_12] : memref<1x1024xf32, #tpu.memory_space<vmem>>, vector<1x1024xf32>
    %16 = vector.broadcast %15 : vector<1x1024xf32> to vector<8x1024xf32>
    %17 = arith.addf %14, %16 : vector<8x1024xf32>
    %cst_13 = arith.constant 5.000000e-01 : f32
    %18 = vector.broadcast %cst_13 : f32 to vector<8x1024xf32>
    %19 = arith.mulf %18, %17 : vector<8x1024xf32>
    %20 = math.tanh %19 : vector<8x1024xf32>
    %cst_14 = arith.constant 5.000000e-01 : f32
    %21 = vector.broadcast %cst_14 : f32 to vector<8x1024xf32>
    %22 = arith.mulf %21, %20 : vector<8x1024xf32>
    %cst_15 = arith.constant 5.000000e-01 : f32
    %23 = vector.broadcast %cst_15 : f32 to vector<8x1024xf32>
    %24 = arith.addf %22, %23 : vector<8x1024xf32>
    %c0_16 = arith.constant 0 : index
    %c0_17 = arith.constant 0 : index
    %25 = vector.load %arg6[%c0_16, %c0_17] : memref<1024x512xf32, #tpu.memory_space<vmem>>, vector<1024x512xf32>
    %cst_18 = arith.constant dense<0.000000e+00> : vector<8x512xf32>
    %26 = tpu.matmul %24, %25, %cst_18 {dimension_numbers = #tpu.dot_dimension_numbers<[1], [0], [0], [1], [0, 0, 1, 1], [], []>} : vector<8x1024xf32>, vector<1024x512xf32>, vector<8x512xf32> -> vector<8x512xf32>
    %c0_19 = arith.constant 0 : index
    %c0_20 = arith.constant 0 : index
    %27 = vector.load %arg7[%c0_19, %c0_20] : memref<1x512xf32, #tpu.memory_space<vmem>>, vector<1x512xf32>
    %28 = vector.broadcast %27 : vector<1x512xf32> to vector<8x512xf32>
    %29 = arith.addf %26, %28 : vector<8x512xf32>
    %cst_21 = arith.constant 5.000000e-01 : f32
    %30 = vector.broadcast %cst_21 : f32 to vector<8x512xf32>
    %31 = arith.mulf %30, %29 : vector<8x512xf32>
    %32 = math.tanh %31 : vector<8x512xf32>
    %cst_22 = arith.constant 5.000000e-01 : f32
    %33 = vector.broadcast %cst_22 : f32 to vector<8x512xf32>
    %34 = arith.mulf %33, %32 : vector<8x512xf32>
    %cst_23 = arith.constant 5.000000e-01 : f32
    %35 = vector.broadcast %cst_23 : f32 to vector<8x512xf32>
    %36 = arith.addf %34, %35 : vector<8x512xf32>
    %c0_24 = arith.constant 0 : index
    %c0_25 = arith.constant 0 : index
    %37 = vector.load %arg8[%c0_24, %c0_25] : memref<512x64xf32, #tpu.memory_space<vmem>>, vector<512x64xf32>
    %cst_26 = arith.constant dense<0.000000e+00> : vector<8x64xf32>
    %38 = tpu.matmul %36, %37, %cst_26 {dimension_numbers = #tpu.dot_dimension_numbers<[1], [0], [0], [1], [0, 0, 1, 1], [], []>} : vector<8x512xf32>, vector<512x64xf32>, vector<8x64xf32> -> vector<8x64xf32>
    %c0_27 = arith.constant 0 : index
    %c0_28 = arith.constant 0 : index
    %39 = vector.load %arg9[%c0_27, %c0_28] : memref<1x64xf32, #tpu.memory_space<vmem>>, vector<1x64xf32>
    %40 = vector.broadcast %39 : vector<1x64xf32> to vector<8x64xf32>
    %41 = arith.addf %38, %40 : vector<8x64xf32>
    %cst_29 = arith.constant 5.000000e-01 : f32
    %42 = vector.broadcast %cst_29 : f32 to vector<8x64xf32>
    %43 = arith.mulf %42, %41 : vector<8x64xf32>
    %44 = math.tanh %43 : vector<8x64xf32>
    %cst_30 = arith.constant 5.000000e-01 : f32
    %45 = vector.broadcast %cst_30 : f32 to vector<8x64xf32>
    %46 = arith.mulf %45, %44 : vector<8x64xf32>
    %cst_31 = arith.constant 5.000000e-01 : f32
    %47 = vector.broadcast %cst_31 : f32 to vector<8x64xf32>
    %48 = arith.addf %46, %47 : vector<8x64xf32>
    %c0_32 = arith.constant 0 : index
    %c0_33 = arith.constant 0 : index
    %49 = vector.load %arg10[%c0_32, %c0_33] : memref<64x128xf32, #tpu.memory_space<vmem>>, vector<64x128xf32>
    %cst_34 = arith.constant dense<0.000000e+00> : vector<8x128xf32>
    %50 = tpu.matmul %48, %49, %cst_34 {dimension_numbers = #tpu.dot_dimension_numbers<[1], [0], [0], [1], [0, 0, 1, 1], [], []>} : vector<8x64xf32>, vector<64x128xf32>, vector<8x128xf32> -> vector<8x128xf32>
    %c0_35 = arith.constant 0 : index
    %c0_36 = arith.constant 0 : index
    %51 = vector.load %arg11[%c0_35, %c0_36] : memref<1x128xf32, #tpu.memory_space<vmem>>, vector<1x128xf32>
    %52 = vector.broadcast %51 : vector<1x128xf32> to vector<8x128xf32>
    %53 = arith.addf %50, %52 : vector<8x128xf32>
    %c0_37 = arith.constant 0 : index
    %c0_38 = arith.constant 0 : index
    %54 = vector.load %arg12[%c0_37, %c0_38] : memref<8x128xf32, #tpu.memory_space<vmem>>, vector<8x128xf32>
    tpu.vector_store %arg12[%c0_37, %c0_38], %53 {strides = array<i32>} : memref<8x128xf32, #tpu.memory_space<vmem>>, vector<8x128xf32>,
    return
  }
  func.func @transform_0(%arg0: i32) -> (i32, i32) {
    %c0_i32 = arith.constant 0 : i32
    %c0_i32_0 = arith.constant 0 : i32
    return %arg0, %c0_i32 : i32, i32
  }
  func.func @transform_1(%arg0: i32) -> (i32, i32) {
    %c0_i32 = arith.constant 0 : i32
    %c0_i32_0 = arith.constant 0 : i32
    %c0_i32_1 = arith.constant 0 : i32
    return %c0_i32, %c0_i32_0 : i32, i32
  }
  func.func @transform_2(%arg0: i32) -> (i32, i32) {
    %c0_i32 = arith.constant 0 : i32
    %c0_i32_0 = arith.constant 0 : i32
    %c0_i32_1 = arith.constant 0 : i32
    return %c0_i32, %c0_i32_0 : i32, i32
  }
  func.func @transform_3(%arg0: i32) -> (i32, i32) {
    %c0_i32 = arith.constant 0 : i32
    %c0_i32_0 = arith.constant 0 : i32
    %c0_i32_1 = arith.constant 0 : i32
    return %c0_i32, %c0_i32_0 : i32, i32
  }
  func.func @transform_4(%arg0: i32) -> (i32, i32) {
    %c0_i32 = arith.constant 0 : i32
    %c0_i32_0 = arith.constant 0 : i32
    %c0_i32_1 = arith.constant 0 : i32
    return %c0_i32, %c0_i32_0 : i32, i32
  }
  func.func @transform_5(%arg0: i32) -> (i32, i32) {
    %c0_i32 = arith.constant 0 : i32
    %c0_i32_0 = arith.constant 0 : i32
    %c0_i32_1 = arith.constant 0 : i32
    return %c0_i32, %c0_i32_0 : i32, i32
  }
  func.func @transform_6(%arg0: i32) -> (i32, i32) {
    %c0_i32 = arith.constant 0 : i32
    %c0_i32_0 = arith.constant 0 : i32
    %c0_i32_1 = arith.constant 0 : i32
    return %c0_i32, %c0_i32_0 : i32, i32
  }
  func.func @transform_7(%arg0: i32) -> (i32, i32) {
    %c0_i32 = arith.constant 0 : i32
    %c0_i32_0 = arith.constant 0 : i32
    %c0_i32_1 = arith.constant 0 : i32
    return %c0_i32, %c0_i32_0 : i32, i32
  }
  func.func @transform_8(%arg0: i32) -> (i32, i32) {
    %c0_i32 = arith.constant 0 : i32
    %c0_i32_0 = arith.constant 0 : i32
    %c0_i32_1 = arith.constant 0 : i32
    return %c0_i32, %c0_i32_0 : i32, i32
  }
  func.func @transform_9(%arg0: i32) -> (i32, i32) {
    %c0_i32 = arith.constant 0 : i32
    %c0_i32_0 = arith.constant 0 : i32
    %c0_i32_1 = arith.constant 0 : i32
    return %c0_i32, %c0_i32_0 : i32, i32
  }
  func.func @transform_10(%arg0: i32) -> (i32, i32) {
    %c0_i32 = arith.constant 0 : i32
    %c0_i32_0 = arith.constant 0 : i32
    %c0_i32_1 = arith.constant 0 : i32
    return %c0_i32, %c0_i32_0 : i32, i32
  }
  func.func @transform_11(%arg0: i32) -> (i32, i32) {
    %c0_i32 = arith.constant 0 : i32
    %c0_i32_0 = arith.constant 0 : i32
    return %arg0, %c0_i32 : i32, i32
  }
}

</mosaic_0001>

<llo_original>
// kernel: tpu_custom_call.1
$region0: #{tpu_custom_call.1}
  #allocation0 [shape = 'u32[]', space=smem, size = 0x4, offset = 0x4, fixed_abs, tag = 'smem constant byte address 0x4 - core index']
  #allocation1 [shape = 'u32[144,128]{1,0:T(1,128)}', space=vmem, size = 0x12000, scoped, tag = 'internal scratch']
  %s0 = inlined_call_operand.hbm [shape: f32[24,128], index: 0, kind: input, shape index: {}]
  %s1 = inlined_call_operand.hbm [shape: f32[128,384], index: 1, kind: input, shape index: {}]
  %s2 = inlined_call_operand.hbm [shape: f32[1,384], index: 2, kind: input, shape index: {}]
  %s3 = inlined_call_operand.hbm [shape: f32[384,1024], index: 3, kind: input, shape index: {}]
  %s4 = inlined_call_operand.hbm [shape: f32[1,1024], index: 4, kind: input, shape index: {}]
  %s5 = inlined_call_operand.hbm [shape: f32[1024,512], index: 5, kind: input, shape index: {}]
  %s6 = inlined_call_operand.hbm [shape: f32[1,512], index: 6, kind: input, shape index: {}]
  %s7 = inlined_call_operand.vmem [shape: f32[512,64], index: 7, kind: input, shape index: {}]
  %s8 = inlined_call_operand.hbm [shape: f32[1,64], index: 8, kind: input, shape index: {}]
  %s9 = inlined_call_operand.hbm [shape: f32[64,128], index: 9, kind: input, shape index: {}]
  %s10 = inlined_call_operand.hbm [shape: f32[1,128], index: 10, kind: input, shape index: {}]
  %s11 = inlined_call_operand.hbm [shape: f32[24,128], index: 11, kind: output, shape index: {}]
  %s12 = sld [smem:[#allocation0]]
  $region117: #{tpu_custom_call.1} parent=0
    _
  %s14 = ssub.s32 1, %s12
  %s15 = scalar_select 0, %s14, %s12
  $region1: #{tpu_custom_call.1} parent=0
    #allocation2 [shape = 'u8[8192]{0}', space=vmem, size = 0x2000, scoped, tag = 'input window, operand 0']
    #allocation3 [shape = 's32[2]{0}', space=sflag, size = 0x8, scoped, tag = 'scoped memory for tpu_custom_call.1']
    #allocation4 [shape = 's32[2]{0}', space=sflag, size = 0x8, scoped, tag = 'scoped memory for tpu_custom_call.1']
    #allocation5 [shape = 'u8[196608]{0}', space=vmem, size = 0x30000, scoped, tag = 'input window, operand 1, single buffered']
    #allocation6 [shape = 's32[1]{0}', space=sflag, size = 0x4, scoped, tag = 'scoped memory for tpu_custom_call.1']
    #allocation7 [shape = 'u8[1536]{0}', space=vmem, size = 0x800, scoped, tag = 'input window, operand 2, single buffered']
    #allocation8 [shape = 'u8[1572864]{0}', space=vmem, size = 0x180000, scoped, tag = 'input window, operand 3, single buffered']
    #allocation9 [shape = 's32[1]{0}', space=sflag, size = 0x4, scoped, tag = 'scoped memory for tpu_custom_call.1']
    #allocation10 [shape = 'u8[4096]{0}', space=vmem, size = 0x1000, scoped, tag = 'input window, operand 4, single buffered']
    #allocation11 [shape = 'u8[2097152]{0}', space=vmem, size = 0x200000, scoped, tag = 'input window, operand 5, single buffered']
    #allocation12 [shape = 's32[1]{0}', space=sflag, size = 0x4, scoped, tag = 'scoped memory for tpu_custom_call.1']
    #allocation13 [shape = 'u8[2048]{0}', space=vmem, size = 0x800, scoped, tag = 'input window, operand 6, single buffered']
    #allocation14 [shape = 'u8[512]{0}', space=vmem, size = 0x400, scoped, tag = 'input window, operand 8, single buffered']
    #allocation15 [shape = 's32[1]{0}', space=sflag, size = 0x4, scoped, tag = 'scoped memory for tpu_custom_call.1']
    #allocation16 [shape = 'u8[32768]{0}', space=vmem, size = 0x8000, scoped, tag = 'input window, operand 9, single buffered']
    #allocation17 [shape = 'u8[512]{0}', space=vmem, size = 0x400, scoped, tag = 'input window, operand 10, single buffered']
    #allocation18 [shape = 's32[1]{0}', space=sflag, size = 0x4, scoped, tag = 'scoped memory for tpu_custom_call.1']
    #allocation19 [shape = 'u8[8192]{0}', space=vmem, size = 0x2000, scoped, tag = 'output window, operand 0']
    %16 = vsyncpa [#allocation3], 0
    %s17 = scalar_lea.sflag [#allocation3], 1
    %18 = vsyncpa %s17, 0
    %19 = vsyncpa [#allocation6], 0
    %20 = vsyncpa [#allocation9], 0
    %21 = vsyncpa [#allocation12], 0
    %22 = vsyncpa [#allocation15], 0
    %23 = vsyncpa [#allocation18], 0
    %24 = vsyncpa [#allocation4], 0
    %s25 = scalar_lea.sflag [#allocation4], 1
    %26 = vsyncpa %s25, 0
    loop: start=0, step=1, limit=5
    $region2: #{tpu_custom_call.1} parent=1 // loop_pre_header
      _
    $region3: #{tpu_custom_call.1} parent=1 // loop_header
      %s28 = sphi 0, %s32
      %p29 = scmp.ge.s32.totalorder %s28, 5
      %s38 = sphi 0, %s40
      %s41 = sphi 0, %s38
      %s42 = sphi 0, %s41
      %s58 = sphi 0, %s42
      %s62 = sphi 0, %s62
      %s64 = sphi 0, %s62
      %s65 = sphi 0, %s64
      %s79 = sphi 0, %s65
      %s83 = sphi 0, %s83
      %s85 = sphi 0, %s83
      %s86 = sphi 0, %s85
      %s100 = sphi 0, %s86
      %s104 = sphi 0, %s104
      %s106 = sphi 0, %s104
      %s107 = sphi 0, %s106
      %s121 = sphi 0, %s107
      %s125 = sphi 0, %s125
      %s127 = sphi 0, %s125
      %s128 = sphi 0, %s127
      %s142 = sphi 0, %s128
      %s146 = sphi 0, %s146
      %s148 = sphi 0, %s146
      %s149 = sphi 0, %s148
      %s163 = sphi 0, %s149
      %s167 = sphi 0, %s167
      %s169 = sphi 0, %s167
      %s170 = sphi 0, %s169
      %s184 = sphi 0, %s170
      %s188 = sphi 0, %s188
      %s190 = sphi 0, %s188
      %s191 = sphi 0, %s190
      %s205 = sphi 0, %s191
      %s209 = sphi 0, %s209
      %s211 = sphi 0, %s209
      %s212 = sphi 0, %s211
      %s226 = sphi 0, %s212
      %s230 = sphi 0, %s230
      %s232 = sphi 0, %s230
      %s233 = sphi 0, %s232
      %s247 = sphi 0, %s233
      %s251 = sphi 0, %s251
      %s253 = sphi 0, %s251
      %s254 = sphi 0, %s253
      %s268 = sphi 0, %s254
      %s274 = sphi 0, %s276
      %s277 = sphi 0, %s274
      %s278 = sphi 0, %s277
      %s294 = sphi 0, %s278
    $region4: #{tpu_custom_call.1} parent=1 // loop_header_branch
      %31 = sbr.rel (%p29) target = $region8
    $region5: #{tpu_custom_call.1} parent=1 // loop_body
      %s33 = ssub.s32 %s28, 1
      %s34 = ssub.s32 %s28, 2
      %s35 = sadd.s32 %s28, 1
      %s36 = ssub.s32 %s28, %s35
      %p37 = scmp.eq.s32.totalorder %s36, 0
      %s39 = sadd.s32 %s38, 1
      %s40 = scalar_select %p37, %s38, %s39
      %p43 = pneg %p37
      %p44 = scmp.eq.s32.totalorder %s28, 2
      %p45 = por %p43, %p44
      %p46 = scmp.ne.s32.totalorder %s38, %s41
      %p47 = scmp.eq.s32.totalorder %s28, 0
      %p48 = por %p46, %p47
      %p49 = scmp.ne.s32.totalorder %s38, %s41
      %p50 = scmp.eq.s32.totalorder %s33, 2
      %p51 = por %p49, %p50
      %p52 = scmp.ne.s32.totalorder %s41, %s42
      %p53 = scmp.eq.s32.totalorder %s33, 0
      %p54 = por %p52, %p53
      %p55 = scmp.ne.s32.totalorder %s41, %s42
      %p56 = scmp.eq.s32.totalorder %s34, 2
      %p57 = por %p55, %p56
      %p59 = scmp.ne.s32.totalorder %s42, %s58
      %p60 = scmp.eq.s32.totalorder %s34, 0
      %p61 = por %p59, %p60
      %s63 = sadd.s32 %s62, 1
      %p66 = scmp.eq.s32.totalorder %s28, 2
      %p67 = scmp.ne.s32.totalorder %s62, %s64
      %p68 = scmp.eq.s32.totalorder %s28, 0
      %p69 = por %p67, %p68
      %p70 = scmp.ne.s32.totalorder %s62, %s64
      %p71 = scmp.eq.s32.totalorder %s33, 2
      %p72 = por %p70, %p71
      %p73 = scmp.ne.s32.totalorder %s64, %s65
      %p74 = scmp.eq.s32.totalorder %s33, 0
      %p75 = por %p73, %p74
      %p76 = scmp.ne.s32.totalorder %s64, %s65
      %p77 = scmp.eq.s32.totalorder %s34, 2
      %p78 = por %p76, %p77
      %p80 = scmp.ne.s32.totalorder %s65, %s79
      %p81 = scmp.eq.s32.totalorder %s34, 0
      %p82 = por %p80, %p81
      %s84 = sadd.s32 %s83, 1
      %p87 = scmp.eq.s32.totalorder %s28, 2
      %p88 = scmp.ne.s32.totalorder %s83, %s85
      %p89 = scmp.eq.s32.totalorder %s28, 0
      %p90 = por %p88, %p89
      %p91 = scmp.ne.s32.totalorder %s83, %s85
      %p92 = scmp.eq.s32.totalorder %s33, 2
      %p93 = por %p91, %p92
      %p94 = scmp.ne.s32.totalorder %s85, %s86
      %p95 = scmp.eq.s32.totalorder %s33, 0
      %p96 = por %p94, %p95
      %p97 = scmp.ne.s32.totalorder %s85, %s86
      %p98 = scmp.eq.s32.totalorder %s34, 2
      %p99 = por %p97, %p98
      %p101 = scmp.ne.s32.totalorder %s86, %s100
      %p102 = scmp.eq.s32.totalorder %s34, 0
      %p103 = por %p101, %p102
      %s105 = sadd.s32 %s104, 1
      %p108 = scmp.eq.s32.totalorder %s28, 2
      %p109 = scmp.ne.s32.totalorder %s104, %s106
      %p110 = scmp.eq.s32.totalorder %s28, 0
      %p111 = por %p109, %p110
      %p112 = scmp.ne.s32.totalorder %s104, %s106
      %p113 = scmp.eq.s32.totalorder %s33, 2
      %p114 = por %p112, %p113
      %p115 = scmp.ne.s32.totalorder %s106, %s107
      %p116 = scmp.eq.s32.totalorder %s33, 0
      %p117 = por %p115, %p116
      %p118 = scmp.ne.s32.totalorder %s106, %s107
      %p119 = scmp.eq.s32.totalorder %s34, 2
      %p120 = por %p118, %p119
      %p122 = scmp.ne.s32.totalorder %s107, %s121
      %p123 = scmp.eq.s32.totalorder %s34, 0
      %p124 = por %p122, %p123
      %s126 = sadd.s32 %s125, 1
      %p129 = scmp.eq.s32.totalorder %s28, 2
      %p130 = scmp.ne.s32.totalorder %s125, %s127
      %p131 = scmp.eq.s32.totalorder %s28, 0
      %p132 = por %p130, %p131
      %p133 = scmp.ne.s32.totalorder %s125, %s127
      %p134 = scmp.eq.s32.totalorder %s33, 2
      %p135 = por %p133, %p134
      %p136 = scmp.ne.s32.totalorder %s127, %s128
      %p137 = scmp.eq.s32.totalorder %s33, 0
      %p138 = por %p136, %p137
      %p139 = scmp.ne.s32.totalorder %s127, %s128
      %p140 = scmp.eq.s32.totalorder %s34, 2
      %p141 = por %p139, %p140
      %p143 = scmp.ne.s32.totalorder %s128, %s142
      %p144 = scmp.eq.s32.totalorder %s34, 0
      %p145 = por %p143, %p144
      %s147 = sadd.s32 %s146, 1
      %p150 = scmp.eq.s32.totalorder %s28, 2
      %p151 = scmp.ne.s32.totalorder %s146, %s148
      %p152 = scmp.eq.s32.totalorder %s28, 0
      %p153 = por %p151, %p152
      %p154 = scmp.ne.s32.totalorder %s146, %s148
      %p155 = scmp.eq.s32.totalorder %s33, 2
      %p156 = por %p154, %p155
      %p157 = scmp.ne.s32.totalorder %s148, %s149
      %p158 = scmp.eq.s32.totalorder %s33, 0
      %p159 = por %p157, %p158
      %p160 = scmp.ne.s32.totalorder %s148, %s149
      %p161 = scmp.eq.s32.totalorder %s34, 2
      %p162 = por %p160, %p161
      %p164 = scmp.ne.s32.totalorder %s149, %s163
      %p165 = scmp.eq.s32.totalorder %s34, 0
      %p166 = por %p164, %p165
      %s168 = sadd.s32 %s167, 1
      %p171 = scmp.eq.s32.totalorder %s28, 2
      %p172 = scmp.ne.s32.totalorder %s167, %s169
      %p173 = scmp.eq.s32.totalorder %s28, 0
      %p174 = por %p172, %p173
      %p175 = scmp.ne.s32.totalorder %s167, %s169
      %p176 = scmp.eq.s32.totalorder %s33, 2
      %p177 = por %p175, %p176
      %p178 = scmp.ne.s32.totalorder %s169, %s170
      %p179 = scmp.eq.s32.totalorder %s33, 0
      %p180 = por %p178, %p179
      %p181 = scmp.ne.s32.totalorder %s169, %s170
      %p182 = scmp.eq.s32.totalorder %s34, 2
      %p183 = por %p181, %p182
      %p185 = scmp.ne.s32.totalorder %s170, %s184
      %p186 = scmp.eq.s32.totalorder %s34, 0
      %p187 = por %p185, %p186
      %s189 = sadd.s32 %s188, 1
      %p192 = scmp.eq.s32.totalorder %s28, 2
      %p193 = scmp.ne.s32.totalorder %s188, %s190
      %p194 = scmp.eq.s32.totalorder %s28, 0
      %p195 = por %p193, %p194
      %p196 = scmp.ne.s32.totalorder %s188, %s190
      %p197 = scmp.eq.s32.totalorder %s33, 2
      %p198 = por %p196, %p197
      %p199 = scmp.ne.s32.totalorder %s190, %s191
      %p200 = scmp.eq.s32.totalorder %s33, 0
      %p201 = por %p199, %p200
      %p202 = scmp.ne.s32.totalorder %s190, %s191
      %p203 = scmp.eq.s32.totalorder %s34, 2
      %p204 = por %p202, %p203
      %p206 = scmp.ne.s32.totalorder %s191, %s205
      %p207 = scmp.eq.s32.totalorder %s34, 0
      %p208 = por %p206, %p207
      %s210 = sadd.s32 %s209, 1
      %p213 = scmp.eq.s32.totalorder %s28, 2
      %p214 = scmp.ne.s32.totalorder %s209, %s211
      %p215 = scmp.eq.s32.totalorder %s28, 0
      %p216 = por %p214, %p215
      %p217 = scmp.ne.s32.totalorder %s209, %s211
      %p218 = scmp.eq.s32.totalorder %s33, 2
      %p219 = por %p217, %p218
      %p220 = scmp.ne.s32.totalorder %s211, %s212
      %p221 = scmp.eq.s32.totalorder %s33, 0
      %p222 = por %p220, %p221
      %p223 = scmp.ne.s32.totalorder %s211, %s212
      %p224 = scmp.eq.s32.totalorder %s34, 2
      %p225 = por %p223, %p224
      %p227 = scmp.ne.s32.totalorder %s212, %s226
      %p228 = scmp.eq.s32.totalorder %s34, 0
      %p229 = por %p227, %p228
      %s231 = sadd.s32 %s230, 1
      %p234 = scmp.eq.s32.totalorder %s28, 2
      %p235 = scmp.ne.s32.totalorder %s230, %s232
      %p236 = scmp.eq.s32.totalorder %s28, 0
      %p237 = por %p235, %p236
      %p238 = scmp.ne.s32.totalorder %s230, %s232
      %p239 = scmp.eq.s32.totalorder %s33, 2
      %p240 = por %p238, %p239
      %p241 = scmp.ne.s32.totalorder %s232, %s233
      %p242 = scmp.eq.s32.totalorder %s33, 0
      %p243 = por %p241, %p242
      %p244 = scmp.ne.s32.totalorder %s232, %s233
      %p245 = scmp.eq.s32.totalorder %s34, 2
      %p246 = por %p244, %p245
      %p248 = scmp.ne.s32.totalorder %s233, %s247
      %p249 = scmp.eq.s32.totalorder %s34, 0
      %p250 = por %p248, %p249
      %s252 = sadd.s32 %s251, 1
      %p255 = scmp.eq.s32.totalorder %s28, 2
      %p256 = scmp.ne.s32.totalorder %s251, %s253
      %p257 = scmp.eq.s32.totalorder %s28, 0
      %p258 = por %p256, %p257
      %p259 = scmp.ne.s32.totalorder %s251, %s253
      %p260 = scmp.eq.s32.totalorder %s33, 2
      %p261 = por %p259, %p260
      %p262 = scmp.ne.s32.totalorder %s253, %s254
      %p263 = scmp.eq.s32.totalorder %s33, 0
      %p264 = por %p262, %p263
      %p265 = scmp.ne.s32.totalorder %s253, %s254
      %p266 = scmp.eq.s32.totalorder %s34, 2
      %p267 = por %p265, %p266
      %p269 = scmp.ne.s32.totalorder %s254, %s268
      %p270 = scmp.eq.s32.totalorder %s34, 0
      %p271 = por %p269, %p270
      %s272 = ssub.s32 %s28, %s35
      %p273 = scmp.eq.s32.totalorder %s272, 0
      %s275 = sadd.s32 %s274, 1
      %s276 = scalar_select %p273, %s274, %s275
      %p279 = pneg %p273
      %p280 = scmp.eq.s32.totalorder %s28, 2
      %p281 = por %p279, %p280
      %p282 = scmp.ne.s32.totalorder %s274, %s277
      %p283 = scmp.eq.s32.totalorder %s28, 0
      %p284 = por %p282, %p283
      %p285 = scmp.ne.s32.totalorder %s274, %s277
      %p286 = scmp.eq.s32.totalorder %s33, 2
      %p287 = por %p285, %p286
      %p288 = scmp.ne.s32.totalorder %s277, %s278
      %p289 = scmp.eq.s32.totalorder %s33, 0
      %p290 = por %p288, %p289
      %p291 = scmp.ne.s32.totalorder %s277, %s278
      %p292 = scmp.eq.s32.totalorder %s34, 2
      %p293 = por %p291, %p292
      %p295 = scmp.ne.s32.totalorder %s278, %s294
      %p296 = scmp.eq.s32.totalorder %s34, 0
      %p297 = por %p295, %p296
      %p298 = scmp.le.s32.totalorder 1, %s28
      %p299 = scmp.lt.s32.totalorder %s28, 4
      %p300 = pnand %p298, %p299
      %p301 = pneg %p300
      // Predicated region
      $region9: #{tpu_custom_call.1} parent=5 // pred_check
        _
      $region10: #{tpu_custom_call.1} parent=5 // pred_check_branch
        %303 = sbr.rel (%p300) target = $region12
      $region11: #{tpu_custom_call.1} parent=5 // pred_region
        %s304 = ssub.s32 %s28, 1
        // Predicated region
        $region13: #{tpu_custom_call.1} parent=11 // pred_check
          %p305 = pneg %p75
        $region14: #{tpu_custom_call.1} parent=11 // pred_check_branch
          %307 = sbr.rel (%p305) target = $region16
        $region15: #{tpu_custom_call.1} parent=11 // pred_region
          %s309 = ssub.s32 6144, 6144
          %310 = vsyncadd [#allocation6], %s309
          %s311 = sshll.u32 [#allocation5], 4
          %s312 = int_to_ptr.vmem [resolvable:$true] %s311
          %317 = dma.hbm_to_vmem [thread:$0]  %s1, 6144, %s312, [#allocation6], 384, 384, 24
        $region16: #{tpu_custom_call.1} parent=11 // pred_fallthru
          _
        // Predicated region
        $region17: #{tpu_custom_call.1} parent=11 // pred_check
          %p318 = pneg %p96
        $region18: #{tpu_custom_call.1} parent=11 // pred_check_branch
          %320 = sbr.rel (%p318) target = $region20
        $region19: #{tpu_custom_call.1} parent=11 // pred_region
          %s322 = ssub.s32 48, 48
          %323 = vsyncadd [#allocation6], %s322
          %s325 = sshll.u32 [#allocation7], 4
          %s326 = int_to_ptr.vmem [resolvable:$true] %s325
          %328 = dma.hbm_to_vmem [thread:$0]  %s2, 48, %s326, [#allocation6]
        $region20: #{tpu_custom_call.1} parent=11 // pred_fallthru
          _
        // Predicated region
        $region21: #{tpu_custom_call.1} parent=11 // pred_check
          %p329 = pneg %p117
        $region22: #{tpu_custom_call.1} parent=11 // pred_check_branch
          %331 = sbr.rel (%p329) target = $region24
        $region23: #{tpu_custom_call.1} parent=11 // pred_region
          %s333 = ssub.s32 49152, 49152
          %334 = vsyncadd [#allocation9], %s333
          %s335 = sshll.u32 [#allocation8], 4
          %s336 = int_to_ptr.vmem [resolvable:$true] %s335
          %341 = dma.hbm_to_vmem [thread:$0]  %s3, 49152, %s336, [#allocation9], 1024, 1024, 64
        $region24: #{tpu_custom_call.1} parent=11 // pred_fallthru
          _
        // Predicated region
        $region25: #{tpu_custom_call.1} parent=11 // pred_check
          %p342 = pneg %p138
        $region26: #{tpu_custom_call.1} parent=11 // pred_check_branch
          %344 = sbr.rel (%p342) target = $region28
        $region27: #{tpu_custom_call.1} parent=11 // pred_region
          %s346 = ssub.s32 128, 128
          %347 = vsyncadd [#allocation9], %s346
          %s349 = sshll.u32 [#allocation10], 4
          %s350 = int_to_ptr.vmem [resolvable:$true] %s349
          %352 = dma.hbm_to_vmem [thread:$0]  %s4, 128, %s350, [#allocation9]
        $region28: #{tpu_custom_call.1} parent=11 // pred_fallthru
          _
        // Predicated region
        $region29: #{tpu_custom_call.1} parent=11 // pred_check
          %p353 = pneg %p159
        $region30: #{tpu_custom_call.1} parent=11 // pred_check_branch
          %355 = sbr.rel (%p353) target = $region32
        $region31: #{tpu_custom_call.1} parent=11 // pred_region
          %s357 = ssub.s32 65536, 65536
          %358 = vsyncadd [#allocation12], %s357
          %s359 = sshll.u32 [#allocation11], 4
          %s360 = int_to_ptr.vmem [resolvable:$true] %s359
          %365 = dma.hbm_to_vmem [thread:$0]  %s5, 65536, %s360, [#allocation12], 512, 512, 32
        $region32: #{tpu_custom_call.1} parent=11 // pred_fallthru
          _
        // Predicated region
        $region33: #{tpu_custom_call.1} parent=11 // pred_check
          %p366 = pneg %p180
        $region34: #{tpu_custom_call.1} parent=11 // pred_check_branch
          %368 = sbr.rel (%p366) target = $region36
        $region35: #{tpu_custom_call.1} parent=11 // pred_region
          %s370 = ssub.s32 64, 64
          %371 = vsyncadd [#allocation12], %s370
          %s373 = sshll.u32 [#allocation13], 4
          %s374 = int_to_ptr.vmem [resolvable:$true] %s373
          %376 = dma.hbm_to_vmem [thread:$0]  %s6, 64, %s374, [#allocation12]
        $region36: #{tpu_custom_call.1} parent=11 // pred_fallthru
          _
        // Predicated region
        $region37: #{tpu_custom_call.1} parent=11 // pred_check
          %p377 = pneg %p201
        $region38: #{tpu_custom_call.1} parent=11 // pred_check_branch
          %379 = sbr.rel (%p377) target = $region40
        $region39: #{tpu_custom_call.1} parent=11 // pred_region
          _
        $region40: #{tpu_custom_call.1} parent=11 // pred_fallthru
          _
        // Predicated region
        $region41: #{tpu_custom_call.1} parent=11 // pred_check
          %p380 = pneg %p222
        $region42: #{tpu_custom_call.1} parent=11 // pred_check_branch
          %382 = sbr.rel (%p380) target = $region44
        $region43: #{tpu_custom_call.1} parent=11 // pred_region
          %s384 = ssub.s32 16, 16
          %385 = vsyncadd [#allocation15], %s384
          %s387 = sshll.u32 [#allocation14], 4
          %s388 = int_to_ptr.vmem [resolvable:$true] %s387
          %390 = dma.hbm_to_vmem [thread:$0]  %s8, 16, %s388, [#allocation15]
        $region44: #{tpu_custom_call.1} parent=11 // pred_fallthru
          _
        // Predicated region
        $region45: #{tpu_custom_call.1} parent=11 // pred_check
          %p391 = pneg %p243
        $region46: #{tpu_custom_call.1} parent=11 // pred_check_branch
          %393 = sbr.rel (%p391) target = $region48
        $region47: #{tpu_custom_call.1} parent=11 // pred_region
          %s395 = ssub.s32 1024, 1024
          %396 = vsyncadd [#allocation15], %s395
          %s397 = sshll.u32 [#allocation16], 4
          %s398 = int_to_ptr.vmem [resolvable:$true] %s397
          %403 = dma.hbm_to_vmem [thread:$0]  %s9, 1024, %s398, [#allocation15], 128, 128, 8
        $region48: #{tpu_custom_call.1} parent=11 // pred_fallthru
          _
        // Predicated region
        $region49: #{tpu_custom_call.1} parent=11 // pred_check
          %p404 = pneg %p264
        $region50: #{tpu_custom_call.1} parent=11 // pred_check_branch
          %406 = sbr.rel (%p404) target = $region52
        $region51: #{tpu_custom_call.1} parent=11 // pred_region
          %s408 = ssub.s32 16, 16
          %409 = vsyncadd [#allocation18], %s408
          %s411 = sshll.u32 [#allocation17], 4
          %s412 = int_to_ptr.vmem [resolvable:$true] %s411
          %414 = dma.hbm_to_vmem [thread:$0]  %s10, 16, %s412, [#allocation18]
        $region52: #{tpu_custom_call.1} parent=11 // pred_fallthru
          _
      $region12: #{tpu_custom_call.1} parent=5 // pred_fallthru
        _
      %p415 = scmp.lt.s32.totalorder %s28, 3
      // Predicated region
      $region53: #{tpu_custom_call.1} parent=5 // pred_check
        %p416 = pneg %p415
      $region54: #{tpu_custom_call.1} parent=5 // pred_check_branch
        %418 = sbr.rel (%p416) target = $region56
      $region55: #{tpu_custom_call.1} parent=5 // pred_region
        // Predicated region
        $region57: #{tpu_custom_call.1} parent=55 // pred_check
          %p419 = pneg %p48
        $region58: #{tpu_custom_call.1} parent=55 // pred_check_branch
          %421 = sbr.rel (%p419) target = $region60
        $region59: #{tpu_custom_call.1} parent=55 // pred_region
          %s422 = sand.u32 %s38, 1
          %s423 = scalar_lea.sflag [#allocation3], %s422
          %s424 = sand.u32 %s38, 1
          %s425 = smul.addr %s424, 8
          %s426 = scalar_lea.vmem [#allocation2], %s425
          %s428 = ssub.s32 128, 128
          %429 = vsyncadd %s423, %s428
          %s430 = smul.addr %s28, 128
          %s431 = scalar_lea.hbm %s0, %s430
          %s433 = sshll.u32 %s426, 4
          %s434 = int_to_ptr.vmem [resolvable:$true] %s433
          %436 = dma.hbm_to_vmem [thread:$0]  %s431, 128, %s434, %s423
        $region60: #{tpu_custom_call.1} parent=55 // pred_fallthru
          _
      $region56: #{tpu_custom_call.1} parent=5 // pred_fallthru
        _
      %p437 = scmp.le.s32.totalorder 1, %s28
      %p438 = scmp.lt.s32.totalorder %s28, 4
      %p439 = pnand %p437, %p438
      %p440 = pneg %p439
      // Predicated region
      $region61: #{tpu_custom_call.1} parent=5 // pred_check
        _
      $region62: #{tpu_custom_call.1} parent=5 // pred_check_branch
        %442 = sbr.rel (%p439) target = $region64
      $region63: #{tpu_custom_call.1} parent=5 // pred_region
        %s443 = ssub.s32 %s28, 1
        %s444 = sand.u32 %s41, 1
        %s445 = scalar_lea.sflag [#allocation3], %s444
        %s446 = sand.u32 %s41, 1
        %s447 = smul.addr %s446, 8
        %s448 = scalar_lea.vmem [#allocation2], %s447
        // Predicated region
        $region65: #{tpu_custom_call.1} parent=63 // pred_check
          %p449 = pneg %p54
        $region66: #{tpu_custom_call.1} parent=63 // pred_check_branch
          %451 = sbr.rel (%p449) target = $region68
        $region67: #{tpu_custom_call.1} parent=63 // pred_region
          %452 = dma.done %s445, 128
        $region68: #{tpu_custom_call.1} parent=63 // pred_fallthru
          _
        // Predicated region
        $region69: #{tpu_custom_call.1} parent=63 // pred_check
          %p453 = pneg %p75
        $region70: #{tpu_custom_call.1} parent=63 // pred_check_branch
          %455 = sbr.rel (%p453) target = $region72
        $region71: #{tpu_custom_call.1} parent=63 // pred_region
          %456 = dma.done [#allocation6], 6144
        $region72: #{tpu_custom_call.1} parent=63 // pred_fallthru
          _
        // Predicated region
        $region73: #{tpu_custom_call.1} parent=63 // pred_check
          %p457 = pneg %p96
        $region74: #{tpu_custom_call.1} parent=63 // pred_check_branch
          %459 = sbr.rel (%p457) target = $region76
        $region75: #{tpu_custom_call.1} parent=63 // pred_region
          %460 = dma.done [#allocation6], 48
        $region76: #{tpu_custom_call.1} parent=63 // pred_fallthru
          _
        // Predicated region
        $region77: #{tpu_custom_call.1} parent=63 // pred_check
          %p461 = pneg %p117
        $region78: #{tpu_custom_call.1} parent=63 // pred_check_branch
          %463 = sbr.rel (%p461) target = $region80
        $region79: #{tpu_custom_call.1} parent=63 // pred_region
          %464 = dma.done [#allocation9], 49152
        $region80: #{tpu_custom_call.1} parent=63 // pred_fallthru
          _
        // Predicated region
        $region81: #{tpu_custom_call.1} parent=63 // pred_check
          %p465 = pneg %p138
        $region82: #{tpu_custom_call.1} parent=63 // pred_check_branch
          %467 = sbr.rel (%p465) target = $region84
        $region83: #{tpu_custom_call.1} parent=63 // pred_region
          %468 = dma.done [#allocation9], 128
        $region84: #{tpu_custom_call.1} parent=63 // pred_fallthru
          _
        // Predicated region
        $region85: #{tpu_custom_call.1} parent=63 // pred_check
          %p469 = pneg %p159
        $region86: #{tpu_custom_call.1} parent=63 // pred_check_branch
          %471 = sbr.rel (%p469) target = $region88
        $region87: #{tpu_custom_call.1} parent=63 // pred_region
          %472 = dma.done [#allocation12], 65536
        $region88: #{tpu_custom_call.1} parent=63 // pred_fallthru
          _
        // Predicated region
        $region89: #{tpu_custom_call.1} parent=63 // pred_check
          %p473 = pneg %p180
        $region90: #{tpu_custom_call.1} parent=63 // pred_check_branch
          %475 = sbr.rel (%p473) target = $region92
        $region91: #{tpu_custom_call.1} parent=63 // pred_region
          %476 = dma.done [#allocation12], 64
        $region92: #{tpu_custom_call.1} parent=63 // pred_fallthru
          _
        // Predicated region
        $region93: #{tpu_custom_call.1} parent=63 // pred_check
          %p477 = pneg %p222
        $region94: #{tpu_custom_call.1} parent=63 // pred_check_branch
          %479 = sbr.rel (%p477) target = $region96
        $region95: #{tpu_custom_call.1} parent=63 // pred_region
          %480 = dma.done [#allocation15], 16
        $region96: #{tpu_custom_call.1} parent=63 // pred_fallthru
          _
        // Predicated region
        $region97: #{tpu_custom_call.1} parent=63 // pred_check
          %p481 = pneg %p243
        $region98: #{tpu_custom_call.1} parent=63 // pred_check_branch
          %483 = sbr.rel (%p481) target = $region100
        $region99: #{tpu_custom_call.1} parent=63 // pred_region
          %484 = dma.done [#allocation15], 1024
        $region100: #{tpu_custom_call.1} parent=63 // pred_fallthru
          _
        // Predicated region
        $region101: #{tpu_custom_call.1} parent=63 // pred_check
          %p485 = pneg %p264
        $region102: #{tpu_custom_call.1} parent=63 // pred_check_branch
          %487 = sbr.rel (%p485) target = $region104
        $region103: #{tpu_custom_call.1} parent=63 // pred_region
          %488 = dma.done [#allocation18], 16
        $region104: #{tpu_custom_call.1} parent=63 // pred_fallthru
          _
        %s489 = sand.u32 %s41, 1
        %s490 = scalar_lea.sflag [#allocation3], %s489
        %s491 = sand.u32 %s41, 1
        %s492 = smul.addr %s491, 8
        %s493 = scalar_lea.vmem [#allocation2], %s492
        %p494 = pneg %p54
        %p495 = pneg %p51
        %p496 = pneg %p75
        %p497 = pneg %p72
        %p498 = pneg %p96
        %p499 = pneg %p93
        %p500 = pneg %p117
        %p501 = pneg %p114
        %p502 = pneg %p138
        %p503 = pneg %p135
        %p504 = pneg %p159
        %p505 = pneg %p156
        %p506 = pneg %p180
        %p507 = pneg %p177
        %p508 = pneg %p201
        %p509 = pneg %p198
        %p510 = pneg %p222
        %p511 = pneg %p219
        %p512 = pneg %p243
        %p513 = pneg %p240
        %p514 = pneg %p264
        %p515 = pneg %p261
        %p516 = pneg %p290
        %p517 = pneg %p287
        %s518 = sand.u32 %s277, 1
        %s519 = scalar_lea.sflag [#allocation4], %s518
        %s520 = sand.u32 %s277, 1
        %s521 = smul.addr %s520, 8
        %s522 = scalar_lea.vmem [#allocation19], %s521
        %v523 = vld [vmem:[%s448] sm:$0xff]
        %v524 = vld [vmem:[#allocation5] sm:$0xff]
        %v525 = vld [vmem:[#allocation5 + $0x8] sm:$0xff]
        %v526 = vld [vmem:[#allocation5 + $0x10] sm:$0xff]
        %v527 = vld [vmem:[#allocation5 + $0x18] sm:$0xff]
        %v528 = vld [vmem:[#allocation5 + $0x20] sm:$0xff]
        %v529 = vld [vmem:[#allocation5 + $0x28] sm:$0xff]
        %v530 = vld [vmem:[#allocation5 + $0x30] sm:$0xff]
        %v531 = vld [vmem:[#allocation5 + $0x38] sm:$0xff]
        %v532 = vld [vmem:[#allocation5 + $0x40] sm:$0xff]
        %v533 = vld [vmem:[#allocation5 + $0x48] sm:$0xff]
        %v534 = vld [vmem:[#allocation5 + $0x50] sm:$0xff]
        %v535 = vld [vmem:[#allocation5 + $0x58] sm:$0xff]
        %v536 = vld [vmem:[#allocation5 + $0x60] sm:$0xff]
        %v537 = vld [vmem:[#allocation5 + $0x68] sm:$0xff]
        %v538 = vld [vmem:[#allocation5 + $0x70] sm:$0xff]
        %v539 = vld [vmem:[#allocation5 + $0x78] sm:$0xff]
        %v540 = vld [vmem:[#allocation5 + $0x80] sm:$0xff]
        %v541 = vld [vmem:[#allocation5 + $0x88] sm:$0xff]
        %v542 = vld [vmem:[#allocation5 + $0x90] sm:$0xff]
        %v543 = vld [vmem:[#allocation5 + $0x98] sm:$0xff]
        %v544 = vld [vmem:[#allocation5 + $0xa0] sm:$0xff]
        %v545 = vld [vmem:[#allocation5 + $0xa8] sm:$0xff]
        %v546 = vld [vmem:[#allocation5 + $0xb0] sm:$0xff]
        %v547 = vld [vmem:[#allocation5 + $0xb8] sm:$0xff]
        %v548 = vld [vmem:[#allocation5 + $0xc0] sm:$0xff]
        %v549 = vld [vmem:[#allocation5 + $0xc8] sm:$0xff]
        %v550 = vld [vmem:[#allocation5 + $0xd0] sm:$0xff]
        %v551 = vld [vmem:[#allocation5 + $0xd8] sm:$0xff]
        %v552 = vld [vmem:[#allocation5 + $0xe0] sm:$0xff]
        %v553 = vld [vmem:[#allocation5 + $0xe8] sm:$0xff]
        %v554 = vld [vmem:[#allocation5 + $0xf0] sm:$0xff]
        %v555 = vld [vmem:[#allocation5 + $0xf8] sm:$0xff]
        %v556 = vld [vmem:[#allocation5 + $0x100] sm:$0xff]
        %v557 = vld [vmem:[#allocation5 + $0x108] sm:$0xff]
        %v558 = vld [vmem:[#allocation5 + $0x110] sm:$0xff]
        %v559 = vld [vmem:[#allocation5 + $0x118] sm:$0xff]
        %v560 = vld [vmem:[#allocation5 + $0x120] sm:$0xff]
        %v561 = vld [vmem:[#allocation5 + $0x128] sm:$0xff]
        %v562 = vld [vmem:[#allocation5 + $0x130] sm:$0xff]
        %v563 = vld [vmem:[#allocation5 + $0x138] sm:$0xff]
        %v564 = vld [vmem:[#allocation5 + $0x140] sm:$0xff]
        %v565 = vld [vmem:[#allocation5 + $0x148] sm:$0xff]
        %v566 = vld [vmem:[#allocation5 + $0x150] sm:$0xff]
        %v567 = vld [vmem:[#allocation5 + $0x158] sm:$0xff]
        %v568 = vld [vmem:[#allocation5 + $0x160] sm:$0xff]
        %v569 = vld [vmem:[#allocation5 + $0x168] sm:$0xff]
        %v570 = vld [vmem:[#allocation5 + $0x170] sm:$0xff]
        %v571 = vld [vmem:[#allocation5 + $0x178] sm:$0xff]
        %v572 = vld [vmem:[#allocation7] sm:$0x7]
        %v574 = vlaneseq
        %v575 = vshrl.u32 %v574, 7
        %v576 = vsub.s32 0, %v575
        %v577 = vrot.slane %v572, %v576
        %v578 = vlaneseq
        %v579 = vshrl.u32 %v578, 7
        %v580 = vsub.s32 1, %v579
        %v581 = vrot.slane %v572, %v580
        %v582 = vlaneseq
        %v583 = vshrl.u32 %v582, 7
        %v584 = vsub.s32 2, %v583
        %v585 = vrot.slane %v572, %v584
        %589 = vmatprep.subr.mxu0 %v525
        %590 = vmatpush1.msra.mxu0 %v524
        %591 = vmatprep.subr.mxu0 %v528
        %592 = vmatpush1.msra.mxu0 %v527
        %593 = vmatprep.subr.mxu0 %v531
        %594 = vmatpush1.msra.mxu0 %v530
        %595 = vmatprep.subr.mxu0 %v534
        %596 = vmatpush1.msra.mxu0 %v533
        %597 = vmatprep.subr.mxu0 %v537
        %598 = vmatpush1.msra.mxu0 %v536
        %599 = vmatprep.subr.mxu0 %v540
        %600 = vmatpush1.msra.mxu0 %v539
        %601 = vmatprep.subr.mxu0 %v543
        %602 = vmatpush1.msra.mxu0 %v542
        %603 = vmatprep.subr.mxu0 %v546
        %604 = vmatpush1.msra.mxu0 %v545
        %605 = vmatprep.subr.mxu0 %v549
        %606 = vmatpush1.msra.mxu0 %v548
        %607 = vmatprep.subr.mxu0 %v552
        %608 = vmatpush1.msra.mxu0 %v551
        %609 = vmatprep.subr.mxu0 %v555
        %610 = vmatpush1.msra.mxu0 %v554
        %611 = vmatprep.subr.mxu0 %v558
        %612 = vmatpush1.msra.mxu0 %v557
        %613 = vmatprep.subr.mxu0 %v561
        %614 = vmatpush1.msra.mxu0 %v560
        %615 = vmatprep.subr.mxu0 %v564
        %616 = vmatpush1.msra.mxu0 %v563
        %617 = vmatprep.subr.mxu0 %v567
        %618 = vmatpush1.msra.mxu0 %v566
        %619 = vmatprep.subr.mxu0 %v570
        %620 = vmatpush1.msra.mxu0 %v569
        %621 = vmatprep.subr.mxu0 0.0
        %622 = vmatpush1.msra.mxu0 0.0
        %623 = vmatprep.subr.mxu0 0.0
        %624 = vmatpush1.msra.mxu0 0.0
        %625 = vmatprep.subr.mxu0 0.0
        %626 = vmatpush1.msra.mxu0 0.0
        %627 = vmatprep.subr.mxu0 0.0
        %628 = vmatpush1.msra.mxu0 0.0
        %629 = vmatprep.subr.mxu0 0.0
        %630 = vmatpush1.msra.mxu0 0.0
        %631 = vmatprep.subr.mxu0 0.0
        %632 = vmatpush1.msra.mxu0 0.0
        %633 = vmatprep.subr.mxu0 0.0
        %634 = vmatpush1.msra.mxu0 0.0
        %635 = vmatprep.subr.mxu0 0.0
        %636 = vmatpush1.msra.mxu0 0.0
        %637 = vmatprep.subr.mxu0 0.0
        %638 = vmatpush1.msra.mxu0 0.0
        %639 = vmatprep.subr.mxu0 0.0
        %640 = vmatpush1.msra.mxu0 0.0
        %641 = vmatprep.subr.mxu0 0.0
        %642 = vmatpush1.msra.mxu0 0.0
        %643 = vmatprep.subr.mxu0 0.0
        %644 = vmatpush1.msra.mxu0 0.0
        %645 = vmatprep.subr.mxu0 0.0
        %646 = vmatpush1.msra.mxu0 0.0
        %647 = vmatprep.subr.mxu0 0.0
        %648 = vmatpush1.msra.mxu0 0.0
        %649 = vmatprep.subr.mxu0 0.0
        %650 = vmatpush1.msra.mxu0 0.0
        %651 = vmatprep.subr.mxu0 0.0
        %652 = vmatpush1.msra.mxu0 0.0
        %653 = vmatprep.mubr.f32.mxu0 0.0
        %654 = vmatmul.mubr.f32.gmra.mrb[0].mxu0 %v523
        %v655 = vpop.f32.mrb[0].mxu0
        %v656 = vadd.f32 %v577, %v655
        %v657 = vpop.f32.mrb[0].mxu0
        %v658 = vadd.f32 %v581, %v657
        %659 = vdwg.mxu0
        %660 = vmatprep.subr.mxu0 0.0
        %661 = vmatpush1.msra.mxu0 %v526
        %662 = vmatprep.subr.mxu0 0.0
        %663 = vmatpush1.msra.mxu0 %v529
        %664 = vmatprep.subr.mxu0 0.0
        %665 = vmatpush1.msra.mxu0 %v532
        %666 = vmatprep.subr.mxu0 0.0
        %667 = vmatpush1.msra.mxu0 %v535
        %668 = vmatprep.subr.mxu0 0.0
        %669 = vmatpush1.msra.mxu0 %v538
        %670 = vmatprep.subr.mxu0 0.0
        %671 = vmatpush1.msra.mxu0 %v541
        %672 = vmatprep.subr.mxu0 0.0
        %673 = vmatpush1.msra.mxu0 %v544
        %674 = vmatprep.subr.mxu0 0.0
        %675 = vmatpush1.msra.mxu0 %v547
        %676 = vmatprep.subr.mxu0 0.0
        %677 = vmatpush1.msra.mxu0 %v550
        %678 = vmatprep.subr.mxu0 0.0
        %679 = vmatpush1.msra.mxu0 %v553
        %680 = vmatprep.subr.mxu0 0.0
        %681 = vmatpush1.msra.mxu0 %v556
        %682 = vmatprep.subr.mxu0 0.0
        %683 = vmatpush1.msra.mxu0 %v559
        %684 = vmatprep.subr.mxu0 0.0
        %685 = vmatpush1.msra.mxu0 %v562
        %686 = vmatprep.subr.mxu0 0.0
        %687 = vmatpush1.msra.mxu0 %v565
        %688 = vmatprep.subr.mxu0 0.0
        %689 = vmatpush1.msra.mxu0 %v568
        %690 = vmatprep.subr.mxu0 0.0
        %691 = vmatpush1.msra.mxu0 %v571
        %692 = vmatprep.subr.mxu0 0.0
        %693 = vmatpush1.msra.mxu0 0.0
        %694 = vmatprep.subr.mxu0 0.0
        %695 = vmatpush1.msra.mxu0 0.0
        %696 = vmatprep.subr.mxu0 0.0
        %697 = vmatpush1.msra.mxu0 0.0
        %698 = vmatprep.subr.mxu0 0.0
        %699 = vmatpush1.msra.mxu0 0.0
        %700 = vmatprep.subr.mxu0 0.0
        %701 = vmatpush1.msra.mxu0 0.0
        %702 = vmatprep.subr.mxu0 0.0
        %703 = vmatpush1.msra.mxu0 0.0
        %704 = vmatprep.subr.mxu0 0.0
        %705 = vmatpush1.msra.mxu0 0.0
        %706 = vmatprep.subr.mxu0 0.0
        %707 = vmatpush1.msra.mxu0 0.0
        %708 = vmatprep.subr.mxu0 0.0
        %709 = vmatpush1.msra.mxu0 0.0
        %710 = vmatprep.subr.mxu0 0.0
        %711 = vmatpush1.msra.mxu0 0.0
        %712 = vmatprep.subr.mxu0 0.0
        %713 = vmatpush1.msra.mxu0 0.0
        %714 = vmatprep.subr.mxu0 0.0
        %715 = vmatpush1.msra.mxu0 0.0
        %716 = vmatprep.subr.mxu0 0.0
        %717 = vmatpush1.msra.mxu0 0.0
        %718 = vmatprep.subr.mxu0 0.0
        %719 = vmatpush1.msra.mxu0 0.0
        %720 = vmatprep.subr.mxu0 0.0
        %721 = vmatpush1.msra.mxu0 0.0
        %722 = vmatprep.subr.mxu0 0.0
        %723 = vmatpush1.msra.mxu0 0.0
        %724 = vmatprep.mubr.f32.mxu0 0.0
        %725 = vmatmul.mubr.f32.gmra.mrb[0].mxu0 %v523
        %v726 = vpop.f32.mrb[0].mxu0
        %v727 = vadd.f32 %v585, %v726
        %v728 = vpop.f32.mrb[0].mxu0
        %729 = vdwg.mxu0
        %v730 = vmul.f32 %v656, 0.5
        %v731 = vmul.f32 %v658, 0.5
        %v732 = vmul.f32 %v727, 0.5
        %v733 = vtanh.pop %v730
        %v734 = vtanh.pop %v731
        %v735 = vtanh.pop %v732
        %v736 = vmul.f32 %v733, 0.5
        %v737 = vmul.f32 %v734, 0.5
        %v738 = vmul.f32 %v735, 0.5
        %v739 = vadd.f32 %v736, 0.5
        %v740 = vadd.f32 %v737, 0.5
        %v741 = vadd.f32 %v738, 0.5
        %v742 = vld [vmem:[#allocation8] sm:$0xff]
        %v743 = vld [vmem:[#allocation8 + $0x8] sm:$0xff]
        %v744 = vld [vmem:[#allocation8 + $0x10] sm:$0xff]
        %v745 = vld [vmem:[#allocation8 + $0x18] sm:$0xff]
        %v746 = vld [vmem:[#allocation8 + $0x20] sm:$0xff]
        %v747 = vld [vmem:[#allocation8 + $0x28] sm:$0xff]
        %v748 = vld [vmem:[#allocation8 + $0x30] sm:$0xff]
        %v749 = vld [vmem:[#allocation8 + $0x38] sm:$0xff]
        %v750 = vld [vmem:[#allocation8 + $0x40] sm:$0xff]
        %v751 = vld [vmem:[#allocation8 + $0x48] sm:$0xff]
        %v752 = vld [vmem:[#allocation8 + $0x50] sm:$0xff]
        %v753 = vld [vmem:[#allocation8 + $0x58] sm:$0xff]
        %v754 = vld [vmem:[#allocation8 + $0x60] sm:$0xff]
        %v755 = vld [vmem:[#allocation8 + $0x68] sm:$0xff]
        %v756 = vld [vmem:[#allocation8 + $0x70] sm:$0xff]
        %v757 = vld [vmem:[#allocation8 + $0x78] sm:$0xff]
        %v758 = vld [vmem:[#allocation8 + $0x80] sm:$0xff]
        %v759 = vld [vmem:[#allocation8 + $0x88] sm:$0xff]
        %v760 = vld [vmem:[#allocation8 + $0x90] sm:$0xff]
        %v761 = vld [vmem:[#allocation8 + $0x98] sm:$0xff]
        %v762 = vld [vmem:[#allocation8 + $0xa0] sm:$0xff]
        %v763 = vld [vmem:[#allocation8 + $0xa8] sm:$0xff]
        %v764 = vld [vmem:[#allocation8 + $0xb0] sm:$0xff]
        %v765 = vld [vmem:[#allocation8 + $0xb8] sm:$0xff]
        %v766 = vld [vmem:[#allocation8 + $0xc0] sm:$0xff]
        %v767 = vld [vmem:[#allocation8 + $0xc8] sm:$0xff]
        %v768 = vld [vmem:[#allocation8 + $0xd0] sm:$0xff]
        %v769 = vld [vmem:[#allocation8 + $0xd8] sm:$0xff]
        %v770 = vld [vmem:[#allocation8 + $0xe0] sm:$0xff]
        %v771 = vld [vmem:[#allocation8 + $0xe8] sm:$0xff]
        %v772 = vld [vmem:[#allocation8 + $0xf0] sm:$0xff]
        %v773 = vld [vmem:[#allocation8 + $0xf8] sm:$0xff]
        %v774 = vld [vmem:[#allocation8 + $0x100] sm:$0xff]
        %v775 = vld [vmem:[#allocation8 + $0x108] sm:$0xff]
        %v776 = vld [vmem:[#allocation8 + $0x110] sm:$0xff]
        %v777 = vld [vmem:[#allocation8 + $0x118] sm:$0xff]
        %v778 = vld [vmem:[#allocation8 + $0x120] sm:$0xff]
        %v779 = vld [vmem:[#allocation8 + $0x128] sm:$0xff]
        %v780 = vld [vmem:[#allocation8 + $0x130] sm:$0xff]
        %v781 = vld [vmem:[#allocation8 + $0x138] sm:$0xff]
        %v782 = vld [vmem:[#allocation8 + $0x140] sm:$0xff]
        %v783 = vld [vmem:[#allocation8 + $0x148] sm:$0xff]
        %v784 = vld [vmem:[#allocation8 + $0x150] sm:$0xff]
        %v785 = vld [vmem:[#allocation8 + $0x158] sm:$0xff]
        %v786 = vld [vmem:[#allocation8 + $0x160] sm:$0xff]
        %v787 = vld [vmem:[#allocation8 + $0x168] sm:$0xff]
        %v788 = vld [vmem:[#allocation8 + $0x170] sm:$0xff]
        %v789 = vld [vmem:[#allocation8 + $0x178] sm:$0xff]
        %v790 = vld [vmem:[#allocation8 + $0x180] sm:$0xff]
        %v791 = vld [vmem:[#allocation8 + $0x188] sm:$0xff]
        %v792 = vld [vmem:[#allocation8 + $0x190] sm:$0xff]
        %v793 = vld [vmem:[#allocation8 + $0x198] sm:$0xff]
        %v794 = vld [vmem:[#allocation8 + $0x1a0] sm:$0xff]
        %v795 = vld [vmem:[#allocation8 + $0x1a8] sm:$0xff]
        %v796 = vld [vmem:[#allocation8 + $0x1b0] sm:$0xff]
        %v797 = vld [vmem:[#allocation8 + $0x1b8] sm:$0xff]
        %v798 = vld [vmem:[#allocation8 + $0x1c0] sm:$0xff]
        %v799 = vld [vmem:[#allocation8 + $0x1c8] sm:$0xff]
        %v800 = vld [vmem:[#allocation8 + $0x1d0] sm:$0xff]
        %v801 = vld [vmem:[#allocation8 + $0x1d8] sm:$0xff]
        %v802 = vld [vmem:[#allocation8 + $0x1e0] sm:$0xff]
        %v803 = vld [vmem:[#allocation8 + $0x1e8] sm:$0xff]
        %v804 = vld [vmem:[#allocation8 + $0x1f0] sm:$0xff]
        %v805 = vld [vmem:[#allocation8 + $0x1f8] sm:$0xff]
        %v806 = vld [vmem:[#allocation8 + $0x200] sm:$0xff]
        %v807 = vld [vmem:[#allocation8 + $0x208] sm:$0xff]
        %v808 = vld [vmem:[#allocation8 + $0x210] sm:$0xff]
        %v809 = vld [vmem:[#allocation8 + $0x218] sm:$0xff]
        %v810 = vld [vmem:[#allocation8 + $0x220] sm:$0xff]
        %v811 = vld [vmem:[#allocation8 + $0x228] sm:$0xff]
        %v812 = vld [vmem:[#allocation8 + $0x230] sm:$0xff]
        %v813 = vld [vmem:[#allocation8 + $0x238] sm:$0xff]
        %v814 = vld [vmem:[#allocation8 + $0x240] sm:$0xff]
        %v815 = vld [vmem:[#allocation8 + $0x248] sm:$0xff]
        %v816 = vld [vmem:[#allocation8 + $0x250] sm:$0xff]
        %v817 = vld [vmem:[#allocation8 + $0x258] sm:$0xff]
        %v818 = vld [vmem:[#allocation8 + $0x260] sm:$0xff]
        %v819 = vld [vmem:[#allocation8 + $0x268] sm:$0xff]
        %v820 = vld [vmem:[#allocation8 + $0x270] sm:$0xff]
        %v821 = vld [vmem:[#allocation8 + $0x278] sm:$0xff]
        %v822 = vld [vmem:[#allocation8 + $0x280] sm:$0xff]
        %v823 = vld [vmem:[#allocation8 + $0x288] sm:$0xff]
        %v824 = vld [vmem:[#allocation8 + $0x290] sm:$0xff]
        %v825 = vld [vmem:[#allocation8 + $0x298] sm:$0xff]
        %v826 = vld [vmem:[#allocation8 + $0x2a0] sm:$0xff]
        %v827 = vld [vmem:[#allocation8 + $0x2a8] sm:$0xff]
        %v828 = vld [vmem:[#allocation8 + $0x2b0] sm:$0xff]
        %v829 = vld [vmem:[#allocation8 + $0x2b8] sm:$0xff]
        %v830 = vld [vmem:[#allocation8 + $0x2c0] sm:$0xff]
        %v831 = vld [vmem:[#allocation8 + $0x2c8] sm:$0xff]
        %v832 = vld [vmem:[#allocation8 + $0x2d0] sm:$0xff]
        %v833 = vld [vmem:[#allocation8 + $0x2d8] sm:$0xff]
        %v834 = vld [vmem:[#allocation8 + $0x2e0] sm:$0xff]
        %v835 = vld [vmem:[#allocation8 + $0x2e8] sm:$0xff]
        %v836 = vld [vmem:[#allocation8 + $0x2f0] sm:$0xff]
        %v837 = vld [vmem:[#allocation8 + $0x2f8] sm:$0xff]
        %v838 = vld [vmem:[#allocation8 + $0x300] sm:$0xff]
        %v839 = vld [vmem:[#allocation8 + $0x308] sm:$0xff]
        %v840 = vld [vmem:[#allocation8 + $0x310] sm:$0xff]
        %v841 = vld [vmem:[#allocation8 + $0x318] sm:$0xff]
        %v842 = vld [vmem:[#allocation8 + $0x320] sm:$0xff]
        %v843 = vld [vmem:[#allocation8 + $0x328] sm:$0xff]
        %v844 = vld [vmem:[#allocation8 + $0x330] sm:$0xff]
        %v845 = vld [vmem:[#allocation8 + $0x338] sm:$0xff]
        %v846 = vld [vmem:[#allocation8 + $0x340] sm:$0xff]
        %v847 = vld [vmem:[#allocation8 + $0x348] sm:$0xff]
        %v848 = vld [vmem:[#allocation8 + $0x350] sm:$0xff]
        %v849 = vld [vmem:[#allocation8 + $0x358] sm:$0xff]
        %v850 = vld [vmem:[#allocation8 + $0x360] sm:$0xff]
        %v851 = vld [vmem:[#allocation8 + $0x368] sm:$0xff]
        %v852 = vld [vmem:[#allocation8 + $0x370] sm:$0xff]
        %v853 = vld [vmem:[#allocation8 + $0x378] sm:$0xff]
        %v854 = vld [vmem:[#allocation8 + $0x380] sm:$0xff]
        %v855 = vld [vmem:[#allocation8 + $0x388] sm:$0xff]
        %v856 = vld [vmem:[#allocation8 + $0x390] sm:$0xff]
        %v857 = vld [vmem:[#allocation8 + $0x398] sm:$0xff]
        %v858 = vld [vmem:[#allocation8 + $0x3a0] sm:$0xff]
        %v859 = vld [vmem:[#allocation8 + $0x3a8] sm:$0xff]
        %v860 = vld [vmem:[#allocation8 + $0x3b0] sm:$0xff]
        %v861 = vld [vmem:[#allocation8 + $0x3b8] sm:$0xff]
        %v862 = vld [vmem:[#allocation8 + $0x3c0] sm:$0xff]
        %v863 = vld [vmem:[#allocation8 + $0x3c8] sm:$0xff]
        %v864 = vld [vmem:[#allocation8 + $0x3d0] sm:$0xff]
        %v865 = vld [vmem:[#allocation8 + $0x3d8] sm:$0xff]
        %v866 = vld [vmem:[#allocation8 + $0x3e0] sm:$0xff]
        %v867 = vld [vmem:[#allocation8 + $0x3e8] sm:$0xff]
        %v868 = vld [vmem:[#allocation8 + $0x3f0] sm:$0xff]
        %v869 = vld [vmem:[#allocation8 + $0x3f8] sm:$0xff]
        %v870 = vld [vmem:[#allocation8 + $0x400] sm:$0xff]
        %v871 = vld [vmem:[#allocation8 + $0x408] sm:$0xff]
        %v872 = vld [vmem:[#allocation8 + $0x410] sm:$0xff]
        %v873 = vld [vmem:[#allocation8 + $0x418] sm:$0xff]
        %v874 = vld [vmem:[#allocation8 + $0x420] sm:$0xff]
        %v875 = vld [vmem:[#allocation8 + $0x428] sm:$0xff]
        %v876 = vld [vmem:[#allocation8 + $0x430] sm:$0xff]
        %v877 = vld [vmem:[#allocation8 + $0x438] sm:$0xff]
        %v878 = vld [vmem:[#allocation8 + $0x440] sm:$0xff]
        %v879 = vld [vmem:[#allocation8 + $0x448] sm:$0xff]
        %v880 = vld [vmem:[#allocation8 + $0x450] sm:$0xff]
        %v881 = vld [vmem:[#allocation8 + $0x458] sm:$0xff]
        %v882 = vld [vmem:[#allocation8 + $0x460] sm:$0xff]
        %v883 = vld [vmem:[#allocation8 + $0x468] sm:$0xff]
        %v884 = vld [vmem:[#allocation8 + $0x470] sm:$0xff]
        %v885 = vld [vmem:[#allocation8 + $0x478] sm:$0xff]
        %v886 = vld [vmem:[#allocation8 + $0x480] sm:$0xff]
        %v887 = vld [vmem:[#allocation8 + $0x488] sm:$0xff]
        %v888 = vld [vmem:[#allocation8 + $0x490] sm:$0xff]
        %v889 = vld [vmem:[#allocation8 + $0x498] sm:$0xff]
        %v890 = vld [vmem:[#allocation8 + $0x4a0] sm:$0xff]
        %v891 = vld [vmem:[#allocation8 + $0x4a8] sm:$0xff]
        %v892 = vld [vmem:[#allocation8 + $0x4b0] sm:$0xff]
        %v893 = vld [vmem:[#allocation8 + $0x4b8] sm:$0xff]
        %v894 = vld [vmem:[#allocation8 + $0x4c0] sm:$0xff]
        %v895 = vld [vmem:[#allocation8 + $0x4c8] sm:$0xff]
        %v896 = vld [vmem:[#allocation8 + $0x4d0] sm:$0xff]
        %v897 = vld [vmem:[#allocation8 + $0x4d8] sm:$0xff]
        %v898 = vld [vmem:[#allocation8 + $0x4e0] sm:$0xff]
        %v899 = vld [vmem:[#allocation8 + $0x4e8] sm:$0xff]
        %v900 = vld [vmem:[#allocation8 + $0x4f0] sm:$0xff]
        %v901 = vld [vmem:[#allocation8 + $0x4f8] sm:$0xff]
        %v902 = vld [vmem:[#allocation8 + $0x500] sm:$0xff]
        %v903 = vld [vmem:[#allocation8 + $0x508] sm:$0xff]
        %v904 = vld [vmem:[#allocation8 + $0x510] sm:$0xff]
        %v905 = vld [vmem:[#allocation8 + $0x518] sm:$0xff]
        %v906 = vld [vmem:[#allocation8 + $0x520] sm:$0xff]
        %v907 = vld [vmem:[#allocation8 + $0x528] sm:$0xff]
        %v908 = vld [vmem:[#allocation8 + $0x530] sm:$0xff]
        %v909 = vld [vmem:[#allocation8 + $0x538] sm:$0xff]
        %v910 = vld [vmem:[#allocation8 + $0x540] sm:$0xff]
        %v911 = vld [vmem:[#allocation8 + $0x548] sm:$0xff]
        %v912 = vld [vmem:[#allocation8 + $0x550] sm:$0xff]
        %v913 = vld [vmem:[#allocation8 + $0x558] sm:$0xff]
        %v914 = vld [vmem:[#allocation8 + $0x560] sm:$0xff]
        %v915 = vld [vmem:[#allocation8 + $0x568] sm:$0xff]
        %v916 = vld [vmem:[#allocation8 + $0x570] sm:$0xff]
        %v917 = vld [vmem:[#allocation8 + $0x578] sm:$0xff]
        %v918 = vld [vmem:[#allocation8 + $0x580] sm:$0xff]
        %v919 = vld [vmem:[#allocation8 + $0x588] sm:$0xff]
        %v920 = vld [vmem:[#allocation8 + $0x590] sm:$0xff]
        %v921 = vld [vmem:[#allocation8 + $0x598] sm:$0xff]
        %v922 = vld [vmem:[#allocation8 + $0x5a0] sm:$0xff]
        %v923 = vld [vmem:[#allocation8 + $0x5a8] sm:$0xff]
        %v924 = vld [vmem:[#allocation8 + $0x5b0] sm:$0xff]
        %v925 = vld [vmem:[#allocation8 + $0x5b8] sm:$0xff]
        %v926 = vld [vmem:[#allocation8 + $0x5c0] sm:$0xff]
        %v927 = vld [vmem:[#allocation8 + $0x5c8] sm:$0xff]
        %v928 = vld [vmem:[#allocation8 + $0x5d0] sm:$0xff]
        %v929 = vld [vmem:[#allocation8 + $0x5d8] sm:$0xff]
        %v930 = vld [vmem:[#allocation8 + $0x5e0] sm:$0xff]
        %v931 = vld [vmem:[#allocation8 + $0x5e8] sm:$0xff]
        %v932 = vld [vmem:[#allocation8 + $0x5f0] sm:$0xff]
        %v933 = vld [vmem:[#allocation8 + $0x5f8] sm:$0xff]
        %v934 = vld [vmem:[#allocation8 + $0x600] sm:$0xff]
        %v935 = vld [vmem:[#allocation8 + $0x608] sm:$0xff]
        %v936 = vld [vmem:[#allocation8 + $0x610] sm:$0xff]
        %v937 = vld [vmem:[#allocation8 + $0x618] sm:$0xff]
        %v938 = vld [vmem:[#allocation8 + $0x620] sm:$0xff]
        %v939 = vld [vmem:[#allocation8 + $0x628] sm:$0xff]
        %v940 = vld [vmem:[#allocation8 + $0x630] sm:$0xff]
        %v941 = vld [vmem:[#allocation8 + $0x638] sm:$0xff]
        %v942 = vld [vmem:[#allocation8 + $0x640] sm:$0xff]
        %v943 = vld [vmem:[#allocation8 + $0x648] sm:$0xff]
        %v944 = vld [vmem:[#allocation8 + $0x650] sm:$0xff]
        %v945 = vld [vmem:[#allocation8 + $0x658] sm:$0xff]
        %v946 = vld [vmem:[#allocation8 + $0x660] sm:$0xff]
        %v947 = vld [vmem:[#allocation8 + $0x668] sm:$0xff]
        %v948 = vld [vmem:[#allocation8 + $0x670] sm:$0xff]
        %v949 = vld [vmem:[#allocation8 + $0x678] sm:$0xff]
        %v950 = vld [vmem:[#allocation8 + $0x680] sm:$0xff]
        %v951 = vld [vmem:[#allocation8 + $0x688] sm:$0xff]
        %v952 = vld [vmem:[#allocation8 + $0x690] sm:$0xff]
        %v953 = vld [vmem:[#allocation8 + $0x698] sm:$0xff]
        %v954 = vld [vmem:[#allocation8 + $0x6a0] sm:$0xff]
        %v955 = vld [vmem:[#allocation8 + $0x6a8] sm:$0xff]
        %v956 = vld [vmem:[#allocation8 + $0x6b0] sm:$0xff]
        %v957 = vld [vmem:[#allocation8 + $0x6b8] sm:$0xff]
        %v958 = vld [vmem:[#allocation8 + $0x6c0] sm:$0xff]
        %v959 = vld [vmem:[#allocation8 + $0x6c8] sm:$0xff]
        %v960 = vld [vmem:[#allocation8 + $0x6d0] sm:$0xff]
        %v961 = vld [vmem:[#allocation8 + $0x6d8] sm:$0xff]
        %v962 = vld [vmem:[#allocation8 + $0x6e0] sm:$0xff]
        %v963 = vld [vmem:[#allocation8 + $0x6e8] sm:$0xff]
        %v964 = vld [vmem:[#allocation8 + $0x6f0] sm:$0xff]
        %v965 = vld [vmem:[#allocation8 + $0x6f8] sm:$0xff]
        %v966 = vld [vmem:[#allocation8 + $0x700] sm:$0xff]
        %v967 = vld [vmem:[#allocation8 + $0x708] sm:$0xff]
        %v968 = vld [vmem:[#allocation8 + $0x710] sm:$0xff]
        %v969 = vld [vmem:[#allocation8 + $0x718] sm:$0xff]
        %v970 = vld [vmem:[#allocation8 + $0x720] sm:$0xff]
        %v971 = vld [vmem:[#allocation8 + $0x728] sm:$0xff]
        %v972 = vld [vmem:[#allocation8 + $0x730] sm:$0xff]
        %v973 = vld [vmem:[#allocation8 + $0x738] sm:$0xff]
        %v974 = vld [vmem:[#allocation8 + $0x740] sm:$0xff]
        %v975 = vld [vmem:[#allocation8 + $0x748] sm:$0xff]
        %v976 = vld [vmem:[#allocation8 + $0x750] sm:$0xff]
        %v977 = vld [vmem:[#allocation8 + $0x758] sm:$0xff]
        %v978 = vld [vmem:[#allocation8 + $0x760] sm:$0xff]
        %v979 = vld [vmem:[#allocation8 + $0x768] sm:$0xff]
        %v980 = vld [vmem:[#allocation8 + $0x770] sm:$0xff]
        %v981 = vld [vmem:[#allocation8 + $0x778] sm:$0xff]
        %v982 = vld [vmem:[#allocation8 + $0x780] sm:$0xff]
        %v983 = vld [vmem:[#allocation8 + $0x788] sm:$0xff]
        %v984 = vld [vmem:[#allocation8 + $0x790] sm:$0xff]
        %v985 = vld [vmem:[#allocation8 + $0x798] sm:$0xff]
        %v986 = vld [vmem:[#allocation8 + $0x7a0] sm:$0xff]
        %v987 = vld [vmem:[#allocation8 + $0x7a8] sm:$0xff]
        %v988 = vld [vmem:[#allocation8 + $0x7b0] sm:$0xff]
        %v989 = vld [vmem:[#allocation8 + $0x7b8] sm:$0xff]
        %v990 = vld [vmem:[#allocation8 + $0x7c0] sm:$0xff]
        %v991 = vld [vmem:[#allocation8 + $0x7c8] sm:$0xff]
        %v992 = vld [vmem:[#allocation8 + $0x7d0] sm:$0xff]
        %v993 = vld [vmem:[#allocation8 + $0x7d8] sm:$0xff]
        %v994 = vld [vmem:[#allocation8 + $0x7e0] sm:$0xff]
        %v995 = vld [vmem:[#allocation8 + $0x7e8] sm:$0xff]
        %v996 = vld [vmem:[#allocation8 + $0x7f0] sm:$0xff]
        %v997 = vld [vmem:[#allocation8 + $0x7f8] sm:$0xff]
        %v998 = vld [vmem:[#allocation8 + $0x800] sm:$0xff]
        %v999 = vld [vmem:[#allocation8 + $0x808] sm:$0xff]
        %v1000 = vld [vmem:[#allocation8 + $0x810] sm:$0xff]
        %v1001 = vld [vmem:[#allocation8 + $0x818] sm:$0xff]
        %v1002 = vld [vmem:[#allocation8 + $0x820] sm:$0xff]
        %v1003 = vld [vmem:[#allocation8 + $0x828] sm:$0xff]
        %v1004 = vld [vmem:[#allocation8 + $0x830] sm:$0xff]
        %v1005 = vld [vmem:[#allocation8 + $0x838] sm:$0xff]
        %v1006 = vld [vmem:[#allocation8 + $0x840] sm:$0xff]
        %v1007 = vld [vmem:[#allocation8 + $0x848] sm:$0xff]
        %v1008 = vld [vmem:[#allocation8 + $0x850] sm:$0xff]
        %v1009 = vld [vmem:[#allocation8 + $0x858] sm:$0xff]
        %v1010 = vld [vmem:[#allocation8 + $0x860] sm:$0xff]
        %v1011 = vld [vmem:[#allocation8 + $0x868] sm:$0xff]
        %v1012 = vld [vmem:[#allocation8 + $0x870] sm:$0xff]
        %v1013 = vld [vmem:[#allocation8 + $0x878] sm:$0xff]
        %v1014 = vld [vmem:[#allocation8 + $0x880] sm:$0xff]
        %v1015 = vld [vmem:[#allocation8 + $0x888] sm:$0xff]
        %v1016 = vld [vmem:[#allocation8 + $0x890] sm:$0xff]
        %v1017 = vld [vmem:[#allocation8 + $0x898] sm:$0xff]
        %v1018 = vld [vmem:[#allocation8 + $0x8a0] sm:$0xff]
        %v1019 = vld [vmem:[#allocation8 + $0x8a8] sm:$0xff]
        %v1020 = vld [vmem:[#allocation8 + $0x8b0] sm:$0xff]
        %v1021 = vld [vmem:[#allocation8 + $0x8b8] sm:$0xff]
        %v1022 = vld [vmem:[#allocation8 + $0x8c0] sm:$0xff]
        %v1023 = vld [vmem:[#allocation8 + $0x8c8] sm:$0xff]
        %v1024 = vld [vmem:[#allocation8 + $0x8d0] sm:$0xff]
        %v1025 = vld [vmem:[#allocation8 + $0x8d8] sm:$0xff]
        %v1026 = vld [vmem:[#allocation8 + $0x8e0] sm:$0xff]
        %v1027 = vld [vmem:[#allocation8 + $0x8e8] sm:$0xff]
        %v1028 = vld [vmem:[#allocation8 + $0x8f0] sm:$0xff]
        %v1029 = vld [vmem:[#allocation8 + $0x8f8] sm:$0xff]
        %v1030 = vld [vmem:[#allocation8 + $0x900] sm:$0xff]
        %v1031 = vld [vmem:[#allocation8 + $0x908] sm:$0xff]
        %v1032 = vld [vmem:[#allocation8 + $0x910] sm:$0xff]
        %v1033 = vld [vmem:[#allocation8 + $0x918] sm:$0xff]
        %v1034 = vld [vmem:[#allocation8 + $0x920] sm:$0xff]
        %v1035 = vld [vmem:[#allocation8 + $0x928] sm:$0xff]
        %v1036 = vld [vmem:[#allocation8 + $0x930] sm:$0xff]
        %v1037 = vld [vmem:[#allocation8 + $0x938] sm:$0xff]
        %v1038 = vld [vmem:[#allocation8 + $0x940] sm:$0xff]
        %v1039 = vld [vmem:[#allocation8 + $0x948] sm:$0xff]
        %v1040 = vld [vmem:[#allocation8 + $0x950] sm:$0xff]
        %v1041 = vld [vmem:[#allocation8 + $0x958] sm:$0xff]
        %v1042 = vld [vmem:[#allocation8 + $0x960] sm:$0xff]
        %v1043 = vld [vmem:[#allocation8 + $0x968] sm:$0xff]
        %v1044 = vld [vmem:[#allocation8 + $0x970] sm:$0xff]
        %v1045 = vld [vmem:[#allocation8 + $0x978] sm:$0xff]
        %v1046 = vld [vmem:[#allocation8 + $0x980] sm:$0xff]
        %v1047 = vld [vmem:[#allocation8 + $0x988] sm:$0xff]
        %v1048 = vld [vmem:[#allocation8 + $0x990] sm:$0xff]
        %v1049 = vld [vmem:[#allocation8 + $0x998] sm:$0xff]
        %v1050 = vld [vmem:[#allocation8 + $0x9a0] sm:$0xff]
        %v1051 = vld [vmem:[#allocation8 + $0x9a8] sm:$0xff]
        %v1052 = vld [vmem:[#allocation8 + $0x9b0] sm:$0xff]
        %v1053 = vld [vmem:[#allocation8 + $0x9b8] sm:$0xff]
        %v1054 = vld [vmem:[#allocation8 + $0x9c0] sm:$0xff]
        %v1055 = vld [vmem:[#allocation8 + $0x9c8] sm:$0xff]
        %v1056 = vld [vmem:[#allocation8 + $0x9d0] sm:$0xff]
        %v1057 = vld [vmem:[#allocation8 + $0x9d8] sm:$0xff]
        %v1058 = vld [vmem:[#allocation8 + $0x9e0] sm:$0xff]
        %v1059 = vld [vmem:[#allocation8 + $0x9e8] sm:$0xff]
        %v1060 = vld [vmem:[#allocation8 + $0x9f0] sm:$0xff]
        %v1061 = vld [vmem:[#allocation8 + $0x9f8] sm:$0xff]
        %v1062 = vld [vmem:[#allocation8 + $0xa00] sm:$0xff]
        %v1063 = vld [vmem:[#allocation8 + $0xa08] sm:$0xff]
        %v1064 = vld [vmem:[#allocation8 + $0xa10] sm:$0xff]
        %v1065 = vld [vmem:[#allocation8 + $0xa18] sm:$0xff]
        %v1066 = vld [vmem:[#allocation8 + $0xa20] sm:$0xff]
        %v1067 = vld [vmem:[#allocation8 + $0xa28] sm:$0xff]
        %v1068 = vld [vmem:[#allocation8 + $0xa30] sm:$0xff]
        %v1069 = vld [vmem:[#allocation8 + $0xa38] sm:$0xff]
        %v1070 = vld [vmem:[#allocation8 + $0xa40] sm:$0xff]
        %v1071 = vld [vmem:[#allocation8 + $0xa48] sm:$0xff]
        %v1072 = vld [vmem:[#allocation8 + $0xa50] sm:$0xff]
        %v1073 = vld [vmem:[#allocation8 + $0xa58] sm:$0xff]
        %v1074 = vld [vmem:[#allocation8 + $0xa60] sm:$0xff]
        %v1075 = vld [vmem:[#allocation8 + $0xa68] sm:$0xff]
        %v1076 = vld [vmem:[#allocation8 + $0xa70] sm:$0xff]
        %v1077 = vld [vmem:[#allocation8 + $0xa78] sm:$0xff]
        %v1078 = vld [vmem:[#allocation8 + $0xa80] sm:$0xff]
        %v1079 = vld [vmem:[#allocation8 + $0xa88] sm:$0xff]
        %v1080 = vld [vmem:[#allocation8 + $0xa90] sm:$0xff]
        %v1081 = vld [vmem:[#allocation8 + $0xa98] sm:$0xff]
        %v1082 = vld [vmem:[#allocation8 + $0xaa0] sm:$0xff]
        %v1083 = vld [vmem:[#allocation8 + $0xaa8] sm:$0xff]
        %v1084 = vld [vmem:[#allocation8 + $0xab0] sm:$0xff]
        %v1085 = vld [vmem:[#allocation8 + $0xab8] sm:$0xff]
        %v1086 = vld [vmem:[#allocation8 + $0xac0] sm:$0xff]
        %v1087 = vld [vmem:[#allocation8 + $0xac8] sm:$0xff]
        %v1088 = vld [vmem:[#allocation8 + $0xad0] sm:$0xff]
        %v1089 = vld [vmem:[#allocation8 + $0xad8] sm:$0xff]
        %v1090 = vld [vmem:[#allocation8 + $0xae0] sm:$0xff]
        %v1091 = vld [vmem:[#allocation8 + $0xae8] sm:$0xff]
        %v1092 = vld [vmem:[#allocation8 + $0xaf0] sm:$0xff]
        %v1093 = vld [vmem:[#allocation8 + $0xaf8] sm:$0xff]
        %v1094 = vld [vmem:[#allocation8 + $0xb00] sm:$0xff]
        %v1095 = vld [vmem:[#allocation8 + $0xb08] sm:$0xff]
        %v1096 = vld [vmem:[#allocation8 + $0xb10] sm:$0xff]
        %v1097 = vld [vmem:[#allocation8 + $0xb18] sm:$0xff]
        %v1098 = vld [vmem:[#allocation8 + $0xb20] sm:$0xff]
        %v1099 = vld [vmem:[#allocation8 + $0xb28] sm:$0xff]
        %v1100 = vld [vmem:[#allocation8 + $0xb30] sm:$0xff]
        %v1101 = vld [vmem:[#allocation8 + $0xb38] sm:$0xff]
        %v1102 = vld [vmem:[#allocation8 + $0xb40] sm:$0xff]
        %v1103 = vld [vmem:[#allocation8 + $0xb48] sm:$0xff]
        %v1104 = vld [vmem:[#allocation8 + $0xb50] sm:$0xff]
        %v1105 = vld [vmem:[#allocation8 + $0xb58] sm:$0xff]
        %v1106 = vld [vmem:[#allocation8 + $0xb60] sm:$0xff]
        %v1107 = vld [vmem:[#allocation8 + $0xb68] sm:$0xff]
        %v1108 = vld [vmem:[#allocation8 + $0xb70] sm:$0xff]
        %v1109 = vld [vmem:[#allocation8 + $0xb78] sm:$0xff]
        %v1110 = vld [vmem:[#allocation8 + $0xb80] sm:$0xff]
        %v1111 = vld [vmem:[#allocation8 + $0xb88] sm:$0xff]
        %v1112 = vld [vmem:[#allocation8 + $0xb90] sm:$0xff]
        %v1113 = vld [vmem:[#allocation8 + $0xb98] sm:$0xff]
        %v1114 = vld [vmem:[#allocation8 + $0xba0] sm:$0xff]
        %v1115 = vld [vmem:[#allocation8 + $0xba8] sm:$0xff]
        %v1116 = vld [vmem:[#allocation8 + $0xbb0] sm:$0xff]
        %v1117 = vld [vmem:[#allocation8 + $0xbb8] sm:$0xff]
        %v1118 = vld [vmem:[#allocation8 + $0xbc0] sm:$0xff]
        %v1119 = vld [vmem:[#allocation8 + $0xbc8] sm:$0xff]
        %v1120 = vld [vmem:[#allocation8 + $0xbd0] sm:$0xff]
        %v1121 = vld [vmem:[#allocation8 + $0xbd8] sm:$0xff]
        %v1122 = vld [vmem:[#allocation8 + $0xbe0] sm:$0xff]
        %v1123 = vld [vmem:[#allocation8 + $0xbe8] sm:$0xff]
        %v1124 = vld [vmem:[#allocation8 + $0xbf0] sm:$0xff]
        %v1125 = vld [vmem:[#allocation8 + $0xbf8] sm:$0xff]
        %v1126 = vld [vmem:[#allocation10] sm:$0xff]
        %v1128 = vlaneseq
        %v1129 = vshrl.u32 %v1128, 7
        %v1130 = vsub.s32 0, %v1129
        %v1131 = vrot.slane %v1126, %v1130
        %v1132 = vlaneseq
        %v1133 = vshrl.u32 %v1132, 7
        %v1134 = vsub.s32 1, %v1133
        %v1135 = vrot.slane %v1126, %v1134
        %v1136 = vlaneseq
        %v1137 = vshrl.u32 %v1136, 7
        %v1138 = vsub.s32 2, %v1137
        %v1139 = vrot.slane %v1126, %v1138
        %v1140 = vlaneseq
        %v1141 = vshrl.u32 %v1140, 7
        %v1142 = vsub.s32 3, %v1141
        %v1143 = vrot.slane %v1126, %v1142
        %v1144 = vlaneseq
        %v1145 = vshrl.u32 %v1144, 7
        %v1146 = vsub.s32 4, %v1145
        %v1147 = vrot.slane %v1126, %v1146
        %v1148 = vlaneseq
        %v1149 = vshrl.u32 %v1148, 7
        %v1150 = vsub.s32 5, %v1149
        %v1151 = vrot.slane %v1126, %v1150
        %v1152 = vlaneseq
        %v1153 = vshrl.u32 %v1152, 7
        %v1154 = vsub.s32 6, %v1153
        %v1155 = vrot.slane %v1126, %v1154
        %v1156 = vlaneseq
        %v1157 = vshrl.u32 %v1156, 7
        %v1158 = vsub.s32 7, %v1157
        %v1159 = vrot.slane %v1126, %v1158
        %1168 = vmatprep.subr.mxu0 %v743
        %1169 = vmatpush1.msra.mxu0 %v742
        %1170 = vmatprep.subr.mxu0 %v751
        %1171 = vmatpush1.msra.mxu0 %v750
        %1172 = vmatprep.subr.mxu0 %v759
        %1173 = vmatpush1.msra.mxu0 %v758
        %1174 = vmatprep.subr.mxu0 %v767
        %1175 = vmatpush1.msra.mxu0 %v766
        %1176 = vmatprep.subr.mxu0 %v775
        %1177 = vmatpush1.msra.mxu0 %v774
        %1178 = vmatprep.subr.mxu0 %v783
        %1179 = vmatpush1.msra.mxu0 %v782
        %1180 = vmatprep.subr.mxu0 %v791
        %1181 = vmatpush1.msra.mxu0 %v790
        %1182 = vmatprep.subr.mxu0 %v799
        %1183 = vmatpush1.msra.mxu0 %v798
        %1184 = vmatprep.subr.mxu0 %v807
        %1185 = vmatpush1.msra.mxu0 %v806
        %1186 = vmatprep.subr.mxu0 %v815
        %1187 = vmatpush1.msra.mxu0 %v814
        %1188 = vmatprep.subr.mxu0 %v823
        %1189 = vmatpush1.msra.mxu0 %v822
        %1190 = vmatprep.subr.mxu0 %v831
        %1191 = vmatpush1.msra.mxu0 %v830
        %1192 = vmatprep.subr.mxu0 %v839
        %1193 = vmatpush1.msra.mxu0 %v838
        %1194 = vmatprep.subr.mxu0 %v847
        %1195 = vmatpush1.msra.mxu0 %v846
        %1196 = vmatprep.subr.mxu0 %v855
        %1197 = vmatpush1.msra.mxu0 %v854
        %1198 = vmatprep.subr.mxu0 %v863
        %1199 = vmatpush1.msra.mxu0 %v862
        %1200 = vmatprep.subr.mxu0 %v871
        %1201 = vmatpush1.msra.mxu0 %v870
        %1202 = vmatprep.subr.mxu0 %v879
        %1203 = vmatpush1.msra.mxu0 %v878
        %1204 = vmatprep.subr.mxu0 %v887
        %1205 = vmatpush1.msra.mxu0 %v886
        %1206 = vmatprep.subr.mxu0 %v895
        %1207 = vmatpush1.msra.mxu0 %v894
        %1208 = vmatprep.subr.mxu0 %v903
        %1209 = vmatpush1.msra.mxu0 %v902
        %1210 = vmatprep.subr.mxu0 %v911
        %1211 = vmatpush1.msra.mxu0 %v910
        %1212 = vmatprep.subr.mxu0 %v919
        %1213 = vmatpush1.msra.mxu0 %v918
        %1214 = vmatprep.subr.mxu0 %v927
        %1215 = vmatpush1.msra.mxu0 %v926
        %1216 = vmatprep.subr.mxu0 %v935
        %1217 = vmatpush1.msra.mxu0 %v934
        %1218 = vmatprep.subr.mxu0 %v943
        %1219 = vmatpush1.msra.mxu0 %v942
        %1220 = vmatprep.subr.mxu0 %v951
        %1221 = vmatpush1.msra.mxu0 %v950
        %1222 = vmatprep.subr.mxu0 %v959
        %1223 = vmatpush1.msra.mxu0 %v958
        %1224 = vmatprep.subr.mxu0 %v967
        %1225 = vmatpush1.msra.mxu0 %v966
        %1226 = vmatprep.subr.mxu0 %v975
        %1227 = vmatpush1.msra.mxu0 %v974
        %1228 = vmatprep.subr.mxu0 %v983
        %1229 = vmatpush1.msra.mxu0 %v982
        %1230 = vmatprep.subr.mxu0 %v991
        %1231 = vmatpush1.msra.mxu0 %v990
        %1232 = vmatprep.mubr.f32.mxu0 %v740
        %1233 = vmatmul.mubr.f32.gmra.mrb[0].mxu0 %v739
        %v1234 = vpop.f32.mrb[0].mxu0
        %v1235 = vadd.f32 %v1131, %v1234
        %v1236 = vpop.f32.mrb[0].mxu0
        %v1237 = vadd.f32 %v1135, %v1236
        %1238 = vdwg.mxu0
        %1239 = vmatprep.subr.mxu0 %v999
        %1240 = vmatpush1.msra.mxu0 %v998
        %1241 = vmatprep.subr.mxu0 %v1007
        %1242 = vmatpush1.msra.mxu0 %v1006
        %1243 = vmatprep.subr.mxu0 %v1015
        %1244 = vmatpush1.msra.mxu0 %v1014
        %1245 = vmatprep.subr.mxu0 %v1023
        %1246 = vmatpush1.msra.mxu0 %v1022
        %1247 = vmatprep.subr.mxu0 %v1031
        %1248 = vmatpush1.msra.mxu0 %v1030
        %1249 = vmatprep.subr.mxu0 %v1039
        %1250 = vmatpush1.msra.mxu0 %v1038
        %1251 = vmatprep.subr.mxu0 %v1047
        %1252 = vmatpush1.msra.mxu0 %v1046
        %1253 = vmatprep.subr.mxu0 %v1055
        %1254 = vmatpush1.msra.mxu0 %v1054
        %1255 = vmatprep.subr.mxu0 %v1063
        %1256 = vmatpush1.msra.mxu0 %v1062
        %1257 = vmatprep.subr.mxu0 %v1071
        %1258 = vmatpush1.msra.mxu0 %v1070
        %1259 = vmatprep.subr.mxu0 %v1079
        %1260 = vmatpush1.msra.mxu0 %v1078
        %1261 = vmatprep.subr.mxu0 %v1087
        %1262 = vmatpush1.msra.mxu0 %v1086
        %1263 = vmatprep.subr.mxu0 %v1095
        %1264 = vmatpush1.msra.mxu0 %v1094
        %1265 = vmatprep.subr.mxu0 %v1103
        %1266 = vmatpush1.msra.mxu0 %v1102
        %1267 = vmatprep.subr.mxu0 %v1111
        %1268 = vmatpush1.msra.mxu0 %v1110
        %1269 = vmatprep.subr.mxu0 %v1119
        %1270 = vmatpush1.msra.mxu0 %v1118
        %1271 = vmatprep.subr.mxu0 0.0
        %1272 = vmatpush1.msra.mxu0 0.0
        %1273 = vmatprep.subr.mxu0 0.0
        %1274 = vmatpush1.msra.mxu0 0.0
        %1275 = vmatprep.subr.mxu0 0.0
        %1276 = vmatpush1.msra.mxu0 0.0
        %1277 = vmatprep.subr.mxu0 0.0
        %1278 = vmatpush1.msra.mxu0 0.0
        %1279 = vmatprep.subr.mxu0 0.0
        %1280 = vmatpush1.msra.mxu0 0.0
        %1281 = vmatprep.subr.mxu0 0.0
        %1282 = vmatpush1.msra.mxu0 0.0
        %1283 = vmatprep.subr.mxu0 0.0
        %1284 = vmatpush1.msra.mxu0 0.0
        %1285 = vmatprep.subr.mxu0 0.0
        %1286 = vmatpush1.msra.mxu0 0.0
        %1287 = vmatprep.subr.mxu0 0.0
        %1288 = vmatpush1.msra.mxu0 0.0
        %1289 = vmatprep.subr.mxu0 0.0
        %1290 = vmatpush1.msra.mxu0 0.0
        %1291 = vmatprep.subr.mxu0 0.0
        %1292 = vmatpush1.msra.mxu0 0.0
        %1293 = vmatprep.subr.mxu0 0.0
        %1294 = vmatpush1.msra.mxu0 0.0
        %1295 = vmatprep.subr.mxu0 0.0
        %1296 = vmatpush1.msra.mxu0 0.0
        %1297 = vmatprep.subr.mxu0 0.0
        %1298 = vmatpush1.msra.mxu0 0.0
        %1299 = vmatprep.subr.mxu0 0.0
        %1300 = vmatpush1.msra.mxu0 0.0
        %1301 = vmatprep.subr.mxu0 0.0
        %1302 = vmatpush1.msra.mxu0 0.0
        %1303 = vmatprep.mubr.f32.mxu0 0.0
        %1304 = vmatmul.mubr.f32.gmra.mrb[0].mxu0 %v741
        %v1305 = vpop.f32.mrb[0].mxu0
        %v1306 = vadd.f32 %v1235, %v1305
        %v1307 = vpop.f32.mrb[0].mxu0
        %v1308 = vadd.f32 %v1237, %v1307
        %1309 = vdwg.mxu0
        %1310 = vmatprep.subr.mxu0 %v745
        %1311 = vmatpush1.msra.mxu0 %v744
        %1312 = vmatprep.subr.mxu0 %v753
        %1313 = vmatpush1.msra.mxu0 %v752
        %1314 = vmatprep.subr.mxu0 %v761
        %1315 = vmatpush1.msra.mxu0 %v760
        %1316 = vmatprep.subr.mxu0 %v769
        %1317 = vmatpush1.msra.mxu0 %v768
        %1318 = vmatprep.subr.mxu0 %v777
        %1319 = vmatpush1.msra.mxu0 %v776
        %1320 = vmatprep.subr.mxu0 %v785
        %1321 = vmatpush1.msra.mxu0 %v784
        %1322 = vmatprep.subr.mxu0 %v793
        %1323 = vmatpush1.msra.mxu0 %v792
        %1324 = vmatprep.subr.mxu0 %v801
        %1325 = vmatpush1.msra.mxu0 %v800
        %1326 = vmatprep.subr.mxu0 %v809
        %1327 = vmatpush1.msra.mxu0 %v808
        %1328 = vmatprep.subr.mxu0 %v817
        %1329 = vmatpush1.msra.mxu0 %v816
        %1330 = vmatprep.subr.mxu0 %v825
        %1331 = vmatpush1.msra.mxu0 %v824
        %1332 = vmatprep.subr.mxu0 %v833
        %1333 = vmatpush1.msra.mxu0 %v832
        %1334 = vmatprep.subr.mxu0 %v841
        %1335 = vmatpush1.msra.mxu0 %v840
        %1336 = vmatprep.subr.mxu0 %v849
        %1337 = vmatpush1.msra.mxu0 %v848
        %1338 = vmatprep.subr.mxu0 %v857
        %1339 = vmatpush1.msra.mxu0 %v856
        %1340 = vmatprep.subr.mxu0 %v865
        %1341 = vmatpush1.msra.mxu0 %v864
        %1342 = vmatprep.subr.mxu0 %v873
        %1343 = vmatpush1.msra.mxu0 %v872
        %1344 = vmatprep.subr.mxu0 %v881
        %1345 = vmatpush1.msra.mxu0 %v880
        %1346 = vmatprep.subr.mxu0 %v889
        %1347 = vmatpush1.msra.mxu0 %v888
        %1348 = vmatprep.subr.mxu0 %v897
        %1349 = vmatpush1.msra.mxu0 %v896
        %1350 = vmatprep.subr.mxu0 %v905
        %1351 = vmatpush1.msra.mxu0 %v904
        %1352 = vmatprep.subr.mxu0 %v913
        %1353 = vmatpush1.msra.mxu0 %v912
        %1354 = vmatprep.subr.mxu0 %v921
        %1355 = vmatpush1.msra.mxu0 %v920
        %1356 = vmatprep.subr.mxu0 %v929
        %1357 = vmatpush1.msra.mxu0 %v928
        %1358 = vmatprep.subr.mxu0 %v937
        %1359 = vmatpush1.msra.mxu0 %v936
        %1360 = vmatprep.subr.mxu0 %v945
        %1361 = vmatpush1.msra.mxu0 %v944
        %1362 = vmatprep.subr.mxu0 %v953
        %1363 = vmatpush1.msra.mxu0 %v952
        %1364 = vmatprep.subr.mxu0 %v961
        %1365 = vmatpush1.msra.mxu0 %v960
        %1366 = vmatprep.subr.mxu0 %v969
        %1367 = vmatpush1.msra.mxu0 %v968
        %1368 = vmatprep.subr.mxu0 %v977
        %1369 = vmatpush1.msra.mxu0 %v976
        %1370 = vmatprep.subr.mxu0 %v985
        %1371 = vmatpush1.msra.mxu0 %v984
        %1372 = vmatprep.subr.mxu0 %v993
        %1373 = vmatpush1.msra.mxu0 %v992
        %1374 = vmatprep.mubr.f32.mxu0 %v740
        %1375 = vmatmul.mubr.f32.gmra.mrb[0].mxu0 %v739
        %v1376 = vpop.f32.mrb[0].mxu0
        %v1377 = vadd.f32 %v1139, %v1376
        %v1378 = vpop.f32.mrb[0].mxu0
        %v1379 = vadd.f32 %v1143, %v1378
        %1380 = vdwg.mxu0
        %1381 = vmatprep.subr.mxu0 %v1001
        %1382 = vmatpush1.msra.mxu0 %v1000
        %1383 = vmatprep.subr.mxu0 %v1009
        %1384 = vmatpush1.msra.mxu0 %v1008
        %1385 = vmatprep.subr.mxu0 %v1017
        %1386 = vmatpush1.msra.mxu0 %v1016
        %1387 = vmatprep.subr.mxu0 %v1025
        %1388 = vmatpush1.msra.mxu0 %v1024
        %1389 = vmatprep.subr.mxu0 %v1033
        %1390 = vmatpush1.msra.mxu0 %v1032
        %1391 = vmatprep.subr.mxu0 %v1041
        %1392 = vmatpush1.msra.mxu0 %v1040
        %1393 = vmatprep.subr.mxu0 %v1049
        %1394 = vmatpush1.msra.mxu0 %v1048
        %1395 = vmatprep.subr.mxu0 %v1057
        %1396 = vmatpush1.msra.mxu0 %v1056
        %1397 = vmatprep.subr.mxu0 %v1065
        %1398 = vmatpush1.msra.mxu0 %v1064
        %1399 = vmatprep.subr.mxu0 %v1073
        %1400 = vmatpush1.msra.mxu0 %v1072
        %1401 = vmatprep.subr.mxu0 %v1081
        %1402 = vmatpush1.msra.mxu0 %v1080
        %1403 = vmatprep.subr.mxu0 %v1089
        %1404 = vmatpush1.msra.mxu0 %v1088
        %1405 = vmatprep.subr.mxu0 %v1097
        %1406 = vmatpush1.msra.mxu0 %v1096
        %1407 = vmatprep.subr.mxu0 %v1105
        %1408 = vmatpush1.msra.mxu0 %v1104
        %1409 = vmatprep.subr.mxu0 %v1113
        %1410 = vmatpush1.msra.mxu0 %v1112
        %1411 = vmatprep.subr.mxu0 %v1121
        %1412 = vmatpush1.msra.mxu0 %v1120
        %1413 = vmatprep.subr.mxu0 0.0
        %1414 = vmatpush1.msra.mxu0 0.0
        %1415 = vmatprep.subr.mxu0 0.0
        %1416 = vmatpush1.msra.mxu0 0.0
        %1417 = vmatprep.subr.mxu0 0.0
        %1418 = vmatpush1.msra.mxu0 0.0
        %1419 = vmatprep.subr.mxu0 0.0
        %1420 = vmatpush1.msra.mxu0 0.0
        %1421 = vmatprep.subr.mxu0 0.0
        %1422 = vmatpush1.msra.mxu0 0.0
        %1423 = vmatprep.subr.mxu0 0.0
        %1424 = vmatpush1.msra.mxu0 0.0
        %1425 = vmatprep.subr.mxu0 0.0
        %1426 = vmatpush1.msra.mxu0 0.0
        %1427 = vmatprep.subr.mxu0 0.0
        %1428 = vmatpush1.msra.mxu0 0.0
        %1429 = vmatprep.subr.mxu0 0.0
        %1430 = vmatpush1.msra.mxu0 0.0
        %1431 = vmatprep.subr.mxu0 0.0
        %1432 = vmatpush1.msra.mxu0 0.0
        %1433 = vmatprep.subr.mxu0 0.0
        %1434 = vmatpush1.msra.mxu0 0.0
        %1435 = vmatprep.subr.mxu0 0.0
        %1436 = vmatpush1.msra.mxu0 0.0
        %1437 = vmatprep.subr.mxu0 0.0
        %1438 = vmatpush1.msra.mxu0 0.0
        %1439 = vmatprep.subr.mxu0 0.0
        %1440 = vmatpush1.msra.mxu0 0.0
        %1441 = vmatprep.subr.mxu0 0.0
        %1442 = vmatpush1.msra.mxu0 0.0
        %1443 = vmatprep.subr.mxu0 0.0
        %1444 = vmatpush1.msra.mxu0 0.0
        %1445 = vmatprep.mubr.f32.mxu0 0.0
        %1446 = vmatmul.mubr.f32.gmra.mrb[0].mxu0 %v741
        %v1447 = vpop.f32.mrb[0].mxu0
        %v1448 = vadd.f32 %v1377, %v1447
        %v1449 = vpop.f32.mrb[0].mxu0
        %v1450 = vadd.f32 %v1379, %v1449
        %1451 = vdwg.mxu0
        %1452 = vmatprep.subr.mxu0 %v747
        %1453 = vmatpush1.msra.mxu0 %v746
        %1454 = vmatprep.subr.mxu0 %v755
        %1455 = vmatpush1.msra.mxu0 %v754
        %1456 = vmatprep.subr.mxu0 %v763
        %1457 = vmatpush1.msra.mxu0 %v762
        %1458 = vmatprep.subr.mxu0 %v771
        %1459 = vmatpush1.msra.mxu0 %v770
        %1460 = vmatprep.subr.mxu0 %v779
        %1461 = vmatpush1.msra.mxu0 %v778
        %1462 = vmatprep.subr.mxu0 %v787
        %1463 = vmatpush1.msra.mxu0 %v786
        %1464 = vmatprep.subr.mxu0 %v795
        %1465 = vmatpush1.msra.mxu0 %v794
        %1466 = vmatprep.subr.mxu0 %v803
        %1467 = vmatpush1.msra.mxu0 %v802
        %1468 = vmatprep.subr.mxu0 %v811
        %1469 = vmatpush1.msra.mxu0 %v810
        %1470 = vmatprep.subr.mxu0 %v819
        %1471 = vmatpush1.msra.mxu0 %v818
        %1472 = vmatprep.subr.mxu0 %v827
        %1473 = vmatpush1.msra.mxu0 %v826
        %1474 = vmatprep.subr.mxu0 %v835
        %1475 = vmatpush1.msra.mxu0 %v834
        %1476 = vmatprep.subr.mxu0 %v843
        %1477 = vmatpush1.msra.mxu0 %v842
        %1478 = vmatprep.subr.mxu0 %v851
        %1479 = vmatpush1.msra.mxu0 %v850
        %1480 = vmatprep.subr.mxu0 %v859
        %1481 = vmatpush1.msra.mxu0 %v858
        %1482 = vmatprep.subr.mxu0 %v867
        %1483 = vmatpush1.msra.mxu0 %v866
        %1484 = vmatprep.subr.mxu0 %v875
        %1485 = vmatpush1.msra.mxu0 %v874
        %1486 = vmatprep.subr.mxu0 %v883
        %1487 = vmatpush1.msra.mxu0 %v882
        %1488 = vmatprep.subr.mxu0 %v891
        %1489 = vmatpush1.msra.mxu0 %v890
        %1490 = vmatprep.subr.mxu0 %v899
        %1491 = vmatpush1.msra.mxu0 %v898
        %1492 = vmatprep.subr.mxu0 %v907
        %1493 = vmatpush1.msra.mxu0 %v906
        %1494 = vmatprep.subr.mxu0 %v915
        %1495 = vmatpush1.msra.mxu0 %v914
        %1496 = vmatprep.subr.mxu0 %v923
        %1497 = vmatpush1.msra.mxu0 %v922
        %1498 = vmatprep.subr.mxu0 %v931
        %1499 = vmatpush1.msra.mxu0 %v930
        %1500 = vmatprep.subr.mxu0 %v939
        %1501 = vmatpush1.msra.mxu0 %v938
        %1502 = vmatprep.subr.mxu0 %v947
        %1503 = vmatpush1.msra.mxu0 %v946
        %1504 = vmatprep.subr.mxu0 %v955
        %1505 = vmatpush1.msra.mxu0 %v954
        %1506 = vmatprep.subr.mxu0 %v963
        %1507 = vmatpush1.msra.mxu0 %v962
        %1508 = vmatprep.subr.mxu0 %v971
        %1509 = vmatpush1.msra.mxu0 %v970
        %1510 = vmatprep.subr.mxu0 %v979
        %1511 = vmatpush1.msra.mxu0 %v978
        %1512 = vmatprep.subr.mxu0 %v987
        %1513 = vmatpush1.msra.mxu0 %v986
        %1514 = vmatprep.subr.mxu0 %v995
        %1515 = vmatpush1.msra.mxu0 %v994
        %1516 = vmatprep.mubr.f32.mxu0 %v740
        %1517 = vmatmul.mubr.f32.gmra.mrb[0].mxu0 %v739
        %v1518 = vpop.f32.mrb[0].mxu0
        %v1519 = vadd.f32 %v1147, %v1518
        %v1520 = vpop.f32.mrb[0].mxu0
        %v1521 = vadd.f32 %v1151, %v1520
        %1522 = vdwg.mxu0
        %1523 = vmatprep.subr.mxu0 %v1003
        %1524 = vmatpush1.msra.mxu0 %v1002
        %1525 = vmatprep.subr.mxu0 %v1011
        %1526 = vmatpush1.msra.mxu0 %v1010
        %1527 = vmatprep.subr.mxu0 %v1019
        %1528 = vmatpush1.msra.mxu0 %v1018
        %1529 = vmatprep.subr.mxu0 %v1027
        %1530 = vmatpush1.msra.mxu0 %v1026
        %1531 = vmatprep.subr.mxu0 %v1035
        %1532 = vmatpush1.msra.mxu0 %v1034
        %1533 = vmatprep.subr.mxu0 %v1043
        %1534 = vmatpush1.msra.mxu0 %v1042
        %1535 = vmatprep.subr.mxu0 %v1051
        %1536 = vmatpush1.msra.mxu0 %v1050
        %1537 = vmatprep.subr.mxu0 %v1059
        %1538 = vmatpush1.msra.mxu0 %v1058
        %1539 = vmatprep.subr.mxu0 %v1067
        %1540 = vmatpush1.msra.mxu0 %v1066
        %1541 = vmatprep.subr.mxu0 %v1075
        %1542 = vmatpush1.msra.mxu0 %v1074
        %1543 = vmatprep.subr.mxu0 %v1083
        %1544 = vmatpush1.msra.mxu0 %v1082
        %1545 = vmatprep.subr.mxu0 %v1091
        %1546 = vmatpush1.msra.mxu0 %v1090
        %1547 = vmatprep.subr.mxu0 %v1099
        %1548 = vmatpush1.msra.mxu0 %v1098
        %1549 = vmatprep.subr.mxu0 %v1107
        %1550 = vmatpush1.msra.mxu0 %v1106
        %1551 = vmatprep.subr.mxu0 %v1115
        %1552 = vmatpush1.msra.mxu0 %v1114
        %1553 = vmatprep.subr.mxu0 %v1123
        %1554 = vmatpush1.msra.mxu0 %v1122
        %1555 = vmatprep.subr.mxu0 0.0
        %1556 = vmatpush1.msra.mxu0 0.0
        %1557 = vmatprep.subr.mxu0 0.0
        %1558 = vmatpush1.msra.mxu0 0.0
        %1559 = vmatprep.subr.mxu0 0.0
        %1560 = vmatpush1.msra.mxu0 0.0
        %1561 = vmatprep.subr.mxu0 0.0
        %1562 = vmatpush1.msra.mxu0 0.0
        %1563 = vmatprep.subr.mxu0 0.0
        %1564 = vmatpush1.msra.mxu0 0.0
        %1565 = vmatprep.subr.mxu0 0.0
        %1566 = vmatpush1.msra.mxu0 0.0
        %1567 = vmatprep.subr.mxu0 0.0
        %1568 = vmatpush1.msra.mxu0 0.0
        %1569 = vmatprep.subr.mxu0 0.0
        %1570 = vmatpush1.msra.mxu0 0.0
        %1571 = vmatprep.subr.mxu0 0.0
        %1572 = vmatpush1.msra.mxu0 0.0
        %1573 = vmatprep.subr.mxu0 0.0
        %1574 = vmatpush1.msra.mxu0 0.0
        %1575 = vmatprep.subr.mxu0 0.0
        %1576 = vmatpush1.msra.mxu0 0.0
        %1577 = vmatprep.subr.mxu0 0.0
        %1578 = vmatpush1.msra.mxu0 0.0
        %1579 = vmatprep.subr.mxu0 0.0
        %1580 = vmatpush1.msra.mxu0 0.0
        %1581 = vmatprep.subr.mxu0 0.0
        %1582 = vmatpush1.msra.mxu0 0.0
        %1583 = vmatprep.subr.mxu0 0.0
        %1584 = vmatpush1.msra.mxu0 0.0
        %1585 = vmatprep.subr.mxu0 0.0
        %1586 = vmatpush1.msra.mxu0 0.0
        %1587 = vmatprep.mubr.f32.mxu0 0.0
        %1588 = vmatmul.mubr.f32.gmra.mrb[0].mxu0 %v741
        %v1589 = vpop.f32.mrb[0].mxu0
        %v1590 = vadd.f32 %v1519, %v1589
        %v1591 = vpop.f32.mrb[0].mxu0
        %v1592 = vadd.f32 %v1521, %v1591
        %1593 = vdwg.mxu0
        %1594 = vmatprep.subr.mxu0 %v749
        %1595 = vmatpush1.msra.mxu0 %v748
        %1596 = vmatprep.subr.mxu0 %v757
        %1597 = vmatpush1.msra.mxu0 %v756
        %1598 = vmatprep.subr.mxu0 %v765
        %1599 = vmatpush1.msra.mxu0 %v764
        %1600 = vmatprep.subr.mxu0 %v773
        %1601 = vmatpush1.msra.mxu0 %v772
        %1602 = vmatprep.subr.mxu0 %v781
        %1603 = vmatpush1.msra.mxu0 %v780
        %1604 = vmatprep.subr.mxu0 %v789
        %1605 = vmatpush1.msra.mxu0 %v788
        %1606 = vmatprep.subr.mxu0 %v797
        %1607 = vmatpush1.msra.mxu0 %v796
        %1608 = vmatprep.subr.mxu0 %v805
        %1609 = vmatpush1.msra.mxu0 %v804
        %1610 = vmatprep.subr.mxu0 %v813
        %1611 = vmatpush1.msra.mxu0 %v812
        %1612 = vmatprep.subr.mxu0 %v821
        %1613 = vmatpush1.msra.mxu0 %v820
        %1614 = vmatprep.subr.mxu0 %v829
        %1615 = vmatpush1.msra.mxu0 %v828
        %1616 = vmatprep.subr.mxu0 %v837
        %1617 = vmatpush1.msra.mxu0 %v836
        %1618 = vmatprep.subr.mxu0 %v845
        %1619 = vmatpush1.msra.mxu0 %v844
        %1620 = vmatprep.subr.mxu0 %v853
        %1621 = vmatpush1.msra.mxu0 %v852
        %1622 = vmatprep.subr.mxu0 %v861
        %1623 = vmatpush1.msra.mxu0 %v860
        %1624 = vmatprep.subr.mxu0 %v869
        %1625 = vmatpush1.msra.mxu0 %v868
        %1626 = vmatprep.subr.mxu0 %v877
        %1627 = vmatpush1.msra.mxu0 %v876
        %1628 = vmatprep.subr.mxu0 %v885
        %1629 = vmatpush1.msra.mxu0 %v884
        %1630 = vmatprep.subr.mxu0 %v893
        %1631 = vmatpush1.msra.mxu0 %v892
        %1632 = vmatprep.subr.mxu0 %v901
        %1633 = vmatpush1.msra.mxu0 %v900
        %1634 = vmatprep.subr.mxu0 %v909
        %1635 = vmatpush1.msra.mxu0 %v908
        %1636 = vmatprep.subr.mxu0 %v917
        %1637 = vmatpush1.msra.mxu0 %v916
        %1638 = vmatprep.subr.mxu0 %v925
        %1639 = vmatpush1.msra.mxu0 %v924
        %1640 = vmatprep.subr.mxu0 %v933
        %1641 = vmatpush1.msra.mxu0 %v932
        %1642 = vmatprep.subr.mxu0 %v941
        %1643 = vmatpush1.msra.mxu0 %v940
        %1644 = vmatprep.subr.mxu0 %v949
        %1645 = vmatpush1.msra.mxu0 %v948
        %1646 = vmatprep.subr.mxu0 %v957
        %1647 = vmatpush1.msra.mxu0 %v956
        %1648 = vmatprep.subr.mxu0 %v965
        %1649 = vmatpush1.msra.mxu0 %v964
        %1650 = vmatprep.subr.mxu0 %v973
        %1651 = vmatpush1.msra.mxu0 %v972
        %1652 = vmatprep.subr.mxu0 %v981
        %1653 = vmatpush1.msra.mxu0 %v980
        %1654 = vmatprep.subr.mxu0 %v989
        %1655 = vmatpush1.msra.mxu0 %v988
        %1656 = vmatprep.subr.mxu0 %v997
        %1657 = vmatpush1.msra.mxu0 %v996
        %1658 = vmatprep.mubr.f32.mxu0 %v740
        %1659 = vmatmul.mubr.f32.gmra.mrb[0].mxu0 %v739
        %v1660 = vpop.f32.mrb[0].mxu0
        %v1661 = vadd.f32 %v1155, %v1660
        %v1662 = vpop.f32.mrb[0].mxu0
        %v1663 = vadd.f32 %v1159, %v1662
        %1664 = vdwg.mxu0
        %1665 = vmatprep.subr.mxu0 %v1005
        %1666 = vmatpush1.msra.mxu0 %v1004
        %1667 = vmatprep.subr.mxu0 %v1013
        %1668 = vmatpush1.msra.mxu0 %v1012
        %1669 = vmatprep.subr.mxu0 %v1021
        %1670 = vmatpush1.msra.mxu0 %v1020
        %1671 = vmatprep.subr.mxu0 %v1029
        %1672 = vmatpush1.msra.mxu0 %v1028
        %1673 = vmatprep.subr.mxu0 %v1037
        %1674 = vmatpush1.msra.mxu0 %v1036
        %1675 = vmatprep.subr.mxu0 %v1045
        %1676 = vmatpush1.msra.mxu0 %v1044
        %1677 = vmatprep.subr.mxu0 %v1053
        %1678 = vmatpush1.msra.mxu0 %v1052
        %1679 = vmatprep.subr.mxu0 %v1061
        %1680 = vmatpush1.msra.mxu0 %v1060
        %1681 = vmatprep.subr.mxu0 %v1069
        %1682 = vmatpush1.msra.mxu0 %v1068
        %1683 = vmatprep.subr.mxu0 %v1077
        %1684 = vmatpush1.msra.mxu0 %v1076
        %1685 = vmatprep.subr.mxu0 %v1085
        %1686 = vmatpush1.msra.mxu0 %v1084
        %1687 = vmatprep.subr.mxu0 %v1093
        %1688 = vmatpush1.msra.mxu0 %v1092
        %1689 = vmatprep.subr.mxu0 %v1101
        %1690 = vmatpush1.msra.mxu0 %v1100
        %1691 = vmatprep.subr.mxu0 %v1109
        %1692 = vmatpush1.msra.mxu0 %v1108
        %1693 = vmatprep.subr.mxu0 %v1117
        %1694 = vmatpush1.msra.mxu0 %v1116
        %1695 = vmatprep.subr.mxu0 %v1125
        %1696 = vmatpush1.msra.mxu0 %v1124
        %1697 = vmatprep.subr.mxu0 0.0
        %1698 = vmatpush1.msra.mxu0 0.0
        %1699 = vmatprep.subr.mxu0 0.0
        %1700 = vmatpush1.msra.mxu0 0.0
        %1701 = vmatprep.subr.mxu0 0.0
        %1702 = vmatpush1.msra.mxu0 0.0
        %1703 = vmatprep.subr.mxu0 0.0
        %1704 = vmatpush1.msra.mxu0 0.0
        %1705 = vmatprep.subr.mxu0 0.0
        %1706 = vmatpush1.msra.mxu0 0.0
        %1707 = vmatprep.subr.mxu0 0.0
        %1708 = vmatpush1.msra.mxu0 0.0
        %1709 = vmatprep.subr.mxu0 0.0
        %1710 = vmatpush1.msra.mxu0 0.0
        %1711 = vmatprep.subr.mxu0 0.0
        %1712 = vmatpush1.msra.mxu0 0.0
        %1713 = vmatprep.subr.mxu0 0.0
        %1714 = vmatpush1.msra.mxu0 0.0
        %1715 = vmatprep.subr.mxu0 0.0
        %1716 = vmatpush1.msra.mxu0 0.0
        %1717 = vmatprep.subr.mxu0 0.0
        %1718 = vmatpush1.msra.mxu0 0.0
        %1719 = vmatprep.subr.mxu0 0.0
        %1720 = vmatpush1.msra.mxu0 0.0
        %1721 = vmatprep.subr.mxu0 0.0
        %1722 = vmatpush1.msra.mxu0 0.0
        %1723 = vmatprep.subr.mxu0 0.0
        %1724 = vmatpush1.msra.mxu0 0.0
        %1725 = vmatprep.subr.mxu0 0.0
        %1726 = vmatpush1.msra.mxu0 0.0
        %1727 = vmatprep.subr.mxu0 0.0
        %1728 = vmatpush1.msra.mxu0 0.0
        %1729 = vmatprep.mubr.f32.mxu0 0.0
        %1730 = vmatmul.mubr.f32.gmra.mrb[0].mxu0 %v741
        %v1731 = vpop.f32.mrb[0].mxu0
        %v1732 = vadd.f32 %v1661, %v1731
        %v1733 = vpop.f32.mrb[0].mxu0
        %v1734 = vadd.f32 %v1663, %v1733
        %1735 = vdwg.mxu0
        %v1736 = vmul.f32 %v1306, 0.5
        %v1737 = vmul.f32 %v1308, 0.5
        %v1738 = vmul.f32 %v1448, 0.5
        %v1739 = vmul.f32 %v1450, 0.5
        %v1740 = vmul.f32 %v1590, 0.5
        %v1741 = vmul.f32 %v1592, 0.5
        %v1742 = vmul.f32 %v1732, 0.5
        %v1743 = vmul.f32 %v1734, 0.5
        %v1744 = vtanh.pop %v1736
        %v1745 = vtanh.pop %v1737
        %v1746 = vtanh.pop %v1738
        %v1747 = vtanh.pop %v1739
        %v1748 = vtanh.pop %v1740
        %v1749 = vtanh.pop %v1741
        %v1750 = vtanh.pop %v1742
        %v1751 = vtanh.pop %v1743
        %v1752 = vmul.f32 %v1744, 0.5
        %v1753 = vmul.f32 %v1745, 0.5
        %v1754 = vmul.f32 %v1746, 0.5
        %v1755 = vmul.f32 %v1747, 0.5
        %v1756 = vmul.f32 %v1748, 0.5
        %v1757 = vmul.f32 %v1749, 0.5
        %v1758 = vmul.f32 %v1750, 0.5
        %v1759 = vmul.f32 %v1751, 0.5
        %v1760 = vadd.f32 %v1752, 0.5
        %v1761 = vadd.f32 %v1753, 0.5
        %v1762 = vadd.f32 %v1754, 0.5
        %v1763 = vadd.f32 %v1755, 0.5
        %v1764 = vadd.f32 %v1756, 0.5
        %v1765 = vadd.f32 %v1757, 0.5
        %v1766 = vadd.f32 %v1758, 0.5
        %v1767 = vadd.f32 %v1759, 0.5
        %v1768 = vld [vmem:[#allocation11] sm:$0xff]
        %v1769 = vld [vmem:[#allocation11 + $0x8] sm:$0xff]
        %v1770 = vld [vmem:[#allocation11 + $0x10] sm:$0xff]
        %v1771 = vld [vmem:[#allocation11 + $0x18] sm:$0xff]
        %v1772 = vld [vmem:[#allocation11 + $0x20] sm:$0xff]
        %v1773 = vld [vmem:[#allocation11 + $0x28] sm:$0xff]
        %v1774 = vld [vmem:[#allocation11 + $0x30] sm:$0xff]
        %v1775 = vld [vmem:[#allocation11 + $0x38] sm:$0xff]
        %v1776 = vld [vmem:[#allocation11 + $0x40] sm:$0xff]
        %v1777 = vld [vmem:[#allocation11 + $0x48] sm:$0xff]
        %v1778 = vld [vmem:[#allocation11 + $0x50] sm:$0xff]
        %v1779 = vld [vmem:[#allocation11 + $0x58] sm:$0xff]
        %v1780 = vld [vmem:[#allocation11 + $0x60] sm:$0xff]
        %v1781 = vld [vmem:[#allocation11 + $0x68] sm:$0xff]
        %v1782 = vld [vmem:[#allocation11 + $0x70] sm:$0xff]
        %v1783 = vld [vmem:[#allocation11 + $0x78] sm:$0xff]
        %v1784 = vld [vmem:[#allocation11 + $0x80] sm:$0xff]
        %v1785 = vld [vmem:[#allocation11 + $0x88] sm:$0xff]
        %v1786 = vld [vmem:[#allocation11 + $0x90] sm:$0xff]
        %v1787 = vld [vmem:[#allocation11 + $0x98] sm:$0xff]
        %v1788 = vld [vmem:[#allocation11 + $0xa0] sm:$0xff]
        %v1789 = vld [vmem:[#allocation11 + $0xa8] sm:$0xff]
        %v1790 = vld [vmem:[#allocation11 + $0xb0] sm:$0xff]
        %v1791 = vld [vmem:[#allocation11 + $0xb8] sm:$0xff]
        %v1792 = vld [vmem:[#allocation11 + $0xc0] sm:$0xff]
        %v1793 = vld [vmem:[#allocation11 + $0xc8] sm:$0xff]
        %v1794 = vld [vmem:[#allocation11 + $0xd0] sm:$0xff]
        %v1795 = vld [vmem:[#allocation11 + $0xd8] sm:$0xff]
        %v1796 = vld [vmem:[#allocation11 + $0xe0] sm:$0xff]
        %v1797 = vld [vmem:[#allocation11 + $0xe8] sm:$0xff]
        %v1798 = vld [vmem:[#allocation11 + $0xf0] sm:$0xff]
        %v1799 = vld [vmem:[#allocation11 + $0xf8] sm:$0xff]
        %v1800 = vld [vmem:[#allocation11 + $0x100] sm:$0xff]
        %v1801 = vld [vmem:[#allocation11 + $0x108] sm:$0xff]
        %v1802 = vld [vmem:[#allocation11 + $0x110] sm:$0xff]
        %v1803 = vld [vmem:[#allocation11 + $0x118] sm:$0xff]
        %v1804 = vld [vmem:[#allocation11 + $0x120] sm:$0xff]
        %v1805 = vld [vmem:[#allocation11 + $0x128] sm:$0xff]
        %v1806 = vld [vmem:[#allocation11 + $0x130] sm:$0xff]
        %v1807 = vld [vmem:[#allocation11 + $0x138] sm:$0xff]
        %v1808 = vld [vmem:[#allocation11 + $0x140] sm:$0xff]
        %v1809 = vld [vmem:[#allocation11 + $0x148] sm:$0xff]
        %v1810 = vld [vmem:[#allocation11 + $0x150] sm:$0xff]
        %v1811 = vld [vmem:[#allocation11 + $0x158] sm:$0xff]
        %v1812 = vld [vmem:[#allocation11 + $0x160] sm:$0xff]
        %v1813 = vld [vmem:[#allocation11 + $0x168] sm:$0xff]
        %v1814 = vld [vmem:[#allocation11 + $0x170] sm:$0xff]
        %v1815 = vld [vmem:[#allocation11 + $0x178] sm:$0xff]
        %v1816 = vld [vmem:[#allocation11 + $0x180] sm:$0xff]
        %v1817 = vld [vmem:[#allocation11 + $0x188] sm:$0xff]
        %v1818 = vld [vmem:[#allocation11 + $0x190] sm:$0xff]
        %v1819 = vld [vmem:[#allocation11 + $0x198] sm:$0xff]
        %v1820 = vld [vmem:[#allocation11 + $0x1a0] sm:$0xff]
        %v1821 = vld [vmem:[#allocation11 + $0x1a8] sm:$0xff]
        %v1822 = vld [vmem:[#allocation11 + $0x1b0] sm:$0xff]
        %v1823 = vld [vmem:[#allocation11 + $0x1b8] sm:$0xff]
        %v1824 = vld [vmem:[#allocation11 + $0x1c0] sm:$0xff]
        %v1825 = vld [vmem:[#allocation11 + $0x1c8] sm:$0xff]
        %v1826 = vld [vmem:[#allocation11 + $0x1d0] sm:$0xff]
        %v1827 = vld [vmem:[#allocation11 + $0x1d8] sm:$0xff]
        %v1828 = vld [vmem:[#allocation11 + $0x1e0] sm:$0xff]
        %v1829 = vld [vmem:[#allocation11 + $0x1e8] sm:$0xff]
        %v1830 = vld [vmem:[#allocation11 + $0x1f0] sm:$0xff]
        %v1831 = vld [vmem:[#allocation11 + $0x1f8] sm:$0xff]
        %v1832 = vld [vmem:[#allocation11 + $0x200] sm:$0xff]
        %v1833 = vld [vmem:[#allocation11 + $0x208] sm:$0xff]
        %v1834 = vld [vmem:[#allocation11 + $0x210] sm:$0xff]
        %v1835 = vld [vmem:[#allocation11 + $0x218] sm:$0xff]
        %v1836 = vld [vmem:[#allocation11 + $0x220] sm:$0xff]
        %v1837 = vld [vmem:[#allocation11 + $0x228] sm:$0xff]
        %v1838 = vld [vmem:[#allocation11 + $0x230] sm:$0xff]
        %v1839 = vld [vmem:[#allocation11 + $0x238] sm:$0xff]
        %v1840 = vld [vmem:[#allocation11 + $0x240] sm:$0xff]
        %v1841 = vld [vmem:[#allocation11 + $0x248] sm:$0xff]
        %v1842 = vld [vmem:[#allocation11 + $0x250] sm:$0xff]
        %v1843 = vld [vmem:[#allocation11 + $0x258] sm:$0xff]
        %v1844 = vld [vmem:[#allocation11 + $0x260] sm:$0xff]
        %v1845 = vld [vmem:[#allocation11 + $0x268] sm:$0xff]
        %v1846 = vld [vmem:[#allocation11 + $0x270] sm:$0xff]
        %v1847 = vld [vmem:[#allocation11 + $0x278] sm:$0xff]
        %v1848 = vld [vmem:[#allocation11 + $0x280] sm:$0xff]
        %v1849 = vld [vmem:[#allocation11 + $0x288] sm:$0xff]
        %v1850 = vld [vmem:[#allocation11 + $0x290] sm:$0xff]
        %v1851 = vld [vmem:[#allocation11 + $0x298] sm:$0xff]
        %v1852 = vld [vmem:[#allocation11 + $0x2a0] sm:$0xff]
        %v1853 = vld [vmem:[#allocation11 + $0x2a8] sm:$0xff]
        %v1854 = vld [vmem:[#allocation11 + $0x2b0] sm:$0xff]
        %v1855 = vld [vmem:[#allocation11 + $0x2b8] sm:$0xff]
        %v1856 = vld [vmem:[#allocation11 + $0x2c0] sm:$0xff]
        %v1857 = vld [vmem:[#allocation11 + $0x2c8] sm:$0xff]
        %v1858 = vld [vmem:[#allocation11 + $0x2d0] sm:$0xff]
        %v1859 = vld [vmem:[#allocation11 + $0x2d8] sm:$0xff]
        %v1860 = vld [vmem:[#allocation11 + $0x2e0] sm:$0xff]
        %v1861 = vld [vmem:[#allocation11 + $0x2e8] sm:$0xff]
        %v1862 = vld [vmem:[#allocation11 + $0x2f0] sm:$0xff]
        %v1863 = vld [vmem:[#allocation11 + $0x2f8] sm:$0xff]
        %v1864 = vld [vmem:[#allocation11 + $0x300] sm:$0xff]
        %v1865 = vld [vmem:[#allocation11 + $0x308] sm:$0xff]
        %v1866 = vld [vmem:[#allocation11 + $0x310] sm:$0xff]
        %v1867 = vld [vmem:[#allocation11 + $0x318] sm:$0xff]
        %v1868 = vld [vmem:[#allocation11 + $0x320] sm:$0xff]
        %v1869 = vld [vmem:[#allocation11 + $0x328] sm:$0xff]
        %v1870 = vld [vmem:[#allocation11 + $0x330] sm:$0xff]
        %v1871 = vld [vmem:[#allocation11 + $0x338] sm:$0xff]
        %v1872 = vld [vmem:[#allocation11 + $0x340] sm:$0xff]
        %v1873 = vld [vmem:[#allocation11 + $0x348] sm:$0xff]
        %v1874 = vld [vmem:[#allocation11 + $0x350] sm:$0xff]
        %v1875 = vld [vmem:[#allocation11 + $0x358] sm:$0xff]
        %v1876 = vld [vmem:[#allocation11 + $0x360] sm:$0xff]
        %v1877 = vld [vmem:[#allocation11 + $0x368] sm:$0xff]
        %v1878 = vld [vmem:[#allocation11 + $0x370] sm:$0xff]
        %v1879 = vld [vmem:[#allocation11 + $0x378] sm:$0xff]
        %v1880 = vld [vmem:[#allocation11 + $0x380] sm:$0xff]
        %v1881 = vld [vmem:[#allocation11 + $0x388] sm:$0xff]
        %v1882 = vld [vmem:[#allocation11 + $0x390] sm:$0xff]
        %v1883 = vld [vmem:[#allocation11 + $0x398] sm:$0xff]
        %v1884 = vld [vmem:[#allocation11 + $0x3a0] sm:$0xff]
        %v1885 = vld [vmem:[#allocation11 + $0x3a8] sm:$0xff]
        %v1886 = vld [vmem:[#allocation11 + $0x3b0] sm:$0xff]
        %v1887 = vld [vmem:[#allocation11 + $0x3b8] sm:$0xff]
        %v1888 = vld [vmem:[#allocation11 + $0x3c0] sm:$0xff]
        %v1889 = vld [vmem:[#allocation11 + $0x3c8] sm:$0xff]
        %v1890 = vld [vmem:[#allocation11 + $0x3d0] sm:$0xff]
        %v1891 = vld [vmem:[#allocation11 + $0x3d8] sm:$0xff]
        %v1892 = vld [vmem:[#allocation11 + $0x3e0] sm:$0xff]
        %v1893 = vld [vmem:[#allocation11 + $0x3e8] sm:$0xff]
        %v1894 = vld [vmem:[#allocation11 + $0x3f0] sm:$0xff]
        %v1895 = vld [vmem:[#allocation11 + $0x3f8] sm:$0xff]
        %v1896 = vld [vmem:[#allocation11 + $0x400] sm:$0xff]
        %v1897 = vld [vmem:[#allocation11 + $0x408] sm:$0xff]
        %v1898 = vld [vmem:[#allocation11 + $0x410] sm:$0xff]
        %v1899 = vld [vmem:[#allocation11 + $0x418] sm:$0xff]
        %v1900 = vld [vmem:[#allocation11 + $0x420] sm:$0xff]
        %v1901 = vld [vmem:[#allocation11 + $0x428] sm:$0xff]
        %v1902 = vld [vmem:[#allocation11 + $0x430] sm:$0xff]
        %v1903 = vld [vmem:[#allocation11 + $0x438] sm:$0xff]
        %v1904 = vld [vmem:[#allocation11 + $0x440] sm:$0xff]
        %v1905 = vld [vmem:[#allocation11 + $0x448] sm:$0xff]
        %v1906 = vld [vmem:[#allocation11 + $0x450] sm:$0xff]
        %v1907 = vld [vmem:[#allocation11 + $0x458] sm:$0xff]
        %v1908 = vld [vmem:[#allocation11 + $0x460] sm:$0xff]
        %v1909 = vld [vmem:[#allocation11 + $0x468] sm:$0xff]
        %v1910 = vld [vmem:[#allocation11 + $0x470] sm:$0xff]
        %v1911 = vld [vmem:[#allocation11 + $0x478] sm:$0xff]
        %v1912 = vld [vmem:[#allocation11 + $0x480] sm:$0xff]
        %v1913 = vld [vmem:[#allocation11 + $0x488] sm:$0xff]
        %v1914 = vld [vmem:[#allocation11 + $0x490] sm:$0xff]
        %v1915 = vld [vmem:[#allocation11 + $0x498] sm:$0xff]
        %v1916 = vld [vmem:[#allocation11 + $0x4a0] sm:$0xff]
        %v1917 = vld [vmem:[#allocation11 + $0x4a8] sm:$0xff]
        %v1918 = vld [vmem:[#allocation11 + $0x4b0] sm:$0xff]
        %v1919 = vld [vmem:[#allocation11 + $0x4b8] sm:$0xff]
        %v1920 = vld [vmem:[#allocation11 + $0x4c0] sm:$0xff]
        %v1921 = vld [vmem:[#allocation11 + $0x4c8] sm:$0xff]
        %v1922 = vld [vmem:[#allocation11 + $0x4d0] sm:$0xff]
        %v1923 = vld [vmem:[#allocation11 + $0x4d8] sm:$0xff]
        %v1924 = vld [vmem:[#allocation11 + $0x4e0] sm:$0xff]
        %v1925 = vld [vmem:[#allocation11 + $0x4e8] sm:$0xff]
        %v1926 = vld [vmem:[#allocation11 + $0x4f0] sm:$0xff]
        %v1927 = vld [vmem:[#allocation11 + $0x4f8] sm:$0xff]
        %v1928 = vld [vmem:[#allocation11 + $0x500] sm:$0xff]
        %v1929 = vld [vmem:[#allocation11 + $0x508] sm:$0xff]
        %v1930 = vld [vmem:[#allocation11 + $0x510] sm:$0xff]
        %v1931 = vld [vmem:[#allocation11 + $0x518] sm:$0xff]
        %v1932 = vld [vmem:[#allocation11 + $0x520] sm:$0xff]
        %v1933 = vld [vmem:[#allocation11 + $0x528] sm:$0xff]
        %v1934 = vld [vmem:[#allocation11 + $0x530] sm:$0xff]
        %v1935 = vld [vmem:[#allocation11 + $0x538] sm:$0xff]
        %v1936 = vld [vmem:[#allocation11 + $0x540] sm:$0xff]
        %v1937 = vld [vmem:[#allocation11 + $0x548] sm:$0xff]
        %v1938 = vld [vmem:[#allocation11 + $0x550] sm:$0xff]
        %v1939 = vld [vmem:[#allocation11 + $0x558] sm:$0xff]
        %v1940 = vld [vmem:[#allocation11 + $0x560] sm:$0xff]
        %v1941 = vld [vmem:[#allocation11 + $0x568] sm:$0xff]
        %v1942 = vld [vmem:[#allocation11 + $0x570] sm:$0xff]
        %v1943 = vld [vmem:[#allocation11 + $0x578] sm:$0xff]
        %v1944 = vld [vmem:[#allocation11 + $0x580] sm:$0xff]
        %v1945 = vld [vmem:[#allocation11 + $0x588] sm:$0xff]
        %v1946 = vld [vmem:[#allocation11 + $0x590] sm:$0xff]
        %v1947 = vld [vmem:[#allocation11 + $0x598] sm:$0xff]
        %v1948 = vld [vmem:[#allocation11 + $0x5a0] sm:$0xff]
        %v1949 = vld [vmem:[#allocation11 + $0x5a8] sm:$0xff]
        %v1950 = vld [vmem:[#allocation11 + $0x5b0] sm:$0xff]
        %v1951 = vld [vmem:[#allocation11 + $0x5b8] sm:$0xff]
        %v1952 = vld [vmem:[#allocation11 + $0x5c0] sm:$0xff]
        %v1953 = vld [vmem:[#allocation11 + $0x5c8] sm:$0xff]
        %v1954 = vld [vmem:[#allocation11 + $0x5d0] sm:$0xff]
        %v1955 = vld [vmem:[#allocation11 + $0x5d8] sm:$0xff]
        %v1956 = vld [vmem:[#allocation11 + $0x5e0] sm:$0xff]
        %v1957 = vld [vmem:[#allocation11 + $0x5e8] sm:$0xff]
        %v1958 = vld [vmem:[#allocation11 + $0x5f0] sm:$0xff]
        %v1959 = vld [vmem:[#allocation11 + $0x5f8] sm:$0xff]
        %v1960 = vld [vmem:[#allocation11 + $0x600] sm:$0xff]
        %v1961 = vld [vmem:[#allocation11 + $0x608] sm:$0xff]
        %v1962 = vld [vmem:[#allocation11 + $0x610] sm:$0xff]
        %v1963 = vld [vmem:[#allocation11 + $0x618] sm:$0xff]
        %v1964 = vld [vmem:[#allocation11 + $0x620] sm:$0xff]
        %v1965 = vld [vmem:[#allocation11 + $0x628] sm:$0xff]
        %v1966 = vld [vmem:[#allocation11 + $0x630] sm:$0xff]
        %v1967 = vld [vmem:[#allocation11 + $0x638] sm:$0xff]
        %v1968 = vld [vmem:[#allocation11 + $0x640] sm:$0xff]
        %v1969 = vld [vmem:[#allocation11 + $0x648] sm:$0xff]
        %v1970 = vld [vmem:[#allocation11 + $0x650] sm:$0xff]
        %v1971 = vld [vmem:[#allocation11 + $0x658] sm:$0xff]
        %v1972 = vld [vmem:[#allocation11 + $0x660] sm:$0xff]
        %v1973 = vld [vmem:[#allocation11 + $0x668] sm:$0xff]
        %v1974 = vld [vmem:[#allocation11 + $0x670] sm:$0xff]
        %v1975 = vld [vmem:[#allocation11 + $0x678] sm:$0xff]
        %v1976 = vld [vmem:[#allocation11 + $0x680] sm:$0xff]
        %v1977 = vld [vmem:[#allocation11 + $0x688] sm:$0xff]
        %v1978 = vld [vmem:[#allocation11 + $0x690] sm:$0xff]
        %v1979 = vld [vmem:[#allocation11 + $0x698] sm:$0xff]
        %v1980 = vld [vmem:[#allocation11 + $0x6a0] sm:$0xff]
        %v1981 = vld [vmem:[#allocation11 + $0x6a8] sm:$0xff]
        %v1982 = vld [vmem:[#allocation11 + $0x6b0] sm:$0xff]
        %v1983 = vld [vmem:[#allocation11 + $0x6b8] sm:$0xff]
        %v1984 = vld [vmem:[#allocation11 + $0x6c0] sm:$0xff]
        %v1985 = vld [vmem:[#allocation11 + $0x6c8] sm:$0xff]
        %v1986 = vld [vmem:[#allocation11 + $0x6d0] sm:$0xff]
        %v1987 = vld [vmem:[#allocation11 + $0x6d8] sm:$0xff]
        %v1988 = vld [vmem:[#allocation11 + $0x6e0] sm:$0xff]
        %v1989 = vld [vmem:[#allocation11 + $0x6e8] sm:$0xff]
        %v1990 = vld [vmem:[#allocation11 + $0x6f0] sm:$0xff]
        %v1991 = vld [vmem:[#allocation11 + $0x6f8] sm:$0xff]
        %v1992 = vld [vmem:[#allocation11 + $0x700] sm:$0xff]
        %v1993 = vld [vmem:[#allocation11 + $0x708] sm:$0xff]
        %v1994 = vld [vmem:[#allocation11 + $0x710] sm:$0xff]
        %v1995 = vld [vmem:[#allocation11 + $0x718] sm:$0xff]
        %v1996 = vld [vmem:[#allocation11 + $0x720] sm:$0xff]
        %v1997 = vld [vmem:[#allocation11 + $0x728] sm:$0xff]
        %v1998 = vld [vmem:[#allocation11 + $0x730] sm:$0xff]
        %v1999 = vld [vmem:[#allocation11 + $0x738] sm:$0xff]
        %v2000 = vld [vmem:[#allocation11 + $0x740] sm:$0xff]
        %v2001 = vld [vmem:[#allocation11 + $0x748] sm:$0xff]
        %v2002 = vld [vmem:[#allocation11 + $0x750] sm:$0xff]
        %v2003 = vld [vmem:[#allocation11 + $0x758] sm:$0xff]
        %v2004 = vld [vmem:[#allocation11 + $0x760] sm:$0xff]
        %v2005 = vld [vmem:[#allocation11 + $0x768] sm:$0xff]
        %v2006 = vld [vmem:[#allocation11 + $0x770] sm:$0xff]
        %v2007 = vld [vmem:[#allocation11 + $0x778] sm:$0xff]
        %v2008 = vld [vmem:[#allocation11 + $0x780] sm:$0xff]
        %v2009 = vld [vmem:[#allocation11 + $0x788] sm:$0xff]
        %v2010 = vld [vmem:[#allocation11 + $0x790] sm:$0xff]
        %v2011 = vld [vmem:[#allocation11 + $0x798] sm:$0xff]
        %v2012 = vld [vmem:[#allocation11 + $0x7a0] sm:$0xff]
        %v2013 = vld [vmem:[#allocation11 + $0x7a8] sm:$0xff]
        %v2014 = vld [vmem:[#allocation11 + $0x7b0] sm:$0xff]
        %v2015 = vld [vmem:[#allocation11 + $0x7b8] sm:$0xff]
        %v2016 = vld [vmem:[#allocation11 + $0x7c0] sm:$0xff]
        %v2017 = vld [vmem:[#allocation11 + $0x7c8] sm:$0xff]
        %v2018 = vld [vmem:[#allocation11 + $0x7d0] sm:$0xff]
        %v2019 = vld [vmem:[#allocation11 + $0x7d8] sm:$0xff]
        %v2020 = vld [vmem:[#allocation11 + $0x7e0] sm:$0xff]
        %v2021 = vld [vmem:[#allocation11 + $0x7e8] sm:$0xff]
        %v2022 = vld [vmem:[#allocation11 + $0x7f0] sm:$0xff]
        %v2023 = vld [vmem:[#allocation11 + $0x7f8] sm:$0xff]
        %v2024 = vld [vmem:[#allocation11 + $0x800] sm:$0xff]
        %v2025 = vld [vmem:[#allocation11 + $0x808] sm:$0xff]
        %v2026 = vld [vmem:[#allocation11 + $0x810] sm:$0xff]
        %v2027 = vld [vmem:[#allocation11 + $0x818] sm:$0xff]
        %v2028 = vld [vmem:[#allocation11 + $0x820] sm:$0xff]
        %v2029 = vld [vmem:[#allocation11 + $0x828] sm:$0xff]
        %v2030 = vld [vmem:[#allocation11 + $0x830] sm:$0xff]
        %v2031 = vld [vmem:[#allocation11 + $0x838] sm:$0xff]
        %v2032 = vld [vmem:[#allocation11 + $0x840] sm:$0xff]
        %v2033 = vld [vmem:[#allocation11 + $0x848] sm:$0xff]
        %v2034 = vld [vmem:[#allocation11 + $0x850] sm:$0xff]
        %v2035 = vld [vmem:[#allocation11 + $0x858] sm:$0xff]
        %v2036 = vld [vmem:[#allocation11 + $0x860] sm:$0xff]
        %v2037 = vld [vmem:[#allocation11 + $0x868] sm:$0xff]
        %v2038 = vld [vmem:[#allocation11 + $0x870] sm:$0xff]
        %v2039 = vld [vmem:[#allocation11 + $0x878] sm:$0xff]
        %v2040 = vld [vmem:[#allocation11 + $0x880] sm:$0xff]
        %v2041 = vld [vmem:[#allocation11 + $0x888] sm:$0xff]
        %v2042 = vld [vmem:[#allocation11 + $0x890] sm:$0xff]
        %v2043 = vld [vmem:[#allocation11 + $0x898] sm:$0xff]
        %v2044 = vld [vmem:[#allocation11 + $0x8a0] sm:$0xff]
        %v2045 = vld [vmem:[#allocation11 + $0x8a8] sm:$0xff]
        %v2046 = vld [vmem:[#allocation11 + $0x8b0] sm:$0xff]
        %v2047 = vld [vmem:[#allocation11 + $0x8b8] sm:$0xff]
        %v2048 = vld [vmem:[#allocation11 + $0x8c0] sm:$0xff]
        %v2049 = vld [vmem:[#allocation11 + $0x8c8] sm:$0xff]
        %v2050 = vld [vmem:[#allocation11 + $0x8d0] sm:$0xff]
        %v2051 = vld [vmem:[#allocation11 + $0x8d8] sm:$0xff]
        %v2052 = vld [vmem:[#allocation11 + $0x8e0] sm:$0xff]
        %v2053 = vld [vmem:[#allocation11 + $0x8e8] sm:$0xff]
        %v2054 = vld [vmem:[#allocation11 + $0x8f0] sm:$0xff]
        %v2055 = vld [vmem:[#allocation11 + $0x8f8] sm:$0xff]
        %v2056 = vld [vmem:[#allocation11 + $0x900] sm:$0xff]
        %v2057 = vld [vmem:[#allocation11 + $0x908] sm:$0xff]
        %v2058 = vld [vmem:[#allocation11 + $0x910] sm:$0xff]
        %v2059 = vld [vmem:[#allocation11 + $0x918] sm:$0xff]
        %v2060 = vld [vmem:[#allocation11 + $0x920] sm:$0xff]
        %v2061 = vld [vmem:[#allocation11 + $0x928] sm:$0xff]
        %v2062 = vld [vmem:[#allocation11 + $0x930] sm:$0xff]
        %v2063 = vld [vmem:[#allocation11 + $0x938] sm:$0xff]
        %v2064 = vld [vmem:[#allocation11 + $0x940] sm:$0xff]
        %v2065 = vld [vmem:[#allocation11 + $0x948] sm:$0xff]
        %v2066 = vld [vmem:[#allocation11 + $0x950] sm:$0xff]
        %v2067 = vld [vmem:[#allocation11 + $0x958] sm:$0xff]
        %v2068 = vld [vmem:[#allocation11 + $0x960] sm:$0xff]
        %v2069 = vld [vmem:[#allocation11 + $0x968] sm:$0xff]
        %v2070 = vld [vmem:[#allocation11 + $0x970] sm:$0xff]
        %v2071 = vld [vmem:[#allocation11 + $0x978] sm:$0xff]
        %v2072 = vld [vmem:[#allocation11 + $0x980] sm:$0xff]
        %v2073 = vld [vmem:[#allocation11 + $0x988] sm:$0xff]
        %v2074 = vld [vmem:[#allocation11 + $0x990] sm:$0xff]
        %v2075 = vld [vmem:[#allocation11 + $0x998] sm:$0xff]
        %v2076 = vld [vmem:[#allocation11 + $0x9a0] sm:$0xff]
        %v2077 = vld [vmem:[#allocation11 + $0x9a8] sm:$0xff]
        %v2078 = vld [vmem:[#allocation11 + $0x9b0] sm:$0xff]
        %v2079 = vld [vmem:[#allocation11 + $0x9b8] sm:$0xff]
        %v2080 = vld [vmem:[#allocation11 + $0x9c0] sm:$0xff]
        %v2081 = vld [vmem:[#allocation11 + $0x9c8] sm:$0xff]
        %v2082 = vld [vmem:[#allocation11 + $0x9d0] sm:$0xff]
        %v2083 = vld [vmem:[#allocation11 + $0x9d8] sm:$0xff]
        %v2084 = vld [vmem:[#allocation11 + $0x9e0] sm:$0xff]
        %v2085 = vld [vmem:[#allocation11 + $0x9e8] sm:$0xff]
        %v2086 = vld [vmem:[#allocation11 + $0x9f0] sm:$0xff]
        %v2087 = vld [vmem:[#allocation11 + $0x9f8] sm:$0xff]
        %v2088 = vld [vmem:[#allocation11 + $0xa00] sm:$0xff]
        %v2089 = vld [vmem:[#allocation11 + $0xa08] sm:$0xff]
        %v2090 = vld [vmem:[#allocation11 + $0xa10] sm:$0xff]
        %v2091 = vld [vmem:[#allocation11 + $0xa18] sm:$0xff]
        %v2092 = vld [vmem:[#allocation11 + $0xa20] sm:$0xff]
        %v2093 = vld [vmem:[#allocation11 + $0xa28] sm:$0xff]
        %v2094 = vld [vmem:[#allocation11 + $0xa30] sm:$0xff]
        %v2095 = vld [vmem:[#allocation11 + $0xa38] sm:$0xff]
        %v2096 = vld [vmem:[#allocation11 + $0xa40] sm:$0xff]
        %v2097 = vld [vmem:[#allocation11 + $0xa48] sm:$0xff]
        %v2098 = vld [vmem:[#allocation11 + $0xa50] sm:$0xff]
        %v2099 = vld [vmem:[#allocation11 + $0xa58] sm:$0xff]
        %v2100 = vld [vmem:[#allocation11 + $0xa60] sm:$0xff]
        %v2101 = vld [vmem:[#allocation11 + $0xa68] sm:$0xff]
        %v2102 = vld [vmem:[#allocation11 + $0xa70] sm:$0xff]
        %v2103 = vld [vmem:[#allocation11 + $0xa78] sm:$0xff]
        %v2104 = vld [vmem:[#allocation11 + $0xa80] sm:$0xff]
        %v2105 = vld [vmem:[#allocation11 + $0xa88] sm:$0xff]
        %v2106 = vld [vmem:[#allocation11 + $0xa90] sm:$0xff]
        %v2107 = vld [vmem:[#allocation11 + $0xa98] sm:$0xff]
        %v2108 = vld [vmem:[#allocation11 + $0xaa0] sm:$0xff]
        %v2109 = vld [vmem:[#allocation11 + $0xaa8] sm:$0xff]
        %v2110 = vld [vmem:[#allocation11 + $0xab0] sm:$0xff]
        %v2111 = vld [vmem:[#allocation11 + $0xab8] sm:$0xff]
        %v2112 = vld [vmem:[#allocation11 + $0xac0] sm:$0xff]
        %v2113 = vld [vmem:[#allocation11 + $0xac8] sm:$0xff]
        %v2114 = vld [vmem:[#allocation11 + $0xad0] sm:$0xff]
        %v2115 = vld [vmem:[#allocation11 + $0xad8] sm:$0xff]
        %v2116 = vld [vmem:[#allocation11 + $0xae0] sm:$0xff]
        %v2117 = vld [vmem:[#allocation11 + $0xae8] sm:$0xff]
        %v2118 = vld [vmem:[#allocation11 + $0xaf0] sm:$0xff]
        %v2119 = vld [vmem:[#allocation11 + $0xaf8] sm:$0xff]
        %v2120 = vld [vmem:[#allocation11 + $0xb00] sm:$0xff]
        %v2121 = vld [vmem:[#allocation11 + $0xb08] sm:$0xff]
        %v2122 = vld [vmem:[#allocation11 + $0xb10] sm:$0xff]
        %v2123 = vld [vmem:[#allocation11 + $0xb18] sm:$0xff]
        %v2124 = vld [vmem:[#allocation11 + $0xb20] sm:$0xff]
        %v2125 = vld [vmem:[#allocation11 + $0xb28] sm:$0xff]
        %v2126 = vld [vmem:[#allocation11 + $0xb30] sm:$0xff]
        %v2127 = vld [vmem:[#allocation11 + $0xb38] sm:$0xff]
        %v2128 = vld [vmem:[#allocation11 + $0xb40] sm:$0xff]
        %v2129 = vld [vmem:[#allocation11 + $0xb48] sm:$0xff]
        %v2130 = vld [vmem:[#allocation11 + $0xb50] sm:$0xff]
        %v2131 = vld [vmem:[#allocation11 + $0xb58] sm:$0xff]
        %v2132 = vld [vmem:[#allocation11 + $0xb60] sm:$0xff]
        %v2133 = vld [vmem:[#allocation11 + $0xb68] sm:$0xff]
        %v2134 = vld [vmem:[#allocation11 + $0xb70] sm:$0xff]
        %v2135 = vld [vmem:[#allocation11 + $0xb78] sm:$0xff]
        %v2136 = vld [vmem:[#allocation11 + $0xb80] sm:$0xff]
        %v2137 = vld [vmem:[#allocation11 + $0xb88] sm:$0xff]
        %v2138 = vld [vmem:[#allocation11 + $0xb90] sm:$0xff]
        %v2139 = vld [vmem:[#allocation11 + $0xb98] sm:$0xff]
        %v2140 = vld [vmem:[#allocation11 + $0xba0] sm:$0xff]
        %v2141 = vld [vmem:[#allocation11 + $0xba8] sm:$0xff]
        %v2142 = vld [vmem:[#allocation11 + $0xbb0] sm:$0xff]
        %v2143 = vld [vmem:[#allocation11 + $0xbb8] sm:$0xff]
        %v2144 = vld [vmem:[#allocation11 + $0xbc0] sm:$0xff]
        %v2145 = vld [vmem:[#allocation11 + $0xbc8] sm:$0xff]
        %v2146 = vld [vmem:[#allocation11 + $0xbd0] sm:$0xff]
        %v2147 = vld [vmem:[#allocation11 + $0xbd8] sm:$0xff]
        %v2148 = vld [vmem:[#allocation11 + $0xbe0] sm:$0xff]
        %v2149 = vld [vmem:[#allocation11 + $0xbe8] sm:$0xff]
        %v2150 = vld [vmem:[#allocation11 + $0xbf0] sm:$0xff]
        %v2151 = vld [vmem:[#allocation11 + $0xbf8] sm:$0xff]
        %v2152 = vld [vmem:[#allocation11 + $0xc00] sm:$0xff]
        %v2153 = vld [vmem:[#allocation11 + $0xc08] sm:$0xff]
        %v2154 = vld [vmem:[#allocation11 + $0xc10] sm:$0xff]
        %v2155 = vld [vmem:[#allocation11 + $0xc18] sm:$0xff]
        %v2156 = vld [vmem:[#allocation11 + $0xc20] sm:$0xff]
        %v2157 = vld [vmem:[#allocation11 + $0xc28] sm:$0xff]
        %v2158 = vld [vmem:[#allocation11 + $0xc30] sm:$0xff]
        %v2159 = vld [vmem:[#allocation11 + $0xc38] sm:$0xff]
        %v2160 = vld [vmem:[#allocation11 + $0xc40] sm:$0xff]
        %v2161 = vld [vmem:[#allocation11 + $0xc48] sm:$0xff]
        %v2162 = vld [vmem:[#allocation11 + $0xc50] sm:$0xff]
        %v2163 = vld [vmem:[#allocation11 + $0xc58] sm:$0xff]
        %v2164 = vld [vmem:[#allocation11 + $0xc60] sm:$0xff]
        %v2165 = vld [vmem:[#allocation11 + $0xc68] sm:$0xff]
        %v2166 = vld [vmem:[#allocation11 + $0xc70] sm:$0xff]
        %v2167 = vld [vmem:[#allocation11 + $0xc78] sm:$0xff]
        %v2168 = vld [vmem:[#allocation11 + $0xc80] sm:$0xff]
        %v2169 = vld [vmem:[#allocation11 + $0xc88] sm:$0xff]
        %v2170 = vld [vmem:[#allocation11 + $0xc90] sm:$0xff]
        %v2171 = vld [vmem:[#allocation11 + $0xc98] sm:$0xff]
        %v2172 = vld [vmem:[#allocation11 + $0xca0] sm:$0xff]
        %v2173 = vld [vmem:[#allocation11 + $0xca8] sm:$0xff]
        %v2174 = vld [vmem:[#allocation11 + $0xcb0] sm:$0xff]
        %v2175 = vld [vmem:[#allocation11 + $0xcb8] sm:$0xff]
        %v2176 = vld [vmem:[#allocation11 + $0xcc0] sm:$0xff]
        %v2177 = vld [vmem:[#allocation11 + $0xcc8] sm:$0xff]
        %v2178 = vld [vmem:[#allocation11 + $0xcd0] sm:$0xff]
        %v2179 = vld [vmem:[#allocation11 + $0xcd8] sm:$0xff]
        %v2180 = vld [vmem:[#allocation11 + $0xce0] sm:$0xff]
        %v2181 = vld [vmem:[#allocation11 + $0xce8] sm:$0xff]
        %v2182 = vld [vmem:[#allocation11 + $0xcf0] sm:$0xff]
        %v2183 = vld [vmem:[#allocation11 + $0xcf8] sm:$0xff]
        %v2184 = vld [vmem:[#allocation11 + $0xd00] sm:$0xff]
        %v2185 = vld [vmem:[#allocation11 + $0xd08] sm:$0xff]
        %v2186 = vld [vmem:[#allocation11 + $0xd10] sm:$0xff]
        %v2187 = vld [vmem:[#allocation11 + $0xd18] sm:$0xff]
        %v2188 = vld [vmem:[#allocation11 + $0xd20] sm:$0xff]
        %v2189 = vld [vmem:[#allocation11 + $0xd28] sm:$0xff]
        %v2190 = vld [vmem:[#allocation11 + $0xd30] sm:$0xff]
        %v2191 = vld [vmem:[#allocation11 + $0xd38] sm:$0xff]
        %v2192 = vld [vmem:[#allocation11 + $0xd40] sm:$0xff]
        %v2193 = vld [vmem:[#allocation11 + $0xd48] sm:$0xff]
        %v2194 = vld [vmem:[#allocation11 + $0xd50] sm:$0xff]
        %v2195 = vld [vmem:[#allocation11 + $0xd58] sm:$0xff]
        %v2196 = vld [vmem:[#allocation11 + $0xd60] sm:$0xff]
        %v2197 = vld [vmem:[#allocation11 + $0xd68] sm:$0xff]
        %v2198 = vld [vmem:[#allocation11 + $0xd70] sm:$0xff]
        %v2199 = vld [vmem:[#allocation11 + $0xd78] sm:$0xff]
        %v2200 = vld [vmem:[#allocation11 + $0xd80] sm:$0xff]
        %v2201 = vld [vmem:[#allocation11 + $0xd88] sm:$0xff]
        %v2202 = vld [vmem:[#allocation11 + $0xd90] sm:$0xff]
        %v2203 = vld [vmem:[#allocation11 + $0xd98] sm:$0xff]
        %v2204 = vld [vmem:[#allocation11 + $0xda0] sm:$0xff]
        %v2205 = vld [vmem:[#allocation11 + $0xda8] sm:$0xff]
        %v2206 = vld [vmem:[#allocation11 + $0xdb0] sm:$0xff]
        %v2207 = vld [vmem:[#allocation11 + $0xdb8] sm:$0xff]
        %v2208 = vld [vmem:[#allocation11 + $0xdc0] sm:$0xff]
        %v2209 = vld [vmem:[#allocation11 + $0xdc8] sm:$0xff]
        %v2210 = vld [vmem:[#allocation11 + $0xdd0] sm:$0xff]
        %v2211 = vld [vmem:[#allocation11 + $0xdd8] sm:$0xff]
        %v2212 = vld [vmem:[#allocation11 + $0xde0] sm:$0xff]
        %v2213 = vld [vmem:[#allocation11 + $0xde8] sm:$0xff]
        %v2214 = vld [vmem:[#allocation11 + $0xdf0] sm:$0xff]
        %v2215 = vld [vmem:[#allocation11 + $0xdf8] sm:$0xff]
        %v2216 = vld [vmem:[#allocation11 + $0xe00] sm:$0xff]
        %v2217 = vld [vmem:[#allocation11 + $0xe08] sm:$0xff]
        %v2218 = vld [vmem:[#allocation11 + $0xe10] sm:$0xff]
        %v2219 = vld [vmem:[#allocation11 + $0xe18] sm:$0xff]
        %v2220 = vld [vmem:[#allocation11 + $0xe20] sm:$0xff]
        %v2221 = vld [vmem:[#allocation11 + $0xe28] sm:$0xff]
        %v2222 = vld [vmem:[#allocation11 + $0xe30] sm:$0xff]
        %v2223 = vld [vmem:[#allocation11 + $0xe38] sm:$0xff]
        %v2224 = vld [vmem:[#allocation11 + $0xe40] sm:$0xff]
        %v2225 = vld [vmem:[#allocation11 + $0xe48] sm:$0xff]
        %v2226 = vld [vmem:[#allocation11 + $0xe50] sm:$0xff]
        %v2227 = vld [vmem:[#allocation11 + $0xe58] sm:$0xff]
        %v2228 = vld [vmem:[#allocation11 + $0xe60] sm:$0xff]
        %v2229 = vld [vmem:[#allocation11 + $0xe68] sm:$0xff]
        %v2230 = vld [vmem:[#allocation11 + $0xe70] sm:$0xff]
        %v2231 = vld [vmem:[#allocation11 + $0xe78] sm:$0xff]
        %v2232 = vld [vmem:[#allocation11 + $0xe80] sm:$0xff]
        %v2233 = vld [vmem:[#allocation11 + $0xe88] sm:$0xff]
        %v2234 = vld [vmem:[#allocation11 + $0xe90] sm:$0xff]
        %v2235 = vld [vmem:[#allocation11 + $0xe98] sm:$0xff]
        %v2236 = vld [vmem:[#allocation11 + $0xea0] sm:$0xff]
        %v2237 = vld [vmem:[#allocation11 + $0xea8] sm:$0xff]
        %v2238 = vld [vmem:[#allocation11 + $0xeb0] sm:$0xff]
        %v2239 = vld [vmem:[#allocation11 + $0xeb8] sm:$0xff]
        %v2240 = vld [vmem:[#allocation11 + $0xec0] sm:$0xff]
        %v2241 = vld [vmem:[#allocation11 + $0xec8] sm:$0xff]
        %v2242 = vld [vmem:[#allocation11 + $0xed0] sm:$0xff]
        %v2243 = vld [vmem:[#allocation11 + $0xed8] sm:$0xff]
        %v2244 = vld [vmem:[#allocation11 + $0xee0] sm:$0xff]
        %v2245 = vld [vmem:[#allocation11 + $0xee8] sm:$0xff]
        %v2246 = vld [vmem:[#allocation11 + $0xef0] sm:$0xff]
        %v2247 = vld [vmem:[#allocation11 + $0xef8] sm:$0xff]
        %v2248 = vld [vmem:[#allocation11 + $0xf00] sm:$0xff]
        %v2249 = vld [vmem:[#allocation11 + $0xf08] sm:$0xff]
        %v2250 = vld [vmem:[#allocation11 + $0xf10] sm:$0xff]
        %v2251 = vld [vmem:[#allocation11 + $0xf18] sm:$0xff]
        %v2252 = vld [vmem:[#allocation11 + $0xf20] sm:$0xff]
        %v2253 = vld [vmem:[#allocation11 + $0xf28] sm:$0xff]
        %v2254 = vld [vmem:[#allocation11 + $0xf30] sm:$0xff]
        %v2255 = vld [vmem:[#allocation11 + $0xf38] sm:$0xff]
        %v2256 = vld [vmem:[#allocation11 + $0xf40] sm:$0xff]
        %v2257 = vld [vmem:[#allocation11 + $0xf48] sm:$0xff]
        %v2258 = vld [vmem:[#allocation11 + $0xf50] sm:$0xff]
        %v2259 = vld [vmem:[#allocation11 + $0xf58] sm:$0xff]
        %v2260 = vld [vmem:[#allocation11 + $0xf60] sm:$0xff]
        %v2261 = vld [vmem:[#allocation11 + $0xf68] sm:$0xff]
        %v2262 = vld [vmem:[#allocation11 + $0xf70] sm:$0xff]
        %v2263 = vld [vmem:[#allocation11 + $0xf78] sm:$0xff]
        %v2264 = vld [vmem:[#allocation11 + $0xf80] sm:$0xff]
        %v2265 = vld [vmem:[#allocation11 + $0xf88] sm:$0xff]
        %v2266 = vld [vmem:[#allocation11 + $0xf90] sm:$0xff]
        %v2267 = vld [vmem:[#allocation11 + $0xf98] sm:$0xff]
        %v2268 = vld [vmem:[#allocation11 + $0xfa0] sm:$0xff]
        %v2269 = vld [vmem:[#allocation11 + $0xfa8] sm:$0xff]
        %v2270 = vld [vmem:[#allocation11 + $0xfb0] sm:$0xff]
        %v2271 = vld [vmem:[#allocation11 + $0xfb8] sm:$0xff]
        %v2272 = vld [vmem:[#allocation11 + $0xfc0] sm:$0xff]
        %v2273 = vld [vmem:[#allocation11 + $0xfc8] sm:$0xff]
        %v2274 = vld [vmem:[#allocation11 + $0xfd0] sm:$0xff]
        %v2275 = vld [vmem:[#allocation11 + $0xfd8] sm:$0xff]
        %v2276 = vld [vmem:[#allocation11 + $0xfe0] sm:$0xff]
        %v2277 = vld [vmem:[#allocation11 + $0xfe8] sm:$0xff]
        %v2278 = vld [vmem:[#allocation11 + $0xff0] sm:$0xff]
        %v2279 = vld [vmem:[#allocation11 + $0xff8] sm:$0xff]
        %v2280 = vld [vmem:[#allocation13] sm:$0xf]
        %v2282 = vlaneseq
        %v2283 = vshrl.u32 %v2282, 7
        %v2284 = vsub.s32 0, %v2283
        %v2285 = vrot.slane %v2280, %v2284
        %v2286 = vlaneseq
        %v2287 = vshrl.u32 %v2286, 7
        %v2288 = vsub.s32 1, %v2287
        %v2289 = vrot.slane %v2280, %v2288
        %v2290 = vlaneseq
        %v2291 = vshrl.u32 %v2290, 7
        %v2292 = vsub.s32 2, %v2291
        %v2293 = vrot.slane %v2280, %v2292
        %v2294 = vlaneseq
        %v2295 = vshrl.u32 %v2294, 7
        %v2296 = vsub.s32 3, %v2295
        %v2297 = vrot.slane %v2280, %v2296
        %2302 = vmatprep.subr.mxu0 %v1769
        %2303 = vmatpush1.msra.mxu0 %v1768
        %2304 = vmatprep.subr.mxu0 %v1773
        %2305 = vmatpush1.msra.mxu0 %v1772
        %2306 = vmatprep.subr.mxu0 %v1777
        %2307 = vmatpush1.msra.mxu0 %v1776
        %2308 = vmatprep.subr.mxu0 %v1781
        %2309 = vmatpush1.msra.mxu0 %v1780
        %2310 = vmatprep.subr.mxu0 %v1785
        %2311 = vmatpush1.msra.mxu0 %v1784
        %2312 = vmatprep.subr.mxu0 %v1789
        %2313 = vmatpush1.msra.mxu0 %v1788
        %2314 = vmatprep.subr.mxu0 %v1793
        %2315 = vmatpush1.msra.mxu0 %v1792
        %2316 = vmatprep.subr.mxu0 %v1797
        %2317 = vmatpush1.msra.mxu0 %v1796
        %2318 = vmatprep.subr.mxu0 %v1801
        %2319 = vmatpush1.msra.mxu0 %v1800
        %2320 = vmatprep.subr.mxu0 %v1805
        %2321 = vmatpush1.msra.mxu0 %v1804
        %2322 = vmatprep.subr.mxu0 %v1809
        %2323 = vmatpush1.msra.mxu0 %v1808
        %2324 = vmatprep.subr.mxu0 %v1813
        %2325 = vmatpush1.msra.mxu0 %v1812
        %2326 = vmatprep.subr.mxu0 %v1817
        %2327 = vmatpush1.msra.mxu0 %v1816
        %2328 = vmatprep.subr.mxu0 %v1821
        %2329 = vmatpush1.msra.mxu0 %v1820
        %2330 = vmatprep.subr.mxu0 %v1825
        %2331 = vmatpush1.msra.mxu0 %v1824
        %2332 = vmatprep.subr.mxu0 %v1829
        %2333 = vmatpush1.msra.mxu0 %v1828
        %2334 = vmatprep.subr.mxu0 %v1833
        %2335 = vmatpush1.msra.mxu0 %v1832
        %2336 = vmatprep.subr.mxu0 %v1837
        %2337 = vmatpush1.msra.mxu0 %v1836
        %2338 = vmatprep.subr.mxu0 %v1841
        %2339 = vmatpush1.msra.mxu0 %v1840
        %2340 = vmatprep.subr.mxu0 %v1845
        %2341 = vmatpush1.msra.mxu0 %v1844
        %2342 = vmatprep.subr.mxu0 %v1849
        %2343 = vmatpush1.msra.mxu0 %v1848
        %2344 = vmatprep.subr.mxu0 %v1853
        %2345 = vmatpush1.msra.mxu0 %v1852
        %2346 = vmatprep.subr.mxu0 %v1857
        %2347 = vmatpush1.msra.mxu0 %v1856
        %2348 = vmatprep.subr.mxu0 %v1861
        %2349 = vmatpush1.msra.mxu0 %v1860
        %2350 = vmatprep.subr.mxu0 %v1865
        %2351 = vmatpush1.msra.mxu0 %v1864
        %2352 = vmatprep.subr.mxu0 %v1869
        %2353 = vmatpush1.msra.mxu0 %v1868
        %2354 = vmatprep.subr.mxu0 %v1873
        %2355 = vmatpush1.msra.mxu0 %v1872
        %2356 = vmatprep.subr.mxu0 %v1877
        %2357 = vmatpush1.msra.mxu0 %v1876
        %2358 = vmatprep.subr.mxu0 %v1881
        %2359 = vmatpush1.msra.mxu0 %v1880
        %2360 = vmatprep.subr.mxu0 %v1885
        %2361 = vmatpush1.msra.mxu0 %v1884
        %2362 = vmatprep.subr.mxu0 %v1889
        %2363 = vmatpush1.msra.mxu0 %v1888
        %2364 = vmatprep.subr.mxu0 %v1893
        %2365 = vmatpush1.msra.mxu0 %v1892
        %2366 = vmatprep.mubr.f32.mxu0 %v1761
        %2367 = vmatmul.mubr.f32.gmra.mrb[0].mxu0 %v1760
        %v2368 = vpop.f32.mrb[0].mxu0
        %v2369 = vadd.f32 %v2285, %v2368
        %v2370 = vpop.f32.mrb[0].mxu0
        %v2371 = vadd.f32 %v2289, %v2370
        %2372 = vdwg.mxu0
        %2373 = vmatprep.subr.mxu0 %v1897
        %2374 = vmatpush1.msra.mxu0 %v1896
        %2375 = vmatprep.subr.mxu0 %v1901
        %2376 = vmatpush1.msra.mxu0 %v1900
        %2377 = vmatprep.subr.mxu0 %v1905
        %2378 = vmatpush1.msra.mxu0 %v1904
        %2379 = vmatprep.subr.mxu0 %v1909
        %2380 = vmatpush1.msra.mxu0 %v1908
        %2381 = vmatprep.subr.mxu0 %v1913
        %2382 = vmatpush1.msra.mxu0 %v1912
        %2383 = vmatprep.subr.mxu0 %v1917
        %2384 = vmatpush1.msra.mxu0 %v1916
        %2385 = vmatprep.subr.mxu0 %v1921
        %2386 = vmatpush1.msra.mxu0 %v1920
        %2387 = vmatprep.subr.mxu0 %v1925
        %2388 = vmatpush1.msra.mxu0 %v1924
        %2389 = vmatprep.subr.mxu0 %v1929
        %2390 = vmatpush1.msra.mxu0 %v1928
        %2391 = vmatprep.subr.mxu0 %v1933
        %2392 = vmatpush1.msra.mxu0 %v1932
        %2393 = vmatprep.subr.mxu0 %v1937
        %2394 = vmatpush1.msra.mxu0 %v1936
        %2395 = vmatprep.subr.mxu0 %v1941
        %2396 = vmatpush1.msra.mxu0 %v1940
        %2397 = vmatprep.subr.mxu0 %v1945
        %2398 = vmatpush1.msra.mxu0 %v1944
        %2399 = vmatprep.subr.mxu0 %v1949
        %2400 = vmatpush1.msra.mxu0 %v1948
        %2401 = vmatprep.subr.mxu0 %v1953
        %2402 = vmatpush1.msra.mxu0 %v1952
        %2403 = vmatprep.subr.mxu0 %v1957
        %2404 = vmatpush1.msra.mxu0 %v1956
        %2405 = vmatprep.subr.mxu0 %v1961
        %2406 = vmatpush1.msra.mxu0 %v1960
        %2407 = vmatprep.subr.mxu0 %v1965
        %2408 = vmatpush1.msra.mxu0 %v1964
        %2409 = vmatprep.subr.mxu0 %v1969
        %2410 = vmatpush1.msra.mxu0 %v1968
        %2411 = vmatprep.subr.mxu0 %v1973
        %2412 = vmatpush1.msra.mxu0 %v1972
        %2413 = vmatprep.subr.mxu0 %v1977
        %2414 = vmatpush1.msra.mxu0 %v1976
        %2415 = vmatprep.subr.mxu0 %v1981
        %2416 = vmatpush1.msra.mxu0 %v1980
        %2417 = vmatprep.subr.mxu0 %v1985
        %2418 = vmatpush1.msra.mxu0 %v1984
        %2419 = vmatprep.subr.mxu0 %v1989
        %2420 = vmatpush1.msra.mxu0 %v1988
        %2421 = vmatprep.subr.mxu0 %v1993
        %2422 = vmatpush1.msra.mxu0 %v1992
        %2423 = vmatprep.subr.mxu0 %v1997
        %2424 = vmatpush1.msra.mxu0 %v1996
        %2425 = vmatprep.subr.mxu0 %v2001
        %2426 = vmatpush1.msra.mxu0 %v2000
        %2427 = vmatprep.subr.mxu0 %v2005
        %2428 = vmatpush1.msra.mxu0 %v2004
        %2429 = vmatprep.subr.mxu0 %v2009
        %2430 = vmatpush1.msra.mxu0 %v2008
        %2431 = vmatprep.subr.mxu0 %v2013
        %2432 = vmatpush1.msra.mxu0 %v2012
        %2433 = vmatprep.subr.mxu0 %v2017
        %2434 = vmatpush1.msra.mxu0 %v2016
        %2435 = vmatprep.subr.mxu0 %v2021
        %2436 = vmatpush1.msra.mxu0 %v2020
        %2437 = vmatprep.mubr.f32.mxu0 %v1763
        %2438 = vmatmul.mubr.f32.gmra.mrb[0].mxu0 %v1762
        %v2439 = vpop.f32.mrb[0].mxu0
        %v2440 = vadd.f32 %v2369, %v2439
        %v2441 = vpop.f32.mrb[0].mxu0
        %v2442 = vadd.f32 %v2371, %v2441
        %2443 = vdwg.mxu0
        %2444 = vmatprep.subr.mxu0 %v2025
        %2445 = vmatpush1.msra.mxu0 %v2024
        %2446 = vmatprep.subr.mxu0 %v2029
        %2447 = vmatpush1.msra.mxu0 %v2028
        %2448 = vmatprep.subr.mxu0 %v2033
        %2449 = vmatpush1.msra.mxu0 %v2032
        %2450 = vmatprep.subr.mxu0 %v2037
        %2451 = vmatpush1.msra.mxu0 %v2036
        %2452 = vmatprep.subr.mxu0 %v2041
        %2453 = vmatpush1.msra.mxu0 %v2040
        %2454 = vmatprep.subr.mxu0 %v2045
        %2455 = vmatpush1.msra.mxu0 %v2044
        %2456 = vmatprep.subr.mxu0 %v2049
        %2457 = vmatpush1.msra.mxu0 %v2048
        %2458 = vmatprep.subr.mxu0 %v2053
        %2459 = vmatpush1.msra.mxu0 %v2052
        %2460 = vmatprep.subr.mxu0 %v2057
        %2461 = vmatpush1.msra.mxu0 %v2056
        %2462 = vmatprep.subr.mxu0 %v2061
        %2463 = vmatpush1.msra.mxu0 %v2060
        %2464 = vmatprep.subr.mxu0 %v2065
        %2465 = vmatpush1.msra.mxu0 %v2064
        %2466 = vmatprep.subr.mxu0 %v2069
        %2467 = vmatpush1.msra.mxu0 %v2068
        %2468 = vmatprep.subr.mxu0 %v2073
        %2469 = vmatpush1.msra.mxu0 %v2072
        %2470 = vmatprep.subr.mxu0 %v2077
        %2471 = vmatpush1.msra.mxu0 %v2076
        %2472 = vmatprep.subr.mxu0 %v2081
        %2473 = vmatpush1.msra.mxu0 %v2080
        %2474 = vmatprep.subr.mxu0 %v2085
        %2475 = vmatpush1.msra.mxu0 %v2084
        %2476 = vmatprep.subr.mxu0 %v2089
        %2477 = vmatpush1.msra.mxu0 %v2088
        %2478 = vmatprep.subr.mxu0 %v2093
        %2479 = vmatpush1.msra.mxu0 %v2092
        %2480 = vmatprep.subr.mxu0 %v2097
        %2481 = vmatpush1.msra.mxu0 %v2096
        %2482 = vmatprep.subr.mxu0 %v2101
        %2483 = vmatpush1.msra.mxu0 %v2100
        %2484 = vmatprep.subr.mxu0 %v2105
        %2485 = vmatpush1.msra.mxu0 %v2104
        %2486 = vmatprep.subr.mxu0 %v2109
        %2487 = vmatpush1.msra.mxu0 %v2108
        %2488 = vmatprep.subr.mxu0 %v2113
        %2489 = vmatpush1.msra.mxu0 %v2112
        %2490 = vmatprep.subr.mxu0 %v2117
        %2491 = vmatpush1.msra.mxu0 %v2116
        %2492 = vmatprep.subr.mxu0 %v2121
        %2493 = vmatpush1.msra.mxu0 %v2120
        %2494 = vmatprep.subr.mxu0 %v2125
        %2495 = vmatpush1.msra.mxu0 %v2124
        %2496 = vmatprep.subr.mxu0 %v2129
        %2497 = vmatpush1.msra.mxu0 %v2128
        %2498 = vmatprep.subr.mxu0 %v2133
        %2499 = vmatpush1.msra.mxu0 %v2132
        %2500 = vmatprep.subr.mxu0 %v2137
        %2501 = vmatpush1.msra.mxu0 %v2136
        %2502 = vmatprep.subr.mxu0 %v2141
        %2503 = vmatpush1.msra.mxu0 %v2140
        %2504 = vmatprep.subr.mxu0 %v2145
        %2505 = vmatpush1.msra.mxu0 %v2144
        %2506 = vmatprep.subr.mxu0 %v2149
        %2507 = vmatpush1.msra.mxu0 %v2148
        %2508 = vmatprep.mubr.f32.mxu0 %v1765
        %2509 = vmatmul.mubr.f32.gmra.mrb[0].mxu0 %v1764
        %v2510 = vpop.f32.mrb[0].mxu0
        %v2511 = vadd.f32 %v2440, %v2510
        %v2512 = vpop.f32.mrb[0].mxu0
        %v2513 = vadd.f32 %v2442, %v2512
        %2514 = vdwg.mxu0
        %2515 = vmatprep.subr.mxu0 %v2153
        %2516 = vmatpush1.msra.mxu0 %v2152
        %2517 = vmatprep.subr.mxu0 %v2157
        %2518 = vmatpush1.msra.mxu0 %v2156
        %2519 = vmatprep.subr.mxu0 %v2161
        %2520 = vmatpush1.msra.mxu0 %v2160
        %2521 = vmatprep.subr.mxu0 %v2165
        %2522 = vmatpush1.msra.mxu0 %v2164
        %2523 = vmatprep.subr.mxu0 %v2169
        %2524 = vmatpush1.msra.mxu0 %v2168
        %2525 = vmatprep.subr.mxu0 %v2173
        %2526 = vmatpush1.msra.mxu0 %v2172
        %2527 = vmatprep.subr.mxu0 %v2177
        %2528 = vmatpush1.msra.mxu0 %v2176
        %2529 = vmatprep.subr.mxu0 %v2181
        %2530 = vmatpush1.msra.mxu0 %v2180
        %2531 = vmatprep.subr.mxu0 %v2185
        %2532 = vmatpush1.msra.mxu0 %v2184
        %2533 = vmatprep.subr.mxu0 %v2189
        %2534 = vmatpush1.msra.mxu0 %v2188
        %2535 = vmatprep.subr.mxu0 %v2193
        %2536 = vmatpush1.msra.mxu0 %v2192
        %2537 = vmatprep.subr.mxu0 %v2197
        %2538 = vmatpush1.msra.mxu0 %v2196
        %2539 = vmatprep.subr.mxu0 %v2201
        %2540 = vmatpush1.msra.mxu0 %v2200
        %2541 = vmatprep.subr.mxu0 %v2205
        %2542 = vmatpush1.msra.mxu0 %v2204
        %2543 = vmatprep.subr.mxu0 %v2209
        %2544 = vmatpush1.msra.mxu0 %v2208
        %2545 = vmatprep.subr.mxu0 %v2213
        %2546 = vmatpush1.msra.mxu0 %v2212
        %2547 = vmatprep.subr.mxu0 %v2217
        %2548 = vmatpush1.msra.mxu0 %v2216
        %2549 = vmatprep.subr.mxu0 %v2221
        %2550 = vmatpush1.msra.mxu0 %v2220
        %2551 = vmatprep.subr.mxu0 %v2225
        %2552 = vmatpush1.msra.mxu0 %v2224
        %2553 = vmatprep.subr.mxu0 %v2229
        %2554 = vmatpush1.msra.mxu0 %v2228
        %2555 = vmatprep.subr.mxu0 %v2233
        %2556 = vmatpush1.msra.mxu0 %v2232
        %2557 = vmatprep.subr.mxu0 %v2237
        %2558 = vmatpush1.msra.mxu0 %v2236
        %2559 = vmatprep.subr.mxu0 %v2241
        %2560 = vmatpush1.msra.mxu0 %v2240
        %2561 = vmatprep.subr.mxu0 %v2245
        %2562 = vmatpush1.msra.mxu0 %v2244
        %2563 = vmatprep.subr.mxu0 %v2249
        %2564 = vmatpush1.msra.mxu0 %v2248
        %2565 = vmatprep.subr.mxu0 %v2253
        %2566 = vmatpush1.msra.mxu0 %v2252
        %2567 = vmatprep.subr.mxu0 %v2257
        %2568 = vmatpush1.msra.mxu0 %v2256
        %2569 = vmatprep.subr.mxu0 %v2261
        %2570 = vmatpush1.msra.mxu0 %v2260
        %2571 = vmatprep.subr.mxu0 %v2265
        %2572 = vmatpush1.msra.mxu0 %v2264
        %2573 = vmatprep.subr.mxu0 %v2269
        %2574 = vmatpush1.msra.mxu0 %v2268
        %2575 = vmatprep.subr.mxu0 %v2273
        %2576 = vmatpush1.msra.mxu0 %v2272
        %2577 = vmatprep.subr.mxu0 %v2277
        %2578 = vmatpush1.msra.mxu0 %v2276
        %2579 = vmatprep.mubr.f32.mxu0 %v1767
        %2580 = vmatmul.mubr.f32.gmra.mrb[0].mxu0 %v1766
        %v2581 = vpop.f32.mrb[0].mxu0
        %v2582 = vadd.f32 %v2511, %v2581
        %v2583 = vpop.f32.mrb[0].mxu0
        %v2584 = vadd.f32 %v2513, %v2583
        %2585 = vdwg.mxu0
        %2586 = vmatprep.subr.mxu0 %v1771
        %2587 = vmatpush1.msra.mxu0 %v1770
        %2588 = vmatprep.subr.mxu0 %v1775
        %2589 = vmatpush1.msra.mxu0 %v1774
        %2590 = vmatprep.subr.mxu0 %v1779
        %2591 = vmatpush1.msra.mxu0 %v1778
        %2592 = vmatprep.subr.mxu0 %v1783
        %2593 = vmatpush1.msra.mxu0 %v1782
        %2594 = vmatprep.subr.mxu0 %v1787
        %2595 = vmatpush1.msra.mxu0 %v1786
        %2596 = vmatprep.subr.mxu0 %v1791
        %2597 = vmatpush1.msra.mxu0 %v1790
        %2598 = vmatprep.subr.mxu0 %v1795
        %2599 = vmatpush1.msra.mxu0 %v1794
        %2600 = vmatprep.subr.mxu0 %v1799
        %2601 = vmatpush1.msra.mxu0 %v1798
        %2602 = vmatprep.subr.mxu0 %v1803
        %2603 = vmatpush1.msra.mxu0 %v1802
        %2604 = vmatprep.subr.mxu0 %v1807
        %2605 = vmatpush1.msra.mxu0 %v1806
        %2606 = vmatprep.subr.mxu0 %v1811
        %2607 = vmatpush1.msra.mxu0 %v1810
        %2608 = vmatprep.subr.mxu0 %v1815
        %2609 = vmatpush1.msra.mxu0 %v1814
        %2610 = vmatprep.subr.mxu0 %v1819
        %2611 = vmatpush1.msra.mxu0 %v1818
        %2612 = vmatprep.subr.mxu0 %v1823
        %2613 = vmatpush1.msra.mxu0 %v1822
        %2614 = vmatprep.subr.mxu0 %v1827
        %2615 = vmatpush1.msra.mxu0 %v1826
        %2616 = vmatprep.subr.mxu0 %v1831
        %2617 = vmatpush1.msra.mxu0 %v1830
        %2618 = vmatprep.subr.mxu0 %v1835
        %2619 = vmatpush1.msra.mxu0 %v1834
        %2620 = vmatprep.subr.mxu0 %v1839
        %2621 = vmatpush1.msra.mxu0 %v1838
        %2622 = vmatprep.subr.mxu0 %v1843
        %2623 = vmatpush1.msra.mxu0 %v1842
        %2624 = vmatprep.subr.mxu0 %v1847
        %2625 = vmatpush1.msra.mxu0 %v1846
        %2626 = vmatprep.subr.mxu0 %v1851
        %2627 = vmatpush1.msra.mxu0 %v1850
        %2628 = vmatprep.subr.mxu0 %v1855
        %2629 = vmatpush1.msra.mxu0 %v1854
        %2630 = vmatprep.subr.mxu0 %v1859
        %2631 = vmatpush1.msra.mxu0 %v1858
        %2632 = vmatprep.subr.mxu0 %v1863
        %2633 = vmatpush1.msra.mxu0 %v1862
        %2634 = vmatprep.subr.mxu0 %v1867
        %2635 = vmatpush1.msra.mxu0 %v1866
        %2636 = vmatprep.subr.mxu0 %v1871
        %2637 = vmatpush1.msra.mxu0 %v1870
        %2638 = vmatprep.subr.mxu0 %v1875
        %2639 = vmatpush1.msra.mxu0 %v1874
        %2640 = vmatprep.subr.mxu0 %v1879
        %2641 = vmatpush1.msra.mxu0 %v1878
        %2642 = vmatprep.subr.mxu0 %v1883
        %2643 = vmatpush1.msra.mxu0 %v1882
        %2644 = vmatprep.subr.mxu0 %v1887
        %2645 = vmatpush1.msra.mxu0 %v1886
        %2646 = vmatprep.subr.mxu0 %v1891
        %2647 = vmatpush1.msra.mxu0 %v1890
        %2648 = vmatprep.subr.mxu0 %v1895
        %2649 = vmatpush1.msra.mxu0 %v1894
        %2650 = vmatprep.mubr.f32.mxu0 %v1761
        %2651 = vmatmul.mubr.f32.gmra.mrb[0].mxu0 %v1760
        %v2652 = vpop.f32.mrb[0].mxu0
        %v2653 = vadd.f32 %v2293, %v2652
        %v2654 = vpop.f32.mrb[0].mxu0
        %v2655 = vadd.f32 %v2297, %v2654
        %2656 = vdwg.mxu0
        %2657 = vmatprep.subr.mxu0 %v1899
        %2658 = vmatpush1.msra.mxu0 %v1898
        %2659 = vmatprep.subr.mxu0 %v1903
        %2660 = vmatpush1.msra.mxu0 %v1902
        %2661 = vmatprep.subr.mxu0 %v1907
        %2662 = vmatpush1.msra.mxu0 %v1906
        %2663 = vmatprep.subr.mxu0 %v1911
        %2664 = vmatpush1.msra.mxu0 %v1910
        %2665 = vmatprep.subr.mxu0 %v1915
        %2666 = vmatpush1.msra.mxu0 %v1914
        %2667 = vmatprep.subr.mxu0 %v1919
        %2668 = vmatpush1.msra.mxu0 %v1918
        %2669 = vmatprep.subr.mxu0 %v1923
        %2670 = vmatpush1.msra.mxu0 %v1922
        %2671 = vmatprep.subr.mxu0 %v1927
        %2672 = vmatpush1.msra.mxu0 %v1926
        %2673 = vmatprep.subr.mxu0 %v1931
        %2674 = vmatpush1.msra.mxu0 %v1930
        %2675 = vmatprep.subr.mxu0 %v1935
        %2676 = vmatpush1.msra.mxu0 %v1934
        %2677 = vmatprep.subr.mxu0 %v1939
        %2678 = vmatpush1.msra.mxu0 %v1938
        %2679 = vmatprep.subr.mxu0 %v1943
        %2680 = vmatpush1.msra.mxu0 %v1942
        %2681 = vmatprep.subr.mxu0 %v1947
        %2682 = vmatpush1.msra.mxu0 %v1946
        %2683 = vmatprep.subr.mxu0 %v1951
        %2684 = vmatpush1.msra.mxu0 %v1950
        %2685 = vmatprep.subr.mxu0 %v1955
        %2686 = vmatpush1.msra.mxu0 %v1954
        %2687 = vmatprep.subr.mxu0 %v1959
        %2688 = vmatpush1.msra.mxu0 %v1958
        %2689 = vmatprep.subr.mxu0 %v1963
        %2690 = vmatpush1.msra.mxu0 %v1962
        %2691 = vmatprep.subr.mxu0 %v1967
        %2692 = vmatpush1.msra.mxu0 %v1966
        %2693 = vmatprep.subr.mxu0 %v1971
        %2694 = vmatpush1.msra.mxu0 %v1970
        %2695 = vmatprep.subr.mxu0 %v1975
        %2696 = vmatpush1.msra.mxu0 %v1974
        %2697 = vmatprep.subr.mxu0 %v1979
        %2698 = vmatpush1.msra.mxu0 %v1978
        %2699 = vmatprep.subr.mxu0 %v1983
        %2700 = vmatpush1.msra.mxu0 %v1982
        %2701 = vmatprep.subr.mxu0 %v1987
        %2702 = vmatpush1.msra.mxu0 %v1986
        %2703 = vmatprep.subr.mxu0 %v1991
        %2704 = vmatpush1.msra.mxu0 %v1990
        %2705 = vmatprep.subr.mxu0 %v1995
        %2706 = vmatpush1.msra.mxu0 %v1994
        %2707 = vmatprep.subr.mxu0 %v1999
        %2708 = vmatpush1.msra.mxu0 %v1998
        %2709 = vmatprep.subr.mxu0 %v2003
        %2710 = vmatpush1.msra.mxu0 %v2002
        %2711 = vmatprep.subr.mxu0 %v2007
        %2712 = vmatpush1.msra.mxu0 %v2006
        %2713 = vmatprep.subr.mxu0 %v2011
        %2714 = vmatpush1.msra.mxu0 %v2010
        %2715 = vmatprep.subr.mxu0 %v2015
        %2716 = vmatpush1.msra.mxu0 %v2014
        %2717 = vmatprep.subr.mxu0 %v2019
        %2718 = vmatpush1.msra.mxu0 %v2018
        %2719 = vmatprep.subr.mxu0 %v2023
        %2720 = vmatpush1.msra.mxu0 %v2022
        %2721 = vmatprep.mubr.f32.mxu0 %v1763
        %2722 = vmatmul.mubr.f32.gmra.mrb[0].mxu0 %v1762
        %v2723 = vpop.f32.mrb[0].mxu0
        %v2724 = vadd.f32 %v2653, %v2723
        %v2725 = vpop.f32.mrb[0].mxu0
        %v2726 = vadd.f32 %v2655, %v2725
        %2727 = vdwg.mxu0
        %2728 = vmatprep.subr.mxu0 %v2027
        %2729 = vmatpush1.msra.mxu0 %v2026
        %2730 = vmatprep.subr.mxu0 %v2031
        %2731 = vmatpush1.msra.mxu0 %v2030
        %2732 = vmatprep.subr.mxu0 %v2035
        %2733 = vmatpush1.msra.mxu0 %v2034
        %2734 = vmatprep.subr.mxu0 %v2039
        %2735 = vmatpush1.msra.mxu0 %v2038
        %2736 = vmatprep.subr.mxu0 %v2043
        %2737 = vmatpush1.msra.mxu0 %v2042
        %2738 = vmatprep.subr.mxu0 %v2047
        %2739 = vmatpush1.msra.mxu0 %v2046
        %2740 = vmatprep.subr.mxu0 %v2051
        %2741 = vmatpush1.msra.mxu0 %v2050
        %2742 = vmatprep.subr.mxu0 %v2055
        %2743 = vmatpush1.msra.mxu0 %v2054
        %2744 = vmatprep.subr.mxu0 %v2059
        %2745 = vmatpush1.msra.mxu0 %v2058
        %2746 = vmatprep.subr.mxu0 %v2063
        %2747 = vmatpush1.msra.mxu0 %v2062
        %2748 = vmatprep.subr.mxu0 %v2067
        %2749 = vmatpush1.msra.mxu0 %v2066
        %2750 = vmatprep.subr.mxu0 %v2071
        %2751 = vmatpush1.msra.mxu0 %v2070
        %2752 = vmatprep.subr.mxu0 %v2075
        %2753 = vmatpush1.msra.mxu0 %v2074
        %2754 = vmatprep.subr.mxu0 %v2079
        %2755 = vmatpush1.msra.mxu0 %v2078
        %2756 = vmatprep.subr.mxu0 %v2083
        %2757 = vmatpush1.msra.mxu0 %v2082
        %2758 = vmatprep.subr.mxu0 %v2087
        %2759 = vmatpush1.msra.mxu0 %v2086
        %2760 = vmatprep.subr.mxu0 %v2091
        %2761 = vmatpush1.msra.mxu0 %v2090
        %2762 = vmatprep.subr.mxu0 %v2095
        %2763 = vmatpush1.msra.mxu0 %v2094
        %2764 = vmatprep.subr.mxu0 %v2099
        %2765 = vmatpush1.msra.mxu0 %v2098
        %2766 = vmatprep.subr.mxu0 %v2103
        %2767 = vmatpush1.msra.mxu0 %v2102
        %2768 = vmatprep.subr.mxu0 %v2107
        %2769 = vmatpush1.msra.mxu0 %v2106
        %2770 = vmatprep.subr.mxu0 %v2111
        %2771 = vmatpush1.msra.mxu0 %v2110
        %2772 = vmatprep.subr.mxu0 %v2115
        %2773 = vmatpush1.msra.mxu0 %v2114
        %2774 = vmatprep.subr.mxu0 %v2119
        %2775 = vmatpush1.msra.mxu0 %v2118
        %2776 = vmatprep.subr.mxu0 %v2123
        %2777 = vmatpush1.msra.mxu0 %v2122
        %2778 = vmatprep.subr.mxu0 %v2127
        %2779 = vmatpush1.msra.mxu0 %v2126
        %2780 = vmatprep.subr.mxu0 %v2131
        %2781 = vmatpush1.msra.mxu0 %v2130
        %2782 = vmatprep.subr.mxu0 %v2135
        %2783 = vmatpush1.msra.mxu0 %v2134
        %2784 = vmatprep.subr.mxu0 %v2139
        %2785 = vmatpush1.msra.mxu0 %v2138
        %2786 = vmatprep.subr.mxu0 %v2143
        %2787 = vmatpush1.msra.mxu0 %v2142
        %2788 = vmatprep.subr.mxu0 %v2147
        %2789 = vmatpush1.msra.mxu0 %v2146
        %2790 = vmatprep.subr.mxu0 %v2151
        %2791 = vmatpush1.msra.mxu0 %v2150
        %2792 = vmatprep.mubr.f32.mxu0 %v1765
        %2793 = vmatmul.mubr.f32.gmra.mrb[0].mxu0 %v1764
        %v2794 = vpop.f32.mrb[0].mxu0
        %v2795 = vadd.f32 %v2724, %v2794
        %v2796 = vpop.f32.mrb[0].mxu0
        %v2797 = vadd.f32 %v2726, %v2796
        %2798 = vdwg.mxu0
        %2799 = vmatprep.subr.mxu0 %v2155
        %2800 = vmatpush1.msra.mxu0 %v2154
        %2801 = vmatprep.subr.mxu0 %v2159
        %2802 = vmatpush1.msra.mxu0 %v2158
        %2803 = vmatprep.subr.mxu0 %v2163
        %2804 = vmatpush1.msra.mxu0 %v2162
        %2805 = vmatprep.subr.mxu0 %v2167
        %2806 = vmatpush1.msra.mxu0 %v2166
        %2807 = vmatprep.subr.mxu0 %v2171
        %2808 = vmatpush1.msra.mxu0 %v2170
        %2809 = vmatprep.subr.mxu0 %v2175
        %2810 = vmatpush1.msra.mxu0 %v2174
        %2811 = vmatprep.subr.mxu0 %v2179
        %2812 = vmatpush1.msra.mxu0 %v2178
        %2813 = vmatprep.subr.mxu0 %v2183
        %2814 = vmatpush1.msra.mxu0 %v2182
        %2815 = vmatprep.subr.mxu0 %v2187
        %2816 = vmatpush1.msra.mxu0 %v2186
        %2817 = vmatprep.subr.mxu0 %v2191
        %2818 = vmatpush1.msra.mxu0 %v2190
        %2819 = vmatprep.subr.mxu0 %v2195
        %2820 = vmatpush1.msra.mxu0 %v2194
        %2821 = vmatprep.subr.mxu0 %v2199
        %2822 = vmatpush1.msra.mxu0 %v2198
        %2823 = vmatprep.subr.mxu0 %v2203
        %2824 = vmatpush1.msra.mxu0 %v2202
        %2825 = vmatprep.subr.mxu0 %v2207
        %2826 = vmatpush1.msra.mxu0 %v2206
        %2827 = vmatprep.subr.mxu0 %v2211
        %2828 = vmatpush1.msra.mxu0 %v2210
        %2829 = vmatprep.subr.mxu0 %v2215
        %2830 = vmatpush1.msra.mxu0 %v2214
        %2831 = vmatprep.subr.mxu0 %v2219
        %2832 = vmatpush1.msra.mxu0 %v2218
        %2833 = vmatprep.subr.mxu0 %v2223
        %2834 = vmatpush1.msra.mxu0 %v2222
        %2835 = vmatprep.subr.mxu0 %v2227
        %2836 = vmatpush1.msra.mxu0 %v2226
        %2837 = vmatprep.subr.mxu0 %v2231
        %2838 = vmatpush1.msra.mxu0 %v2230
        %2839 = vmatprep.subr.mxu0 %v2235
        %2840 = vmatpush1.msra.mxu0 %v2234
        %2841 = vmatprep.subr.mxu0 %v2239
        %2842 = vmatpush1.msra.mxu0 %v2238
        %2843 = vmatprep.subr.mxu0 %v2243
        %2844 = vmatpush1.msra.mxu0 %v2242
        %2845 = vmatprep.subr.mxu0 %v2247
        %2846 = vmatpush1.msra.mxu0 %v2246
        %2847 = vmatprep.subr.mxu0 %v2251
        %2848 = vmatpush1.msra.mxu0 %v2250
        %2849 = vmatprep.subr.mxu0 %v2255
        %2850 = vmatpush1.msra.mxu0 %v2254
        %2851 = vmatprep.subr.mxu0 %v2259
        %2852 = vmatpush1.msra.mxu0 %v2258
        %2853 = vmatprep.subr.mxu0 %v2263
        %2854 = vmatpush1.msra.mxu0 %v2262
        %2855 = vmatprep.subr.mxu0 %v2267
        %2856 = vmatpush1.msra.mxu0 %v2266
        %2857 = vmatprep.subr.mxu0 %v2271
        %2858 = vmatpush1.msra.mxu0 %v2270
        %2859 = vmatprep.subr.mxu0 %v2275
        %2860 = vmatpush1.msra.mxu0 %v2274
        %2861 = vmatprep.subr.mxu0 %v2279
        %2862 = vmatpush1.msra.mxu0 %v2278
        %2863 = vmatprep.mubr.f32.mxu0 %v1767
        %2864 = vmatmul.mubr.f32.gmra.mrb[0].mxu0 %v1766
        %v2865 = vpop.f32.mrb[0].mxu0
        %v2866 = vadd.f32 %v2795, %v2865
        %v2867 = vpop.f32.mrb[0].mxu0
        %v2868 = vadd.f32 %v2797, %v2867
        %2869 = vdwg.mxu0
        %v2870 = vmul.f32 %v2582, 0.5
        %v2871 = vmul.f32 %v2584, 0.5
        %v2872 = vmul.f32 %v2866, 0.5
        %v2873 = vmul.f32 %v2868, 0.5
        %v2874 = vtanh.pop %v2870
        %v2875 = vtanh.pop %v2871
        %v2876 = vtanh.pop %v2872
        %v2877 = vtanh.pop %v2873
        %v2878 = vmul.f32 %v2874, 0.5
        %v2879 = vmul.f32 %v2875, 0.5
        %v2880 = vmul.f32 %v2876, 0.5
        %v2881 = vmul.f32 %v2877, 0.5
        %v2882 = vadd.f32 %v2878, 0.5
        %v2883 = vadd.f32 %v2879, 0.5
        %v2884 = vadd.f32 %v2880, 0.5
        %v2885 = vadd.f32 %v2881, 0.5
        %v2886 = vld [vmem:[%s7] sm:$0xff]
        %v2887 = vld [vmem:[%s7 + $0x8] sm:$0xff]
        %v2888 = vld [vmem:[%s7 + $0x10] sm:$0xff]
        %v2889 = vld [vmem:[%s7 + $0x18] sm:$0xff]
        %v2890 = vld [vmem:[%s7 + $0x20] sm:$0xff]
        %v2891 = vld [vmem:[%s7 + $0x28] sm:$0xff]
        %v2892 = vld [vmem:[%s7 + $0x30] sm:$0xff]
        %v2893 = vld [vmem:[%s7 + $0x38] sm:$0xff]
        %v2894 = vld [vmem:[%s7 + $0x40] sm:$0xff]
        %v2895 = vld [vmem:[%s7 + $0x48] sm:$0xff]
        %v2896 = vld [vmem:[%s7 + $0x50] sm:$0xff]
        %v2897 = vld [vmem:[%s7 + $0x58] sm:$0xff]
        %v2898 = vld [vmem:[%s7 + $0x60] sm:$0xff]
        %v2899 = vld [vmem:[%s7 + $0x68] sm:$0xff]
        %v2900 = vld [vmem:[%s7 + $0x70] sm:$0xff]
        %v2901 = vld [vmem:[%s7 + $0x78] sm:$0xff]
        %v2902 = vld [vmem:[%s7 + $0x80] sm:$0xff]
        %v2903 = vld [vmem:[%s7 + $0x88] sm:$0xff]
        %v2904 = vld [vmem:[%s7 + $0x90] sm:$0xff]
        %v2905 = vld [vmem:[%s7 + $0x98] sm:$0xff]
        %v2906 = vld [vmem:[%s7 + $0xa0] sm:$0xff]
        %v2907 = vld [vmem:[%s7 + $0xa8] sm:$0xff]
        %v2908 = vld [vmem:[%s7 + $0xb0] sm:$0xff]
        %v2909 = vld [vmem:[%s7 + $0xb8] sm:$0xff]
        %v2910 = vld [vmem:[%s7 + $0xc0] sm:$0xff]
        %v2911 = vld [vmem:[%s7 + $0xc8] sm:$0xff]
        %v2912 = vld [vmem:[%s7 + $0xd0] sm:$0xff]
        %v2913 = vld [vmem:[%s7 + $0xd8] sm:$0xff]
        %v2914 = vld [vmem:[%s7 + $0xe0] sm:$0xff]
        %v2915 = vld [vmem:[%s7 + $0xe8] sm:$0xff]
        %v2916 = vld [vmem:[%s7 + $0xf0] sm:$0xff]
        %v2917 = vld [vmem:[%s7 + $0xf8] sm:$0xff]
        %v2918 = vld [vmem:[%s7 + $0x100] sm:$0xff]
        %v2919 = vld [vmem:[%s7 + $0x108] sm:$0xff]
        %v2920 = vld [vmem:[%s7 + $0x110] sm:$0xff]
        %v2921 = vld [vmem:[%s7 + $0x118] sm:$0xff]
        %v2922 = vld [vmem:[%s7 + $0x120] sm:$0xff]
        %v2923 = vld [vmem:[%s7 + $0x128] sm:$0xff]
        %v2924 = vld [vmem:[%s7 + $0x130] sm:$0xff]
        %v2925 = vld [vmem:[%s7 + $0x138] sm:$0xff]
        %v2926 = vld [vmem:[%s7 + $0x140] sm:$0xff]
        %v2927 = vld [vmem:[%s7 + $0x148] sm:$0xff]
        %v2928 = vld [vmem:[%s7 + $0x150] sm:$0xff]
        %v2929 = vld [vmem:[%s7 + $0x158] sm:$0xff]
        %v2930 = vld [vmem:[%s7 + $0x160] sm:$0xff]
        %v2931 = vld [vmem:[%s7 + $0x168] sm:$0xff]
        %v2932 = vld [vmem:[%s7 + $0x170] sm:$0xff]
        %v2933 = vld [vmem:[%s7 + $0x178] sm:$0xff]
        %v2934 = vld [vmem:[%s7 + $0x180] sm:$0xff]
        %v2935 = vld [vmem:[%s7 + $0x188] sm:$0xff]
        %v2936 = vld [vmem:[%s7 + $0x190] sm:$0xff]
        %v2937 = vld [vmem:[%s7 + $0x198] sm:$0xff]
        %v2938 = vld [vmem:[%s7 + $0x1a0] sm:$0xff]
        %v2939 = vld [vmem:[%s7 + $0x1a8] sm:$0xff]
        %v2940 = vld [vmem:[%s7 + $0x1b0] sm:$0xff]
        %v2941 = vld [vmem:[%s7 + $0x1b8] sm:$0xff]
        %v2942 = vld [vmem:[%s7 + $0x1c0] sm:$0xff]
        %v2943 = vld [vmem:[%s7 + $0x1c8] sm:$0xff]
        %v2944 = vld [vmem:[%s7 + $0x1d0] sm:$0xff]
        %v2945 = vld [vmem:[%s7 + $0x1d8] sm:$0xff]
        %v2946 = vld [vmem:[%s7 + $0x1e0] sm:$0xff]
        %v2947 = vld [vmem:[%s7 + $0x1e8] sm:$0xff]
        %v2948 = vld [vmem:[%s7 + $0x1f0] sm:$0xff]
        %v2949 = vld [vmem:[%s7 + $0x1f8] sm:$0xff]
        %v2950 = vld [vmem:[#allocation14] sm:$0x1]
        %v2952 = vlaneseq
        %v2953 = vshrl.u32 %v2952, 7
        %v2954 = vsub.s32 0, %v2953
        %v2955 = vrot.slane %v2950, %v2954
        %2957 = vmatprep.subr.mxu0 0.0
        %2958 = vmatpush1.msra.mxu0 %v2886
        %2959 = vmatprep.subr.mxu0 0.0
        %2960 = vmatpush1.msra.mxu0 %v2887
        %2961 = vmatprep.subr.mxu0 0.0
        %2962 = vmatpush1.msra.mxu0 %v2888
        %2963 = vmatprep.subr.mxu0 0.0
        %2964 = vmatpush1.msra.mxu0 %v2889
        %2965 = vmatprep.subr.mxu0 0.0
        %2966 = vmatpush1.msra.mxu0 %v2890
        %2967 = vmatprep.subr.mxu0 0.0
        %2968 = vmatpush1.msra.mxu0 %v2891
        %2969 = vmatprep.subr.mxu0 0.0
        %2970 = vmatpush1.msra.mxu0 %v2892
        %2971 = vmatprep.subr.mxu0 0.0
        %2972 = vmatpush1.msra.mxu0 %v2893
        %2973 = vmatprep.subr.mxu0 0.0
        %2974 = vmatpush1.msra.mxu0 %v2894
        %2975 = vmatprep.subr.mxu0 0.0
        %2976 = vmatpush1.msra.mxu0 %v2895
        %2977 = vmatprep.subr.mxu0 0.0
        %2978 = vmatpush1.msra.mxu0 %v2896
        %2979 = vmatprep.subr.mxu0 0.0
        %2980 = vmatpush1.msra.mxu0 %v2897
        %2981 = vmatprep.subr.mxu0 0.0
        %2982 = vmatpush1.msra.mxu0 %v2898
        %2983 = vmatprep.subr.mxu0 0.0
        %2984 = vmatpush1.msra.mxu0 %v2899
        %2985 = vmatprep.subr.mxu0 0.0
        %2986 = vmatpush1.msra.mxu0 %v2900
        %2987 = vmatprep.subr.mxu0 0.0
        %2988 = vmatpush1.msra.mxu0 %v2901
        %2989 = vmatprep.subr.mxu0 0.0
        %2990 = vmatpush1.msra.mxu0 %v2902
        %2991 = vmatprep.subr.mxu0 0.0
        %2992 = vmatpush1.msra.mxu0 %v2903
        %2993 = vmatprep.subr.mxu0 0.0
        %2994 = vmatpush1.msra.mxu0 %v2904
        %2995 = vmatprep.subr.mxu0 0.0
        %2996 = vmatpush1.msra.mxu0 %v2905
        %2997 = vmatprep.subr.mxu0 0.0
        %2998 = vmatpush1.msra.mxu0 %v2906
        %2999 = vmatprep.subr.mxu0 0.0
        %3000 = vmatpush1.msra.mxu0 %v2907
        %3001 = vmatprep.subr.mxu0 0.0
        %3002 = vmatpush1.msra.mxu0 %v2908
        %3003 = vmatprep.subr.mxu0 0.0
        %3004 = vmatpush1.msra.mxu0 %v2909
        %3005 = vmatprep.subr.mxu0 0.0
        %3006 = vmatpush1.msra.mxu0 %v2910
        %3007 = vmatprep.subr.mxu0 0.0
        %3008 = vmatpush1.msra.mxu0 %v2911
        %3009 = vmatprep.subr.mxu0 0.0
        %3010 = vmatpush1.msra.mxu0 %v2912
        %3011 = vmatprep.subr.mxu0 0.0
        %3012 = vmatpush1.msra.mxu0 %v2913
        %3013 = vmatprep.subr.mxu0 0.0
        %3014 = vmatpush1.msra.mxu0 %v2914
        %3015 = vmatprep.subr.mxu0 0.0
        %3016 = vmatpush1.msra.mxu0 %v2915
        %3017 = vmatprep.subr.mxu0 0.0
        %3018 = vmatpush1.msra.mxu0 %v2916
        %3019 = vmatprep.subr.mxu0 0.0
        %3020 = vmatpush1.msra.mxu0 %v2917
        %3021 = vmatprep.mubr.f32.mxu0 %v2883
        %3022 = vmatmul.mubr.f32.gmra.mrb[0].mxu0 %v2882
        %v3023 = vpop.f32.mrb[0].mxu0
        %v3024 = vadd.f32 %v2955, %v3023
        %v3025 = vpop.f32.mrb[0].mxu0
        %3026 = vdwg.mxu0
        %3027 = vmatprep.subr.mxu0 0.0
        %3028 = vmatpush1.msra.mxu0 %v2918
        %3029 = vmatprep.subr.mxu0 0.0
        %3030 = vmatpush1.msra.mxu0 %v2919
        %3031 = vmatprep.subr.mxu0 0.0
        %3032 = vmatpush1.msra.mxu0 %v2920
        %3033 = vmatprep.subr.mxu0 0.0
        %3034 = vmatpush1.msra.mxu0 %v2921
        %3035 = vmatprep.subr.mxu0 0.0
        %3036 = vmatpush1.msra.mxu0 %v2922
        %3037 = vmatprep.subr.mxu0 0.0
        %3038 = vmatpush1.msra.mxu0 %v2923
        %3039 = vmatprep.subr.mxu0 0.0
        %3040 = vmatpush1.msra.mxu0 %v2924
        %3041 = vmatprep.subr.mxu0 0.0
        %3042 = vmatpush1.msra.mxu0 %v2925
        %3043 = vmatprep.subr.mxu0 0.0
        %3044 = vmatpush1.msra.mxu0 %v2926
        %3045 = vmatprep.subr.mxu0 0.0
        %3046 = vmatpush1.msra.mxu0 %v2927
        %3047 = vmatprep.subr.mxu0 0.0
        %3048 = vmatpush1.msra.mxu0 %v2928
        %3049 = vmatprep.subr.mxu0 0.0
        %3050 = vmatpush1.msra.mxu0 %v2929
        %3051 = vmatprep.subr.mxu0 0.0
        %3052 = vmatpush1.msra.mxu0 %v2930
        %3053 = vmatprep.subr.mxu0 0.0
        %3054 = vmatpush1.msra.mxu0 %v2931
        %3055 = vmatprep.subr.mxu0 0.0
        %3056 = vmatpush1.msra.mxu0 %v2932
        %3057 = vmatprep.subr.mxu0 0.0
        %3058 = vmatpush1.msra.mxu0 %v2933
        %3059 = vmatprep.subr.mxu0 0.0
        %3060 = vmatpush1.msra.mxu0 %v2934
        %3061 = vmatprep.subr.mxu0 0.0
        %3062 = vmatpush1.msra.mxu0 %v2935
        %3063 = vmatprep.subr.mxu0 0.0
        %3064 = vmatpush1.msra.mxu0 %v2936
        %3065 = vmatprep.subr.mxu0 0.0
        %3066 = vmatpush1.msra.mxu0 %v2937
        %3067 = vmatprep.subr.mxu0 0.0
        %3068 = vmatpush1.msra.mxu0 %v2938
        %3069 = vmatprep.subr.mxu0 0.0
        %3070 = vmatpush1.msra.mxu0 %v2939
        %3071 = vmatprep.subr.mxu0 0.0
        %3072 = vmatpush1.msra.mxu0 %v2940
        %3073 = vmatprep.subr.mxu0 0.0
        %3074 = vmatpush1.msra.mxu0 %v2941
        %3075 = vmatprep.subr.mxu0 0.0
        %3076 = vmatpush1.msra.mxu0 %v2942
        %3077 = vmatprep.subr.mxu0 0.0
        %3078 = vmatpush1.msra.mxu0 %v2943
        %3079 = vmatprep.subr.mxu0 0.0
        %3080 = vmatpush1.msra.mxu0 %v2944
        %3081 = vmatprep.subr.mxu0 0.0
        %3082 = vmatpush1.msra.mxu0 %v2945
        %3083 = vmatprep.subr.mxu0 0.0
        %3084 = vmatpush1.msra.mxu0 %v2946
        %3085 = vmatprep.subr.mxu0 0.0
        %3086 = vmatpush1.msra.mxu0 %v2947
        %3087 = vmatprep.subr.mxu0 0.0
        %3088 = vmatpush1.msra.mxu0 %v2948
        %3089 = vmatprep.subr.mxu0 0.0
        %3090 = vmatpush1.msra.mxu0 %v2949
        %3091 = vmatprep.mubr.f32.mxu0 %v2885
        %3092 = vmatmul.mubr.f32.gmra.mrb[0].mxu0 %v2884
        %v3093 = vpop.f32.mrb[0].mxu0
        %v3094 = vadd.f32 %v3024, %v3093
        %v3095 = vpop.f32.mrb[0].mxu0
        %3096 = vdwg.mxu0
        %v3097 = vmul.f32 %v3094, 0.5
        %v3098 = vtanh.pop %v3097
        %v3099 = vmul.f32 %v3098, 0.5
        %v3100 = vadd.f32 %v3099, 0.5
        %v3101 = vld [vmem:[#allocation16] sm:$0xff]
        %v3102 = vld [vmem:[#allocation16 + $0x8] sm:$0xff]
        %v3103 = vld [vmem:[#allocation16 + $0x10] sm:$0xff]
        %v3104 = vld [vmem:[#allocation16 + $0x18] sm:$0xff]
        %v3105 = vld [vmem:[#allocation16 + $0x20] sm:$0xff]
        %v3106 = vld [vmem:[#allocation16 + $0x28] sm:$0xff]
        %v3107 = vld [vmem:[#allocation16 + $0x30] sm:$0xff]
        %v3108 = vld [vmem:[#allocation16 + $0x38] sm:$0xff]
        %v3109 = vld [vmem:[#allocation17] sm:$0x1]
        %v3111 = vlaneseq
        %v3112 = vshrl.u32 %v3111, 7
        %v3113 = vsub.s32 0, %v3112
        %v3114 = vrot.slane %v3109, %v3113
        %vm3116 = vcmask 523264
        %v3118 = vsel %vm3116, %v3100, 0
        %3120 = vmatprep.subr.mxu0 0.0
        %3121 = vmatpush1.msra.mxu0 %v3101
        %3122 = vmatprep.subr.mxu0 0.0
        %3123 = vmatpush1.msra.mxu0 %v3102
        %3124 = vmatprep.subr.mxu0 0.0
        %3125 = vmatpush1.msra.mxu0 %v3103
        %3126 = vmatprep.subr.mxu0 0.0
        %3127 = vmatpush1.msra.mxu0 %v3104
        %3128 = vmatprep.subr.mxu0 0.0
        %3129 = vmatpush1.msra.mxu0 %v3105
        %3130 = vmatprep.subr.mxu0 0.0
        %3131 = vmatpush1.msra.mxu0 %v3106
        %3132 = vmatprep.subr.mxu0 0.0
        %3133 = vmatpush1.msra.mxu0 %v3107
        %3134 = vmatprep.subr.mxu0 0.0
        %3135 = vmatpush1.msra.mxu0 %v3108
        %3136 = vmatprep.subr.mxu0 0.0
        %3137 = vmatpush1.msra.mxu0 0.0
        %3138 = vmatprep.subr.mxu0 0.0
        %3139 = vmatpush1.msra.mxu0 0.0
        %3140 = vmatprep.subr.mxu0 0.0
        %3141 = vmatpush1.msra.mxu0 0.0
        %3142 = vmatprep.subr.mxu0 0.0
        %3143 = vmatpush1.msra.mxu0 0.0
        %3144 = vmatprep.subr.mxu0 0.0
        %3145 = vmatpush1.msra.mxu0 0.0
        %3146 = vmatprep.subr.mxu0 0.0
        %3147 = vmatpush1.msra.mxu0 0.0
        %3148 = vmatprep.subr.mxu0 0.0
        %3149 = vmatpush1.msra.mxu0 0.0
        %3150 = vmatprep.subr.mxu0 0.0
        %3151 = vmatpush1.msra.mxu0 0.0
        %3152 = vmatprep.subr.mxu0 0.0
        %3153 = vmatpush1.msra.mxu0 0.0
        %3154 = vmatprep.subr.mxu0 0.0
        %3155 = vmatpush1.msra.mxu0 0.0
        %3156 = vmatprep.subr.mxu0 0.0
        %3157 = vmatpush1.msra.mxu0 0.0
        %3158 = vmatprep.subr.mxu0 0.0
        %3159 = vmatpush1.msra.mxu0 0.0
        %3160 = vmatprep.subr.mxu0 0.0
        %3161 = vmatpush1.msra.mxu0 0.0
        %3162 = vmatprep.subr.mxu0 0.0
        %3163 = vmatpush1.msra.mxu0 0.0
        %3164 = vmatprep.subr.mxu0 0.0
        %3165 = vmatpush1.msra.mxu0 0.0
        %3166 = vmatprep.subr.mxu0 0.0
        %3167 = vmatpush1.msra.mxu0 0.0
        %3168 = vmatprep.subr.mxu0 0.0
        %3169 = vmatpush1.msra.mxu0 0.0
        %3170 = vmatprep.subr.mxu0 0.0
        %3171 = vmatpush1.msra.mxu0 0.0
        %3172 = vmatprep.subr.mxu0 0.0
        %3173 = vmatpush1.msra.mxu0 0.0
        %3174 = vmatprep.subr.mxu0 0.0
        %3175 = vmatpush1.msra.mxu0 0.0
        %3176 = vmatprep.subr.mxu0 0.0
        %3177 = vmatpush1.msra.mxu0 0.0
        %3178 = vmatprep.subr.mxu0 0.0
        %3179 = vmatpush1.msra.mxu0 0.0
        %3180 = vmatprep.subr.mxu0 0.0
        %3181 = vmatpush1.msra.mxu0 0.0
        %3182 = vmatprep.subr.mxu0 0.0
        %3183 = vmatpush1.msra.mxu0 0.0
        %3184 = vmatprep.mubr.f32.mxu0 0.0
        %3185 = vmatmul.mubr.f32.gmra.mrb[0].mxu0 %v3118
        %v3186 = vpop.f32.mrb[0].mxu0
        %v3187 = vadd.f32 %v3114, %v3186
        %v3188 = vpop.f32.mrb[0].mxu0
        %3189 = vdwg.mxu0
        %3190 = vst [vmem:[%s522] sm:$0xff] %v3187
        %s3191 = sand.u32 %s277, 1
        %s3192 = scalar_lea.sflag [#allocation4], %s3191
        %s3193 = sand.u32 %s277, 1
        %s3194 = smul.addr %s3193, 8
        %s3195 = scalar_lea.vmem [#allocation19], %s3194
        // Predicated region
        $region105: #{tpu_custom_call.1} parent=63 // pred_check
          %p3196 = pneg %p287
        $region106: #{tpu_custom_call.1} parent=63 // pred_check_branch
          %3198 = sbr.rel (%p3196) target = $region108
        $region107: #{tpu_custom_call.1} parent=63 // pred_region
          %s3200 = ssub.s32 128, 128
          %3201 = vsyncadd %s3192, %s3200
          %s3202 = smul.addr %s33, 128
          %s3203 = scalar_lea.hbm %s11, %s3202
          %s3205 = sshll.u32 %s3195, 4
          %s3206 = int_to_ptr.vmem [resolvable:$true] %s3205
          %3208 = dma.vmem_to_hbm [thread:$0]  %s3206, 128, %s3203, %s3192
        $region108: #{tpu_custom_call.1} parent=63 // pred_fallthru
          _
      $region64: #{tpu_custom_call.1} parent=5 // pred_fallthru
        _
      %p3209 = scmp.le.s32.totalorder 2, %s28
      // Predicated region
      $region109: #{tpu_custom_call.1} parent=5 // pred_check
        %p3210 = pneg %p3209
      $region110: #{tpu_custom_call.1} parent=5 // pred_check_branch
        %3212 = sbr.rel (%p3210) target = $region112
      $region111: #{tpu_custom_call.1} parent=5 // pred_region
        %s3213 = ssub.s32 %s28, 2
        // Predicated region
        $region113: #{tpu_custom_call.1} parent=111 // pred_check
          %p3214 = pneg %p293
        $region114: #{tpu_custom_call.1} parent=111 // pred_check_branch
          %3216 = sbr.rel (%p3214) target = $region116
        $region115: #{tpu_custom_call.1} parent=111 // pred_region
          %s3217 = sand.u32 %s278, 1
          %s3218 = scalar_lea.sflag [#allocation4], %s3217
          %s3219 = sand.u32 %s278, 1
          %s3220 = smul.addr %s3219, 8
          %s3221 = scalar_lea.vmem [#allocation19], %s3220
          %3222 = dma.done %s3218, 128
        $region116: #{tpu_custom_call.1} parent=111 // pred_fallthru
          _
      $region112: #{tpu_custom_call.1} parent=5 // pred_fallthru
        _
    $region6: #{tpu_custom_call.1} parent=1 // loop_footer
      %s32 = sadd.s32 1, %s28
    $region7: #{tpu_custom_call.1} parent=1 // loop_footer_branch
      %27 = sbr.rel target = $region3
    $region8: #{tpu_custom_call.1} parent=1 // loop_exit
      _
    %3223 = vsyncpa [#allocation3], 1
    %s3224 = scalar_lea.sflag [#allocation3], 1
    %3225 = vsyncpa %s3224, 1
    %3226 = vsyncpa [#allocation6], 1
    %3227 = vsyncpa [#allocation9], 1
    %3228 = vsyncpa [#allocation12], 1
    %3229 = vsyncpa [#allocation15], 1
    %3230 = vsyncpa [#allocation18], 1
    %3231 = vsyncpa [#allocation4], 1
    %s3232 = scalar_lea.sflag [#allocation4], 1
    %3233 = vsyncpa %s3232, 1

</llo_original>
